<compile_context>
chip_gen: v7x
topology: tpu7x:2x2x1
jax: 0.10.0
libtpu: 0.0.40
codegen_flags: <defaults>
</compile_context>

<pallas_src>
import functools
import math

import jax
import jax.numpy as jnp
from jax.experimental import pallas as pl
from jax.experimental.pallas import tpu as pltpu


# Row indices inside the packed per-layer [15, D] vector slab.
(_BQ1, _BK1, _BV1, _BO1,
 _BQ2, _BK2, _BV2, _BO2,
 _B2,
 _G1, _BE1, _G2, _BE2, _G3, _BE3) = range(15)

_MAT_KEYS = ["wq1", "wk1", "wv1", "wo1", "wq2", "wk2", "wv2", "wo2", "w1", "w2"]
_VEC_KEYS = ["bq1", "bk1", "bv1", "bo1", "bq2", "bk2", "bv2", "bo2", "b2",
             "g1", "be1", "g2", "be2", "g3", "be3"]


# ---------------------------------------------------------------------------
# In-kernel math helpers.
# ---------------------------------------------------------------------------
def _mm(a_c, w, compute_dtype):
    """MXU matmul with f32 accumulation. `a_c` is already in compute_dtype."""
    return jnp.dot(a_c, w.astype(compute_dtype),
                   preferred_element_type=jnp.float32)


def _layer_norm(x, gamma, beta, eps=1e-5):
    mean = jnp.mean(x, axis=-1, keepdims=True)
    var = jnp.mean(jnp.square(x - mean), axis=-1, keepdims=True)
    return (x - mean) * jax.lax.rsqrt(var + eps) * gamma + beta


def _mha(xq_c, xkv_c, B, Sq, Sk, wq, bq, wk, bk, wv, bv, wo, bo,
         num_heads, compute_dtype):
    """Multi-head attention. xq_c: [B*Sq, D], xkv_c: [B*Sk, D] (compute_dtype)."""
    D = wq.shape[0]
    dh = D // num_heads
    scale = 1.0 / math.sqrt(dh)

    # QKV projections on flattened slabs (one big matmul each, f32 accumulate).
    # The 1/sqrt(dh) score scale is folded into q (VPU work over B*Sq*D only).
    q = (_mm(xq_c, wq, compute_dtype) + bq) * scale
    k = _mm(xkv_c, wk, compute_dtype) + bk
    v = _mm(xkv_c, wv, compute_dtype) + bv
    # Cast once (full width) before head slicing.
    q = q.astype(compute_dtype).reshape(B, Sq, D)
    k = k.astype(compute_dtype).reshape(B, Sk, D)
    v = v.astype(compute_dtype).reshape(B, Sk, D)

    ctx_heads = []
    for h in range(num_heads):          # unrolled at trace time
        sl = slice(h * dh, (h + 1) * dh)
        # Contract the last dim of both operands (no explicit transpose).
        s = jnp.einsum('bqd,bkd->bqk', q[:, :, sl], k[:, :, sl],
                       preferred_element_type=jnp.float32)
        m = jnp.max(s, axis=-1, keepdims=True)
        e = jnp.exp(s - m)                              # EUP
        p = e / jnp.sum(e, axis=-1, keepdims=True)      # exact softmax (f32)
        ctx_heads.append(jnp.einsum('bqk,bkd->bqd', p.astype(compute_dtype),
                                    v[:, :, sl],
                                    preferred_element_type=jnp.float32))

    # Heads contiguous on the lane axis -> ONE full-width output projection.
    ctx = jnp.concatenate(ctx_heads, axis=-1).reshape(B * Sq, D)
    out = _mm(ctx.astype(compute_dtype), wo, compute_dtype) + bo
    return out.reshape(B, Sq, D)


# ---------------------------------------------------------------------------
# Fused kernel: the whole layer stack; grid = (batch_split, layer).
# ---------------------------------------------------------------------------
def decoder_stack_kernel(num_heads, compute_dtype,
                         x_ref, enc_ref,
                         wq1, wk1, wv1, wo1, wq2, wk2, wv2, wo2, w1, w2,
                         vec_ref, b1_ref,
                         out_ref):
    layer = pl.program_id(1)

    # out_ref has a layer-invariant index_map, so it stays resident in VMEM
    # across layers and doubles as the (f32) activation carry buffer.
    @pl.when(layer == 0)
    def _():
        out_ref[...] = x_ref[...]

    x = out_ref[...]                    # [Bb, S, D] f32 residual stream
    B, S, D = x.shape
    Se = enc_ref.shape[1]

    vec = vec_ref[0]                    # [15, D] packed biases / LN params (f32)

    def vrow(i):
        return vec[i:i + 1, :]          # [1, D]

    # Encoder output is pre-cast to compute_dtype in the wrapper.
    enc_c = enc_ref[...].reshape(B * Se, D)

    # --- self attention + residual + LN1 ------------------------------------
    x_c = x.reshape(B * S, D).astype(compute_dtype)
    sa = _mha(x_c, x_c, B, S, S,
              wq1[0], vrow(_BQ1), wk1[0], vrow(_BK1),
              wv1[0], vrow(_BV1), wo1[0], vrow(_BO1),
              num_heads, compute_dtype)
    x = _layer_norm(x + sa, vrow(_G1), vrow(_BE1))

    # --- encoder (cross) attention + residual + LN2 --------------------------
    x_c = x.reshape(B * S, D).astype(compute_dtype)
    ca = _mha(x_c, enc_c, B, S, Se,
              wq2[0], vrow(_BQ2), wk2[0], vrow(_BK2),
              wv2[0], vrow(_BV2), wo2[0], vrow(_BO2),
              num_heads, compute_dtype)
    x = _layer_norm(x + ca, vrow(_G2), vrow(_BE2))

    # --- feedforward (Linear -> ReLU -> Linear) + residual + LN3 --------------
    x_c = x.reshape(B * S, D).astype(compute_dtype)
    h = jnp.maximum(_mm(x_c, w1[0], compute_dtype) + b1_ref[0], 0.0)
    ff = (_mm(h.astype(compute_dtype), w2[0], compute_dtype)
          + vrow(_B2)).reshape(B, S, D)
    x = _layer_norm(x + ff, vrow(_G3), vrow(_BE3))

    out_ref[...] = x                    # carried to next layer; one HBM write.


# ---------------------------------------------------------------------------
# Wrapper.
# ---------------------------------------------------------------------------
def decoder_forward(x, enc, params, num_heads, *,
                    compute_dtype=jnp.float32, weight_dtype=None,
                    batch_splits=1):
    """Run the whole decoder stack in one pallas_call.

    compute_dtype: dtype of matmul operands (bf16 recommended on v6e/v7x).
    weight_dtype:  storage dtype of the stacked weight matrices in HBM
                   (defaults to compute_dtype; bf16 halves weight DMA bytes).
    batch_splits:  extra leading "parallel" grid axis (use 2 on v7x megacore).
    """
    B, S, D = x.shape
    Se = enc.shape[1]
    L = len(params)
    d_ff = params[0]["w1"].shape[1]
    assert B % batch_splits == 0
    Bb = B // batch_splits
    if weight_dtype is None:
        weight_dtype = compute_dtype

    # Stack per-layer weight matrices along a leading layer axis: [L, ...].
    mats = [jnp.stack([p[k] for p in params], axis=0).astype(weight_dtype)
            for k in _MAT_KEYS]
    # Pack all D-wide per-layer vectors into one [L, 15, D] slab (f32).
    vecs = jnp.stack([jnp.concatenate([p[k] for k in _VEC_KEYS], axis=0)
                      for p in params], axis=0)
    b1s = jnp.stack([p["b1"] for p in params], axis=0)          # [L, 1, d_ff]
    enc_in = enc.astype(compute_dtype)       # cast once, outside the kernel.

    def wspec(arr):
        n = arr.ndim
        return pl.BlockSpec((1,) + tuple(arr.shape[1:]),
                            lambda b, l, n=n: (l,) + (0,) * (n - 1))

    in_specs = ([pl.BlockSpec((Bb, S, D), lambda b, l: (b, 0, 0)),    # x
                 pl.BlockSpec((Bb, Se, D), lambda b, l: (b, 0, 0))]   # enc out
                + [wspec(m) for m in mats]
                + [wspec(vecs), wspec(b1s)])
    out_spec = pl.BlockSpec((Bb, S, D), lambda b, l: (b, 0, 0))

    # Explicit scoped-VMEM budget: double-buffered weight blocks + activation
    # blocks + largest in-body intermediates, with headroom; clamped to ~85%
    # of the detected per-core VMEM capacity (handles 64 MiB v7x).
    weight_bytes = sum(math.prod(a.shape[1:]) * a.dtype.itemsize
                       for a in mats + [vecs, b1s])
    act_bytes = (4 * Bb * S * D                      # resident f32 carry
                 + 2 * x.dtype.itemsize * Bb * S * D
                 + 2 * enc_in.dtype.itemsize * Bb * Se * D)
    inter_bytes = 4 * (6 * Bb * S * D + 2 * Bb * Se * D
                       + 2 * Bb * S * max(S, Se)
                       + Bb * S * d_ff)
    est = 2 * weight_bytes + act_bytes + inter_bytes + (8 << 20)
    cap = 64 << 20
    try:
        cap = int(pltpu.get_tpu_info().vmem_capacity_bytes)
    except Exception:
        pass
    vmem_limit = int(min(max(est, 32 << 20), int(0.85 * cap)))

    kernel = functools.partial(decoder_stack_kernel, num_heads, compute_dtype)
    return pl.pallas_call(
        kernel,
        out_shape=jax.ShapeDtypeStruct((B, S, D), jnp.float32),
        grid=(batch_splits, L),
        in_specs=in_specs,
        out_specs=out_spec,
        compiler_params=pltpu.CompilerParams(
            dimension_semantics=("parallel", "arbitrary"),
            vmem_limit_bytes=vmem_limit),
    )(x, enc_in, *mats, vecs, b1s)


# ---------------------------------------------------------------------------
# Pure-JAX reference (same math) for correctness checks.
# ---------------------------------------------------------------------------
def _ref_mha(xq, xkv, wq, bq, wk, bk, wv, bv, wo, bo, num_heads):
    B, Sq, D = xq.shape
    Sk = xkv.shape[1]
    dh = D // num_heads
    q = (jnp.einsum('bsd,de->bse', xq, wq) + bq).reshape(B, Sq, num_heads, dh)
    k = (jnp.einsum('bsd,de->bse', xkv, wk) + bk).reshape(B, Sk, num_heads, dh)
    v = (jnp.einsum('bsd,de->bse', xkv, wv) + bv).reshape(B, Sk, num_heads, dh)
    s = jnp.einsum('bqhd,bkhd->bhqk', q, k) / jnp.sqrt(jnp.float32(dh))
    p = jax.nn.softmax(s, axis=-1)
    ctx = jnp.einsum('bhqk,bkhd->bqhd', p, v).reshape(B, Sq, D)
    return jnp.einsum('bsd,de->bse', ctx, wo) + bo


def decoder_ref(x, enc, params, num_heads):
    for p in params:
        sa = _ref_mha(x, x, p["wq1"], p["bq1"], p["wk1"], p["bk1"],
                      p["wv1"], p["bv1"], p["wo1"], p["bo1"], num_heads)
        x = _layer_norm(x + sa, p["g1"], p["be1"])
        ca = _ref_mha(x, enc, p["wq2"], p["bq2"], p["wk2"], p["bk2"],
                      p["wv2"], p["bv2"], p["wo2"], p["bo2"], num_heads)
        x = _layer_norm(x + ca, p["g2"], p["be2"])
        h = jnp.maximum(jnp.einsum('bsd,df->bsf', x, p["w1"]) + p["b1"], 0.0)
        ff = jnp.einsum('bsf,fd->bsd', h, p["w2"]) + p["b2"]
        x = _layer_norm(x + ff, p["g3"], p["be3"])
    return x


# ---------------------------------------------------------------------------
# Deterministic synthetic parameter init (shapes from the module's __init__).
# ---------------------------------------------------------------------------
def init_params(key, num_layers, d_model, num_heads, d_ff):
    params = []
    for _ in range(num_layers):
        p = {}

        def draw(shape, scale=0.02):
            nonlocal key
            key, sub = jax.random.split(key)
            return scale * jax.random.normal(sub, shape, jnp.float32)

        for suf in ("1", "2"):                  # self-attn ("1") / cross-attn ("2")
            p["wq" + suf] = draw((d_model, d_model)); p["bq" + suf] = draw((1, d_model))
            p["wk" + suf] = draw((d_model, d_model)); p["bk" + suf] = draw((1, d_model))
            p["wv" + suf] = draw((d_model, d_model)); p["bv" + suf] = draw((1, d_model))
            p["wo" + suf] = draw((d_model, d_model)); p["bo" + suf] = draw((1, d_model))
        p["w1"] = draw((d_model, d_ff)); p["b1"] = draw((1, d_ff))
        p["w2"] = draw((d_ff, d_model)); p["b2"] = draw((1, d_model))
        for i in ("1", "2", "3"):               # LayerNorm: gamma=1, beta=0
            p["g" + i] = jnp.ones((1, d_model), jnp.float32)
            p["be" + i] = jnp.zeros((1, d_model), jnp.float32)
        params.append(p)
    return params


if __name__ == "__main__":
    # Small but lane-dense config (D is a multiple of 128; the D=32 toy shape
    # would mask every store and is meaningless for perf validation).
    num_layers, d_model, num_heads, d_ff = 2, 128, 4, 256
    B, S_tgt, S_src = 2, 8, 16

    root = jax.random.PRNGKey(0)
    kx, ke, kp = jax.random.split(root, 3)
    x = jax.random.normal(kx, (B, S_tgt, d_model), jnp.float32)
    enc_out = jax.random.normal(ke, (B, S_src, d_model), jnp.float32)
    params = init_params(kp, num_layers, d_model, num_heads, d_ff)

    ref = decoder_ref(x, enc_out, params, num_heads)

    # 1) f32 compute path (tight check).
    out = decoder_forward(x, enc_out, params, num_heads)
    out = jax.block_until_ready(out)
    assert out.shape == (B, S_tgt, d_model)
    err = float(jnp.max(jnp.abs(out - ref)))
    assert err < 5e-3, f"f32 max_err={err}"

    # 2) bf16 MXU operands + bf16 weight storage + batch-split parallel axis
    #    (the v6e/v7x performance configuration).
    out_bf16 = decoder_forward(x, enc_out, params, num_heads,
                               compute_dtype=jnp.bfloat16,
                               weight_dtype=jnp.bfloat16,
                               batch_splits=2)
    out_bf16 = jax.block_until_ready(out_bf16)
    err_bf16 = float(jnp.max(jnp.abs(out_bf16 - ref)))
    assert err_bf16 < 5e-2, f"bf16 max_err={err_bf16}"

    print("KERNEL_OK")
</pallas_src>

<mosaic_0001>
module attributes {stable_mosaic.version = 11 : i64} {
  func.func @decoder_stack_kernel(%arg0: i32, %arg1: i32, %arg2: memref<2x8x128xf32, #tpu.memory_space<vmem>>, %arg3: memref<2x16x128xf32, #tpu.memory_space<vmem>>, %arg4: memref<1x128x128xf32, #tpu.memory_space<vmem>>, %arg5: memref<1x128x128xf32, #tpu.memory_space<vmem>>, %arg6: memref<1x128x128xf32, #tpu.memory_space<vmem>>, %arg7: memref<1x128x128xf32, #tpu.memory_space<vmem>>, %arg8: memref<1x128x128xf32, #tpu.memory_space<vmem>>, %arg9: memref<1x128x128xf32, #tpu.memory_space<vmem>>, %arg10: memref<1x128x128xf32, #tpu.memory_space<vmem>>, %arg11: memref<1x128x128xf32, #tpu.memory_space<vmem>>, %arg12: memref<1x128x256xf32, #tpu.memory_space<vmem>>, %arg13: memref<1x256x128xf32, #tpu.memory_space<vmem>>, %arg14: memref<1x15x128xf32, #tpu.memory_space<vmem>>, %arg15: memref<1x1x256xf32, #tpu.memory_space<vmem>>, %arg16: memref<2x8x128xf32, #tpu.memory_space<vmem>>) attributes {dimension_semantics = [#tpu.dimension_semantics<parallel>, #tpu.dimension_semantics<arbitrary>], iteration_bounds = array<i64: 1, 2>, scalar_prefetch = 0 : i64, scratch_operands = 0 : i64, tpu.core_type = #tpu.core_type<tc>, window_params = [{transform_indices = @transform_0, window_bounds = array<i64: 2, 8, 128>}, {transform_indices = @transform_1, window_bounds = array<i64: 2, 16, 128>}, {transform_indices = @transform_2, window_bounds = array<i64: 1, 128, 128>}, {transform_indices = @transform_3, window_bounds = array<i64: 1, 128, 128>}, {transform_indices = @transform_4, window_bounds = array<i64: 1, 128, 128>}, {transform_indices = @transform_5, window_bounds = array<i64: 1, 128, 128>}, {transform_indices = @transform_6, window_bounds = array<i64: 1, 128, 128>}, {transform_indices = @transform_7, window_bounds = array<i64: 1, 128, 128>}, {transform_indices = @transform_8, window_bounds = array<i64: 1, 128, 128>}, {transform_indices = @transform_9, window_bounds = array<i64: 1, 128, 128>}, {transform_indices = @transform_10, window_bounds = array<i64: 1, 128, 256>}, {transform_indices = @transform_11, window_bounds = array<i64: 1, 256, 128>}, {transform_indices = @transform_12, window_bounds = array<i64: 1, 15, 128>}, {transform_indices = @transform_13, window_bounds = array<i64: 1, 1, 256>}, {transform_indices = @transform_14, window_bounds = array<i64: 2, 8, 128>}]} {
    %c0_i32 = arith.constant 0 : i32
    %0 = arith.cmpi eq, %arg1, %c0_i32 : i32
    %1 = arith.extui %0 : i1 to i32
    %c0_i32_0 = arith.constant 0 : i32
    %2 = arith.cmpi ne, %1, %c0_i32_0 : i32
    scf.if %2 {
      %c0_104 = arith.constant 0 : index
      %c0_105 = arith.constant 0 : index
      %c0_106 = arith.constant 0 : index
      %285 = vector.load %arg2[%c0_104, %c0_105, %c0_106] : memref<2x8x128xf32, #tpu.memory_space<vmem>>, vector<2x8x128xf32>
      %c0_107 = arith.constant 0 : index
      %c0_108 = arith.constant 0 : index
      %c0_109 = arith.constant 0 : index
      %286 = vector.load %arg16[%c0_107, %c0_108, %c0_109] : memref<2x8x128xf32, #tpu.memory_space<vmem>>, vector<2x8x128xf32>
      tpu.vector_store %arg16[%c0_107, %c0_108, %c0_109], %285 {strides = array<i32>} : memref<2x8x128xf32, #tpu.memory_space<vmem>>, vector<2x8x128xf32>,
    } else {
    }
    %c0 = arith.constant 0 : index
    %c0_1 = arith.constant 0 : index
    %c0_2 = arith.constant 0 : index
    %3 = vector.load %arg16[%c0, %c0_1, %c0_2] : memref<2x8x128xf32, #tpu.memory_space<vmem>>, vector<2x8x128xf32>
    %c0_3 = arith.constant 0 : index
    %c0_4 = arith.constant 0 : index
    %c0_5 = arith.constant 0 : index
    %4 = vector.load %arg14[%c0_3, %c0_4, %c0_5] : memref<1x15x128xf32, #tpu.memory_space<vmem>>, vector<1x15x128xf32>
    %5 = vector.shape_cast %4 : vector<1x15x128xf32> to vector<15x128xf32>
    %c0_6 = arith.constant 0 : index
    %c0_7 = arith.constant 0 : index
    %c0_8 = arith.constant 0 : index
    %6 = vector.load %arg3[%c0_6, %c0_7, %c0_8] : memref<2x16x128xf32, #tpu.memory_space<vmem>>, vector<2x16x128xf32>
    %7 = vector.shape_cast %6 : vector<2x16x128xf32> to vector<32x128xf32>
    %8 = vector.shape_cast %3 : vector<2x8x128xf32> to vector<16x128xf32>
    %c0_9 = arith.constant 0 : index
    %c0_10 = arith.constant 0 : index
    %c0_11 = arith.constant 0 : index
    %9 = vector.load %arg4[%c0_9, %c0_10, %c0_11] : memref<1x128x128xf32, #tpu.memory_space<vmem>>, vector<1x128x128xf32>
    %10 = vector.shape_cast %9 : vector<1x128x128xf32> to vector<128x128xf32>
    %11 = vector.extract_strided_slice %5 {offsets = [0, 0], sizes = [1, 128], strides = [1, 1]} : vector<15x128xf32> to vector<1x128xf32>
    %c0_12 = arith.constant 0 : index
    %c0_13 = arith.constant 0 : index
    %c0_14 = arith.constant 0 : index
    %12 = vector.load %arg5[%c0_12, %c0_13, %c0_14] : memref<1x128x128xf32, #tpu.memory_space<vmem>>, vector<1x128x128xf32>
    %13 = vector.shape_cast %12 : vector<1x128x128xf32> to vector<128x128xf32>
    %14 = vector.extract_strided_slice %5 {offsets = [1, 0], sizes = [1, 128], strides = [1, 1]} : vector<15x128xf32> to vector<1x128xf32>
    %c0_15 = arith.constant 0 : index
    %c0_16 = arith.constant 0 : index
    %c0_17 = arith.constant 0 : index
    %15 = vector.load %arg6[%c0_15, %c0_16, %c0_17] : memref<1x128x128xf32, #tpu.memory_space<vmem>>, vector<1x128x128xf32>
    %16 = vector.shape_cast %15 : vector<1x128x128xf32> to vector<128x128xf32>
    %17 = vector.extract_strided_slice %5 {offsets = [2, 0], sizes = [1, 128], strides = [1, 1]} : vector<15x128xf32> to vector<1x128xf32>
    %c0_18 = arith.constant 0 : index
    %c0_19 = arith.constant 0 : index
    %c0_20 = arith.constant 0 : index
    %18 = vector.load %arg7[%c0_18, %c0_19, %c0_20] : memref<1x128x128xf32, #tpu.memory_space<vmem>>, vector<1x128x128xf32>
    %19 = vector.shape_cast %18 : vector<1x128x128xf32> to vector<128x128xf32>
    %20 = vector.extract_strided_slice %5 {offsets = [3, 0], sizes = [1, 128], strides = [1, 1]} : vector<15x128xf32> to vector<1x128xf32>
    %cst = arith.constant dense<0.000000e+00> : vector<16x128xf32>
    %21 = tpu.matmul %8, %10, %cst {dimension_numbers = #tpu.dot_dimension_numbers<[1], [0], [0], [1], [0, 0, 1, 1], [], []>} : vector<16x128xf32>, vector<128x128xf32>, vector<16x128xf32> -> vector<16x128xf32>
    %22 = vector.broadcast %11 : vector<1x128xf32> to vector<16x128xf32>
    %23 = arith.addf %21, %22 : vector<16x128xf32>
    %cst_21 = arith.constant 0.176776692 : f32
    %24 = vector.broadcast %cst_21 : f32 to vector<16x128xf32>
    %25 = arith.mulf %23, %24 : vector<16x128xf32>
    %cst_22 = arith.constant dense<0.000000e+00> : vector<16x128xf32>
    %26 = tpu.matmul %8, %13, %cst_22 {dimension_numbers = #tpu.dot_dimension_numbers<[1], [0], [0], [1], [0, 0, 1, 1], [], []>} : vector<16x128xf32>, vector<128x128xf32>, vector<16x128xf32> -> vector<16x128xf32>
    %27 = vector.broadcast %14 : vector<1x128xf32> to vector<16x128xf32>
    %28 = arith.addf %26, %27 : vector<16x128xf32>
    %cst_23 = arith.constant dense<0.000000e+00> : vector<16x128xf32>
    %29 = tpu.matmul %8, %16, %cst_23 {dimension_numbers = #tpu.dot_dimension_numbers<[1], [0], [0], [1], [0, 0, 1, 1], [], []>} : vector<16x128xf32>, vector<128x128xf32>, vector<16x128xf32> -> vector<16x128xf32>
    %30 = vector.broadcast %17 : vector<1x128xf32> to vector<16x128xf32>
    %31 = arith.addf %29, %30 : vector<16x128xf32>
    %32 = vector.shape_cast %25 : vector<16x128xf32> to vector<2x8x128xf32>
    %33 = vector.shape_cast %28 : vector<16x128xf32> to vector<2x8x128xf32>
    %34 = vector.shape_cast %31 : vector<16x128xf32> to vector<2x8x128xf32>
    %35 = vector.extract_strided_slice %32 {offsets = [0, 0, 0], sizes = [2, 8, 32], strides = [1, 1, 1]} : vector<2x8x128xf32> to vector<2x8x32xf32>
    %36 = vector.extract_strided_slice %33 {offsets = [0, 0, 0], sizes = [2, 8, 32], strides = [1, 1, 1]} : vector<2x8x128xf32> to vector<2x8x32xf32>
    "tpu.trace_start"() <{level = 10 : i32, message = "bqd,bkd->bqk"}> : () -> ()
    %cst_24 = arith.constant dense<0.000000e+00> : vector<2x8x8xf32>
    %37 = tpu.matmul %35, %36, %cst_24 {dimension_numbers = #tpu.dot_dimension_numbers<[2], [2], [1], [1], [0, 0, 0, 1, 1, 1], [0], [0]>} : vector<2x8x32xf32>, vector<2x8x32xf32>, vector<2x8x8xf32> -> vector<2x8x8xf32>
    "tpu.trace_stop"() : () -> ()
    %cst_25 = arith.constant dense<0xFF800000> : vector<2x8xf32>
    %38 = vector.multi_reduction <maximumf>, %37, %cst_25 [2] : vector<2x8x8xf32> to vector<2x8xf32>
    %39 = vector.shape_cast %38 : vector<2x8xf32> to vector<2x8x1xf32>
    %40 = vector.broadcast %39 : vector<2x8x1xf32> to vector<2x8x8xf32>
    %41 = arith.subf %37, %40 : vector<2x8x8xf32>
    %42 = math.exp %41 : vector<2x8x8xf32>
    %cst_26 = arith.constant dense<0.000000e+00> : vector<2x8xf32>
    %43 = vector.multi_reduction <add>, %42, %cst_26 [2] : vector<2x8x8xf32> to vector<2x8xf32>
    %44 = vector.shape_cast %43 : vector<2x8xf32> to vector<2x8x1xf32>
    %45 = vector.broadcast %44 : vector<2x8x1xf32> to vector<2x8x8xf32>
    %46 = arith.divf %42, %45 : vector<2x8x8xf32>
    %47 = vector.extract_strided_slice %34 {offsets = [0, 0, 0], sizes = [2, 8, 32], strides = [1, 1, 1]} : vector<2x8x128xf32> to vector<2x8x32xf32>
    "tpu.trace_start"() <{level = 10 : i32, message = "bqk,bkd->bqd"}> : () -> ()
    %cst_27 = arith.constant dense<0.000000e+00> : vector<2x8x32xf32>
    %48 = tpu.matmul %46, %47, %cst_27 {dimension_numbers = #tpu.dot_dimension_numbers<[2], [1], [1], [2], [0, 0, 0, 1, 1, 2], [0], [0]>} : vector<2x8x8xf32>, vector<2x8x32xf32>, vector<2x8x32xf32> -> vector<2x8x32xf32>
    "tpu.trace_stop"() : () -> ()
    %49 = vector.extract_strided_slice %32 {offsets = [0, 0, 32], sizes = [2, 8, 32], strides = [1, 1, 1]} : vector<2x8x128xf32> to vector<2x8x32xf32>
    %50 = vector.extract_strided_slice %33 {offsets = [0, 0, 32], sizes = [2, 8, 32], strides = [1, 1, 1]} : vector<2x8x128xf32> to vector<2x8x32xf32>
    "tpu.trace_start"() <{level = 10 : i32, message = "bqd,bkd->bqk"}> : () -> ()
    %cst_28 = arith.constant dense<0.000000e+00> : vector<2x8x8xf32>
    %51 = tpu.matmul %49, %50, %cst_28 {dimension_numbers = #tpu.dot_dimension_numbers<[2], [2], [1], [1], [0, 0, 0, 1, 1, 1], [0], [0]>} : vector<2x8x32xf32>, vector<2x8x32xf32>, vector<2x8x8xf32> -> vector<2x8x8xf32>
    "tpu.trace_stop"() : () -> ()
    %cst_29 = arith.constant dense<0xFF800000> : vector<2x8xf32>
    %52 = vector.multi_reduction <maximumf>, %51, %cst_29 [2] : vector<2x8x8xf32> to vector<2x8xf32>
    %53 = vector.shape_cast %52 : vector<2x8xf32> to vector<2x8x1xf32>
    %54 = vector.broadcast %53 : vector<2x8x1xf32> to vector<2x8x8xf32>
    %55 = arith.subf %51, %54 : vector<2x8x8xf32>
    %56 = math.exp %55 : vector<2x8x8xf32>
    %cst_30 = arith.constant dense<0.000000e+00> : vector<2x8xf32>
    %57 = vector.multi_reduction <add>, %56, %cst_30 [2] : vector<2x8x8xf32> to vector<2x8xf32>
    %58 = vector.shape_cast %57 : vector<2x8xf32> to vector<2x8x1xf32>
    %59 = vector.broadcast %58 : vector<2x8x1xf32> to vector<2x8x8xf32>
    %60 = arith.divf %56, %59 : vector<2x8x8xf32>
    %61 = vector.extract_strided_slice %34 {offsets = [0, 0, 32], sizes = [2, 8, 32], strides = [1, 1, 1]} : vector<2x8x128xf32> to vector<2x8x32xf32>
    "tpu.trace_start"() <{level = 10 : i32, message = "bqk,bkd->bqd"}> : () -> ()
    %cst_31 = arith.constant dense<0.000000e+00> : vector<2x8x32xf32>
    %62 = tpu.matmul %60, %61, %cst_31 {dimension_numbers = #tpu.dot_dimension_numbers<[2], [1], [1], [2], [0, 0, 0, 1, 1, 2], [0], [0]>} : vector<2x8x8xf32>, vector<2x8x32xf32>, vector<2x8x32xf32> -> vector<2x8x32xf32>
    "tpu.trace_stop"() : () -> ()
    %63 = vector.extract_strided_slice %32 {offsets = [0, 0, 64], sizes = [2, 8, 32], strides = [1, 1, 1]} : vector<2x8x128xf32> to vector<2x8x32xf32>
    %64 = vector.extract_strided_slice %33 {offsets = [0, 0, 64], sizes = [2, 8, 32], strides = [1, 1, 1]} : vector<2x8x128xf32> to vector<2x8x32xf32>
    "tpu.trace_start"() <{level = 10 : i32, message = "bqd,bkd->bqk"}> : () -> ()
    %cst_32 = arith.constant dense<0.000000e+00> : vector<2x8x8xf32>
    %65 = tpu.matmul %63, %64, %cst_32 {dimension_numbers = #tpu.dot_dimension_numbers<[2], [2], [1], [1], [0, 0, 0, 1, 1, 1], [0], [0]>} : vector<2x8x32xf32>, vector<2x8x32xf32>, vector<2x8x8xf32> -> vector<2x8x8xf32>
    "tpu.trace_stop"() : () -> ()
    %cst_33 = arith.constant dense<0xFF800000> : vector<2x8xf32>
    %66 = vector.multi_reduction <maximumf>, %65, %cst_33 [2] : vector<2x8x8xf32> to vector<2x8xf32>
    %67 = vector.shape_cast %66 : vector<2x8xf32> to vector<2x8x1xf32>
    %68 = vector.broadcast %67 : vector<2x8x1xf32> to vector<2x8x8xf32>
    %69 = arith.subf %65, %68 : vector<2x8x8xf32>
    %70 = math.exp %69 : vector<2x8x8xf32>
    %cst_34 = arith.constant dense<0.000000e+00> : vector<2x8xf32>
    %71 = vector.multi_reduction <add>, %70, %cst_34 [2] : vector<2x8x8xf32> to vector<2x8xf32>
    %72 = vector.shape_cast %71 : vector<2x8xf32> to vector<2x8x1xf32>
    %73 = vector.broadcast %72 : vector<2x8x1xf32> to vector<2x8x8xf32>
    %74 = arith.divf %70, %73 : vector<2x8x8xf32>
    %75 = vector.extract_strided_slice %34 {offsets = [0, 0, 64], sizes = [2, 8, 32], strides = [1, 1, 1]} : vector<2x8x128xf32> to vector<2x8x32xf32>
    "tpu.trace_start"() <{level = 10 : i32, message = "bqk,bkd->bqd"}> : () -> ()
    %cst_35 = arith.constant dense<0.000000e+00> : vector<2x8x32xf32>
    %76 = tpu.matmul %74, %75, %cst_35 {dimension_numbers = #tpu.dot_dimension_numbers<[2], [1], [1], [2], [0, 0, 0, 1, 1, 2], [0], [0]>} : vector<2x8x8xf32>, vector<2x8x32xf32>, vector<2x8x32xf32> -> vector<2x8x32xf32>
    "tpu.trace_stop"() : () -> ()
    %77 = vector.extract_strided_slice %32 {offsets = [0, 0, 96], sizes = [2, 8, 32], strides = [1, 1, 1]} : vector<2x8x128xf32> to vector<2x8x32xf32>
    %78 = vector.extract_strided_slice %33 {offsets = [0, 0, 96], sizes = [2, 8, 32], strides = [1, 1, 1]} : vector<2x8x128xf32> to vector<2x8x32xf32>
    "tpu.trace_start"() <{level = 10 : i32, message = "bqd,bkd->bqk"}> : () -> ()
    %cst_36 = arith.constant dense<0.000000e+00> : vector<2x8x8xf32>
    %79 = tpu.matmul %77, %78, %cst_36 {dimension_numbers = #tpu.dot_dimension_numbers<[2], [2], [1], [1], [0, 0, 0, 1, 1, 1], [0], [0]>} : vector<2x8x32xf32>, vector<2x8x32xf32>, vector<2x8x8xf32> -> vector<2x8x8xf32>
    "tpu.trace_stop"() : () -> ()
    %cst_37 = arith.constant dense<0xFF800000> : vector<2x8xf32>
    %80 = vector.multi_reduction <maximumf>, %79, %cst_37 [2] : vector<2x8x8xf32> to vector<2x8xf32>
    %81 = vector.shape_cast %80 : vector<2x8xf32> to vector<2x8x1xf32>
    %82 = vector.broadcast %81 : vector<2x8x1xf32> to vector<2x8x8xf32>
    %83 = arith.subf %79, %82 : vector<2x8x8xf32>
    %84 = math.exp %83 : vector<2x8x8xf32>
    %cst_38 = arith.constant dense<0.000000e+00> : vector<2x8xf32>
    %85 = vector.multi_reduction <add>, %84, %cst_38 [2] : vector<2x8x8xf32> to vector<2x8xf32>
    %86 = vector.shape_cast %85 : vector<2x8xf32> to vector<2x8x1xf32>
    %87 = vector.broadcast %86 : vector<2x8x1xf32> to vector<2x8x8xf32>
    %88 = arith.divf %84, %87 : vector<2x8x8xf32>
    %89 = vector.extract_strided_slice %34 {offsets = [0, 0, 96], sizes = [2, 8, 32], strides = [1, 1, 1]} : vector<2x8x128xf32> to vector<2x8x32xf32>
    "tpu.trace_start"() <{level = 10 : i32, message = "bqk,bkd->bqd"}> : () -> ()
    %cst_39 = arith.constant dense<0.000000e+00> : vector<2x8x32xf32>
    %90 = tpu.matmul %88, %89, %cst_39 {dimension_numbers = #tpu.dot_dimension_numbers<[2], [1], [1], [2], [0, 0, 0, 1, 1, 2], [0], [0]>} : vector<2x8x8xf32>, vector<2x8x32xf32>, vector<2x8x32xf32> -> vector<2x8x32xf32>
    "tpu.trace_stop"() : () -> ()
    %91 = tpu.concatenate %48, %62, %76, %90 in 2 : vector<2x8x32xf32>, vector<2x8x32xf32>, vector<2x8x32xf32>, vector<2x8x32xf32> -> vector<2x8x128xf32>
    %92 = vector.shape_cast %91 : vector<2x8x128xf32> to vector<16x128xf32>
    %cst_40 = arith.constant dense<0.000000e+00> : vector<16x128xf32>
    %93 = tpu.matmul %92, %19, %cst_40 {dimension_numbers = #tpu.dot_dimension_numbers<[1], [0], [0], [1], [0, 0, 1, 1], [], []>} : vector<16x128xf32>, vector<128x128xf32>, vector<16x128xf32> -> vector<16x128xf32>
    %94 = vector.broadcast %20 : vector<1x128xf32> to vector<16x128xf32>
    %95 = arith.addf %93, %94 : vector<16x128xf32>
    %96 = vector.shape_cast %95 : vector<16x128xf32> to vector<2x8x128xf32>
    %97 = arith.addf %3, %96 : vector<2x8x128xf32>
    %98 = vector.extract_strided_slice %5 {offsets = [9, 0], sizes = [1, 128], strides = [1, 1]} : vector<15x128xf32> to vector<1x128xf32>
    %99 = vector.extract_strided_slice %5 {offsets = [10, 0], sizes = [1, 128], strides = [1, 1]} : vector<15x128xf32> to vector<1x128xf32>
    %cst_41 = arith.constant dense<0.000000e+00> : vector<2x8xf32>
    %100 = vector.multi_reduction <add>, %97, %cst_41 [2] : vector<2x8x128xf32> to vector<2x8xf32>
    %101 = vector.shape_cast %100 : vector<2x8xf32> to vector<2x8x1xf32>
    %cst_42 = arith.constant 1.280000e+02 : f32
    %102 = vector.broadcast %cst_42 : f32 to vector<2x8x1xf32>
    %103 = arith.divf %101, %102 : vector<2x8x1xf32>
    %104 = vector.broadcast %103 : vector<2x8x1xf32> to vector<2x8x128xf32>
    %105 = arith.subf %97, %104 : vector<2x8x128xf32>
    %106 = arith.mulf %105, %105 : vector<2x8x128xf32>
    %cst_43 = arith.constant dense<0.000000e+00> : vector<2x8xf32>
    %107 = vector.multi_reduction <add>, %106, %cst_43 [2] : vector<2x8x128xf32> to vector<2x8xf32>
    %108 = vector.shape_cast %107 : vector<2x8xf32> to vector<2x8x1xf32>
    %cst_44 = arith.constant 1.280000e+02 : f32
    %109 = vector.broadcast %cst_44 : f32 to vector<2x8x1xf32>
    %110 = arith.divf %108, %109 : vector<2x8x1xf32>
    %111 = vector.broadcast %103 : vector<2x8x1xf32> to vector<2x8x128xf32>
    %112 = arith.subf %97, %111 : vector<2x8x128xf32>
    %cst_45 = arith.constant 9.99999974E-6 : f32
    %113 = vector.broadcast %cst_45 : f32 to vector<2x8x1xf32>
    %114 = arith.addf %110, %113 : vector<2x8x1xf32>
    %115 = math.rsqrt %114 : vector<2x8x1xf32>
    %116 = vector.broadcast %115 : vector<2x8x1xf32> to vector<2x8x128xf32>
    %117 = arith.mulf %112, %116 : vector<2x8x128xf32>
    %118 = vector.shape_cast %98 : vector<1x128xf32> to vector<1x1x128xf32>
    %119 = vector.broadcast %118 : vector<1x1x128xf32> to vector<2x8x128xf32>
    %120 = arith.mulf %117, %119 : vector<2x8x128xf32>
    %121 = vector.shape_cast %99 : vector<1x128xf32> to vector<1x1x128xf32>
    %122 = vector.broadcast %121 : vector<1x1x128xf32> to vector<2x8x128xf32>
    %123 = arith.addf %120, %122 : vector<2x8x128xf32>
    %124 = vector.shape_cast %123 : vector<2x8x128xf32> to vector<16x128xf32>
    %c0_46 = arith.constant 0 : index
    %c0_47 = arith.constant 0 : index
    %c0_48 = arith.constant 0 : index
    %125 = vector.load %arg8[%c0_46, %c0_47, %c0_48] : memref<1x128x128xf32, #tpu.memory_space<vmem>>, vector<1x128x128xf32>
    %126 = vector.shape_cast %125 : vector<1x128x128xf32> to vector<128x128xf32>
    %127 = vector.extract_strided_slice %5 {offsets = [4, 0], sizes = [1, 128], strides = [1, 1]} : vector<15x128xf32> to vector<1x128xf32>
    %c0_49 = arith.constant 0 : index
    %c0_50 = arith.constant 0 : index
    %c0_51 = arith.constant 0 : index
    %128 = vector.load %arg9[%c0_49, %c0_50, %c0_51] : memref<1x128x128xf32, #tpu.memory_space<vmem>>, vector<1x128x128xf32>
    %129 = vector.shape_cast %128 : vector<1x128x128xf32> to vector<128x128xf32>
    %130 = vector.extract_strided_slice %5 {offsets = [5, 0], sizes = [1, 128], strides = [1, 1]} : vector<15x128xf32> to vector<1x128xf32>
    %c0_52 = arith.constant 0 : index
    %c0_53 = arith.constant 0 : index
    %c0_54 = arith.constant 0 : index
    %131 = vector.load %arg10[%c0_52, %c0_53, %c0_54] : memref<1x128x128xf32, #tpu.memory_space<vmem>>, vector<1x128x128xf32>
    %132 = vector.shape_cast %131 : vector<1x128x128xf32> to vector<128x128xf32>
    %133 = vector.extract_strided_slice %5 {offsets = [6, 0], sizes = [1, 128], strides = [1, 1]} : vector<15x128xf32> to vector<1x128xf32>
    %c0_55 = arith.constant 0 : index
    %c0_56 = arith.constant 0 : index
    %c0_57 = arith.constant 0 : index
    %134 = vector.load %arg11[%c0_55, %c0_56, %c0_57] : memref<1x128x128xf32, #tpu.memory_space<vmem>>, vector<1x128x128xf32>
    %135 = vector.shape_cast %134 : vector<1x128x128xf32> to vector<128x128xf32>
    %136 = vector.extract_strided_slice %5 {offsets = [7, 0], sizes = [1, 128], strides = [1, 1]} : vector<15x128xf32> to vector<1x128xf32>
    %cst_58 = arith.constant dense<0.000000e+00> : vector<16x128xf32>
    %137 = tpu.matmul %124, %126, %cst_58 {dimension_numbers = #tpu.dot_dimension_numbers<[1], [0], [0], [1], [0, 0, 1, 1], [], []>} : vector<16x128xf32>, vector<128x128xf32>, vector<16x128xf32> -> vector<16x128xf32>
    %138 = vector.broadcast %127 : vector<1x128xf32> to vector<16x128xf32>
    %139 = arith.addf %137, %138 : vector<16x128xf32>
    %cst_59 = arith.constant 0.176776692 : f32
    %140 = vector.broadcast %cst_59 : f32 to vector<16x128xf32>
    %141 = arith.mulf %139, %140 : vector<16x128xf32>
    %cst_60 = arith.constant dense<0.000000e+00> : vector<32x128xf32>
    %142 = tpu.matmul %7, %129, %cst_60 {dimension_numbers = #tpu.dot_dimension_numbers<[1], [0], [0], [1], [0, 0, 1, 1], [], []>} : vector<32x128xf32>, vector<128x128xf32>, vector<32x128xf32> -> vector<32x128xf32>
    %143 = vector.broadcast %130 : vector<1x128xf32> to vector<32x128xf32>
    %144 = arith.addf %142, %143 : vector<32x128xf32>
    %cst_61 = arith.constant dense<0.000000e+00> : vector<32x128xf32>
    %145 = tpu.matmul %7, %132, %cst_61 {dimension_numbers = #tpu.dot_dimension_numbers<[1], [0], [0], [1], [0, 0, 1, 1], [], []>} : vector<32x128xf32>, vector<128x128xf32>, vector<32x128xf32> -> vector<32x128xf32>
    %146 = vector.broadcast %133 : vector<1x128xf32> to vector<32x128xf32>
    %147 = arith.addf %145, %146 : vector<32x128xf32>
    %148 = vector.shape_cast %141 : vector<16x128xf32> to vector<2x8x128xf32>
    %149 = vector.shape_cast %144 : vector<32x128xf32> to vector<2x16x128xf32>
    %150 = vector.shape_cast %147 : vector<32x128xf32> to vector<2x16x128xf32>
    %151 = vector.extract_strided_slice %148 {offsets = [0, 0, 0], sizes = [2, 8, 32], strides = [1, 1, 1]} : vector<2x8x128xf32> to vector<2x8x32xf32>
    %152 = vector.extract_strided_slice %149 {offsets = [0, 0, 0], sizes = [2, 16, 32], strides = [1, 1, 1]} : vector<2x16x128xf32> to vector<2x16x32xf32>
    "tpu.trace_start"() <{level = 10 : i32, message = "bqd,bkd->bqk"}> : () -> ()
    %cst_62 = arith.constant dense<0.000000e+00> : vector<2x8x16xf32>
    %153 = tpu.matmul %151, %152, %cst_62 {dimension_numbers = #tpu.dot_dimension_numbers<[2], [2], [1], [1], [0, 0, 0, 1, 1, 1], [0], [0]>} : vector<2x8x32xf32>, vector<2x16x32xf32>, vector<2x8x16xf32> -> vector<2x8x16xf32>
    "tpu.trace_stop"() : () -> ()
    %cst_63 = arith.constant dense<0xFF800000> : vector<2x8xf32>
    %154 = vector.multi_reduction <maximumf>, %153, %cst_63 [2] : vector<2x8x16xf32> to vector<2x8xf32>
    %155 = vector.shape_cast %154 : vector<2x8xf32> to vector<2x8x1xf32>
    %156 = vector.broadcast %155 : vector<2x8x1xf32> to vector<2x8x16xf32>
    %157 = arith.subf %153, %156 : vector<2x8x16xf32>
    %158 = math.exp %157 : vector<2x8x16xf32>
    %cst_64 = arith.constant dense<0.000000e+00> : vector<2x8xf32>
    %159 = vector.multi_reduction <add>, %158, %cst_64 [2] : vector<2x8x16xf32> to vector<2x8xf32>
    %160 = vector.shape_cast %159 : vector<2x8xf32> to vector<2x8x1xf32>
    %161 = vector.broadcast %160 : vector<2x8x1xf32> to vector<2x8x16xf32>
    %162 = arith.divf %158, %161 : vector<2x8x16xf32>
    %163 = vector.extract_strided_slice %150 {offsets = [0, 0, 0], sizes = [2, 16, 32], strides = [1, 1, 1]} : vector<2x16x128xf32> to vector<2x16x32xf32>
    "tpu.trace_start"() <{level = 10 : i32, message = "bqk,bkd->bqd"}> : () -> ()
    %cst_65 = arith.constant dense<0.000000e+00> : vector<2x8x32xf32>
    %164 = tpu.matmul %162, %163, %cst_65 {dimension_numbers = #tpu.dot_dimension_numbers<[2], [1], [1], [2], [0, 0, 0, 1, 1, 2], [0], [0]>} : vector<2x8x16xf32>, vector<2x16x32xf32>, vector<2x8x32xf32> -> vector<2x8x32xf32>
    "tpu.trace_stop"() : () -> ()
    %165 = vector.extract_strided_slice %148 {offsets = [0, 0, 32], sizes = [2, 8, 32], strides = [1, 1, 1]} : vector<2x8x128xf32> to vector<2x8x32xf32>
    %166 = vector.extract_strided_slice %149 {offsets = [0, 0, 32], sizes = [2, 16, 32], strides = [1, 1, 1]} : vector<2x16x128xf32> to vector<2x16x32xf32>
    "tpu.trace_start"() <{level = 10 : i32, message = "bqd,bkd->bqk"}> : () -> ()
    %cst_66 = arith.constant dense<0.000000e+00> : vector<2x8x16xf32>
    %167 = tpu.matmul %165, %166, %cst_66 {dimension_numbers = #tpu.dot_dimension_numbers<[2], [2], [1], [1], [0, 0, 0, 1, 1, 1], [0], [0]>} : vector<2x8x32xf32>, vector<2x16x32xf32>, vector<2x8x16xf32> -> vector<2x8x16xf32>
    "tpu.trace_stop"() : () -> ()
    %cst_67 = arith.constant dense<0xFF800000> : vector<2x8xf32>
    %168 = vector.multi_reduction <maximumf>, %167, %cst_67 [2] : vector<2x8x16xf32> to vector<2x8xf32>
    %169 = vector.shape_cast %168 : vector<2x8xf32> to vector<2x8x1xf32>
    %170 = vector.broadcast %169 : vector<2x8x1xf32> to vector<2x8x16xf32>
    %171 = arith.subf %167, %170 : vector<2x8x16xf32>
    %172 = math.exp %171 : vector<2x8x16xf32>
    %cst_68 = arith.constant dense<0.000000e+00> : vector<2x8xf32>
    %173 = vector.multi_reduction <add>, %172, %cst_68 [2] : vector<2x8x16xf32> to vector<2x8xf32>
    %174 = vector.shape_cast %173 : vector<2x8xf32> to vector<2x8x1xf32>
    %175 = vector.broadcast %174 : vector<2x8x1xf32> to vector<2x8x16xf32>
    %176 = arith.divf %172, %175 : vector<2x8x16xf32>
    %177 = vector.extract_strided_slice %150 {offsets = [0, 0, 32], sizes = [2, 16, 32], strides = [1, 1, 1]} : vector<2x16x128xf32> to vector<2x16x32xf32>
    "tpu.trace_start"() <{level = 10 : i32, message = "bqk,bkd->bqd"}> : () -> ()
    %cst_69 = arith.constant dense<0.000000e+00> : vector<2x8x32xf32>
    %178 = tpu.matmul %176, %177, %cst_69 {dimension_numbers = #tpu.dot_dimension_numbers<[2], [1], [1], [2], [0, 0, 0, 1, 1, 2], [0], [0]>} : vector<2x8x16xf32>, vector<2x16x32xf32>, vector<2x8x32xf32> -> vector<2x8x32xf32>
    "tpu.trace_stop"() : () -> ()
    %179 = vector.extract_strided_slice %148 {offsets = [0, 0, 64], sizes = [2, 8, 32], strides = [1, 1, 1]} : vector<2x8x128xf32> to vector<2x8x32xf32>
    %180 = vector.extract_strided_slice %149 {offsets = [0, 0, 64], sizes = [2, 16, 32], strides = [1, 1, 1]} : vector<2x16x128xf32> to vector<2x16x32xf32>
    "tpu.trace_start"() <{level = 10 : i32, message = "bqd,bkd->bqk"}> : () -> ()
    %cst_70 = arith.constant dense<0.000000e+00> : vector<2x8x16xf32>
    %181 = tpu.matmul %179, %180, %cst_70 {dimension_numbers = #tpu.dot_dimension_numbers<[2], [2], [1], [1], [0, 0, 0, 1, 1, 1], [0], [0]>} : vector<2x8x32xf32>, vector<2x16x32xf32>, vector<2x8x16xf32> -> vector<2x8x16xf32>
    "tpu.trace_stop"() : () -> ()
    %cst_71 = arith.constant dense<0xFF800000> : vector<2x8xf32>
    %182 = vector.multi_reduction <maximumf>, %181, %cst_71 [2] : vector<2x8x16xf32> to vector<2x8xf32>
    %183 = vector.shape_cast %182 : vector<2x8xf32> to vector<2x8x1xf32>
    %184 = vector.broadcast %183 : vector<2x8x1xf32> to vector<2x8x16xf32>
    %185 = arith.subf %181, %184 : vector<2x8x16xf32>
    %186 = math.exp %185 : vector<2x8x16xf32>
    %cst_72 = arith.constant dense<0.000000e+00> : vector<2x8xf32>
    %187 = vector.multi_reduction <add>, %186, %cst_72 [2] : vector<2x8x16xf32> to vector<2x8xf32>
    %188 = vector.shape_cast %187 : vector<2x8xf32> to vector<2x8x1xf32>
    %189 = vector.broadcast %188 : vector<2x8x1xf32> to vector<2x8x16xf32>
    %190 = arith.divf %186, %189 : vector<2x8x16xf32>
    %191 = vector.extract_strided_slice %150 {offsets = [0, 0, 64], sizes = [2, 16, 32], strides = [1, 1, 1]} : vector<2x16x128xf32> to vector<2x16x32xf32>
    "tpu.trace_start"() <{level = 10 : i32, message = "bqk,bkd->bqd"}> : () -> ()
    %cst_73 = arith.constant dense<0.000000e+00> : vector<2x8x32xf32>
    %192 = tpu.matmul %190, %191, %cst_73 {dimension_numbers = #tpu.dot_dimension_numbers<[2], [1], [1], [2], [0, 0, 0, 1, 1, 2], [0], [0]>} : vector<2x8x16xf32>, vector<2x16x32xf32>, vector<2x8x32xf32> -> vector<2x8x32xf32>
    "tpu.trace_stop"() : () -> ()
    %193 = vector.extract_strided_slice %148 {offsets = [0, 0, 96], sizes = [2, 8, 32], strides = [1, 1, 1]} : vector<2x8x128xf32> to vector<2x8x32xf32>
    %194 = vector.extract_strided_slice %149 {offsets = [0, 0, 96], sizes = [2, 16, 32], strides = [1, 1, 1]} : vector<2x16x128xf32> to vector<2x16x32xf32>
    "tpu.trace_start"() <{level = 10 : i32, message = "bqd,bkd->bqk"}> : () -> ()
    %cst_74 = arith.constant dense<0.000000e+00> : vector<2x8x16xf32>
    %195 = tpu.matmul %193, %194, %cst_74 {dimension_numbers = #tpu.dot_dimension_numbers<[2], [2], [1], [1], [0, 0, 0, 1, 1, 1], [0], [0]>} : vector<2x8x32xf32>, vector<2x16x32xf32>, vector<2x8x16xf32> -> vector<2x8x16xf32>
    "tpu.trace_stop"() : () -> ()
    %cst_75 = arith.constant dense<0xFF800000> : vector<2x8xf32>
    %196 = vector.multi_reduction <maximumf>, %195, %cst_75 [2] : vector<2x8x16xf32> to vector<2x8xf32>
    %197 = vector.shape_cast %196 : vector<2x8xf32> to vector<2x8x1xf32>
    %198 = vector.broadcast %197 : vector<2x8x1xf32> to vector<2x8x16xf32>
    %199 = arith.subf %195, %198 : vector<2x8x16xf32>
    %200 = math.exp %199 : vector<2x8x16xf32>
    %cst_76 = arith.constant dense<0.000000e+00> : vector<2x8xf32>
    %201 = vector.multi_reduction <add>, %200, %cst_76 [2] : vector<2x8x16xf32> to vector<2x8xf32>
    %202 = vector.shape_cast %201 : vector<2x8xf32> to vector<2x8x1xf32>
    %203 = vector.broadcast %202 : vector<2x8x1xf32> to vector<2x8x16xf32>
    %204 = arith.divf %200, %203 : vector<2x8x16xf32>
    %205 = vector.extract_strided_slice %150 {offsets = [0, 0, 96], sizes = [2, 16, 32], strides = [1, 1, 1]} : vector<2x16x128xf32> to vector<2x16x32xf32>
    "tpu.trace_start"() <{level = 10 : i32, message = "bqk,bkd->bqd"}> : () -> ()
    %cst_77 = arith.constant dense<0.000000e+00> : vector<2x8x32xf32>
    %206 = tpu.matmul %204, %205, %cst_77 {dimension_numbers = #tpu.dot_dimension_numbers<[2], [1], [1], [2], [0, 0, 0, 1, 1, 2], [0], [0]>} : vector<2x8x16xf32>, vector<2x16x32xf32>, vector<2x8x32xf32> -> vector<2x8x32xf32>
    "tpu.trace_stop"() : () -> ()
    %207 = tpu.concatenate %164, %178, %192, %206 in 2 : vector<2x8x32xf32>, vector<2x8x32xf32>, vector<2x8x32xf32>, vector<2x8x32xf32> -> vector<2x8x128xf32>
    %208 = vector.shape_cast %207 : vector<2x8x128xf32> to vector<16x128xf32>
    %cst_78 = arith.constant dense<0.000000e+00> : vector<16x128xf32>
    %209 = tpu.matmul %208, %135, %cst_78 {dimension_numbers = #tpu.dot_dimension_numbers<[1], [0], [0], [1], [0, 0, 1, 1], [], []>} : vector<16x128xf32>, vector<128x128xf32>, vector<16x128xf32> -> vector<16x128xf32>
    %210 = vector.broadcast %136 : vector<1x128xf32> to vector<16x128xf32>
    %211 = arith.addf %209, %210 : vector<16x128xf32>
    %212 = vector.shape_cast %211 : vector<16x128xf32> to vector<2x8x128xf32>
    %213 = arith.addf %123, %212 : vector<2x8x128xf32>
    %214 = vector.extract_strided_slice %5 {offsets = [11, 0], sizes = [1, 128], strides = [1, 1]} : vector<15x128xf32> to vector<1x128xf32>
    %215 = vector.extract_strided_slice %5 {offsets = [12, 0], sizes = [1, 128], strides = [1, 1]} : vector<15x128xf32> to vector<1x128xf32>
    %cst_79 = arith.constant dense<0.000000e+00> : vector<2x8xf32>
    %216 = vector.multi_reduction <add>, %213, %cst_79 [2] : vector<2x8x128xf32> to vector<2x8xf32>
    %217 = vector.shape_cast %216 : vector<2x8xf32> to vector<2x8x1xf32>
    %cst_80 = arith.constant 1.280000e+02 : f32
    %218 = vector.broadcast %cst_80 : f32 to vector<2x8x1xf32>
    %219 = arith.divf %217, %218 : vector<2x8x1xf32>
    %220 = vector.broadcast %219 : vector<2x8x1xf32> to vector<2x8x128xf32>
    %221 = arith.subf %213, %220 : vector<2x8x128xf32>
    %222 = arith.mulf %221, %221 : vector<2x8x128xf32>
    %cst_81 = arith.constant dense<0.000000e+00> : vector<2x8xf32>
    %223 = vector.multi_reduction <add>, %222, %cst_81 [2] : vector<2x8x128xf32> to vector<2x8xf32>
    %224 = vector.shape_cast %223 : vector<2x8xf32> to vector<2x8x1xf32>
    %cst_82 = arith.constant 1.280000e+02 : f32
    %225 = vector.broadcast %cst_82 : f32 to vector<2x8x1xf32>
    %226 = arith.divf %224, %225 : vector<2x8x1xf32>
    %227 = vector.broadcast %219 : vector<2x8x1xf32> to vector<2x8x128xf32>
    %228 = arith.subf %213, %227 : vector<2x8x128xf32>
    %cst_83 = arith.constant 9.99999974E-6 : f32
    %229 = vector.broadcast %cst_83 : f32 to vector<2x8x1xf32>
    %230 = arith.addf %226, %229 : vector<2x8x1xf32>
    %231 = math.rsqrt %230 : vector<2x8x1xf32>
    %232 = vector.broadcast %231 : vector<2x8x1xf32> to vector<2x8x128xf32>
    %233 = arith.mulf %228, %232 : vector<2x8x128xf32>
    %234 = vector.shape_cast %214 : vector<1x128xf32> to vector<1x1x128xf32>
    %235 = vector.broadcast %234 : vector<1x1x128xf32> to vector<2x8x128xf32>
    %236 = arith.mulf %233, %235 : vector<2x8x128xf32>
    %237 = vector.shape_cast %215 : vector<1x128xf32> to vector<1x1x128xf32>
    %238 = vector.broadcast %237 : vector<1x1x128xf32> to vector<2x8x128xf32>
    %239 = arith.addf %236, %238 : vector<2x8x128xf32>
    %240 = vector.shape_cast %239 : vector<2x8x128xf32> to vector<16x128xf32>
    %c0_84 = arith.constant 0 : index
    %c0_85 = arith.constant 0 : index
    %c0_86 = arith.constant 0 : index
    %241 = vector.load %arg12[%c0_84, %c0_85, %c0_86] : memref<1x128x256xf32, #tpu.memory_space<vmem>>, vector<1x128x256xf32>
    %242 = vector.shape_cast %241 : vector<1x128x256xf32> to vector<128x256xf32>
    %cst_87 = arith.constant dense<0.000000e+00> : vector<16x256xf32>
    %243 = tpu.matmul %240, %242, %cst_87 {dimension_numbers = #tpu.dot_dimension_numbers<[1], [0], [0], [1], [0, 0, 1, 1], [], []>} : vector<16x128xf32>, vector<128x256xf32>, vector<16x256xf32> -> vector<16x256xf32>
    %c0_88 = arith.constant 0 : index
    %c0_89 = arith.constant 0 : index
    %c0_90 = arith.constant 0 : index
    %244 = vector.load %arg15[%c0_88, %c0_89, %c0_90] : memref<1x1x256xf32, #tpu.memory_space<vmem>>, vector<1x1x256xf32>
    %245 = vector.shape_cast %244 : vector<1x1x256xf32> to vector<1x256xf32>
    %246 = vector.broadcast %245 : vector<1x256xf32> to vector<16x256xf32>
    %247 = arith.addf %243, %246 : vector<16x256xf32>
    %cst_91 = arith.constant 0.000000e+00 : f32
    %248 = vector.broadcast %cst_91 : f32 to vector<16x256xf32>
    %249 = arith.maximumf %247, %248 : vector<16x256xf32>
    %c0_92 = arith.constant 0 : index
    %c0_93 = arith.constant 0 : index
    %c0_94 = arith.constant 0 : index
    %250 = vector.load %arg13[%c0_92, %c0_93, %c0_94] : memref<1x256x128xf32, #tpu.memory_space<vmem>>, vector<1x256x128xf32>
    %251 = vector.shape_cast %250 : vector<1x256x128xf32> to vector<256x128xf32>
    %cst_95 = arith.constant dense<0.000000e+00> : vector<16x128xf32>
    %252 = tpu.matmul %249, %251, %cst_95 {dimension_numbers = #tpu.dot_dimension_numbers<[1], [0], [0], [1], [0, 0, 1, 1], [], []>} : vector<16x256xf32>, vector<256x128xf32>, vector<16x128xf32> -> vector<16x128xf32>
    %253 = vector.extract_strided_slice %5 {offsets = [8, 0], sizes = [1, 128], strides = [1, 1]} : vector<15x128xf32> to vector<1x128xf32>
    %254 = vector.broadcast %253 : vector<1x128xf32> to vector<16x128xf32>
    %255 = arith.addf %252, %254 : vector<16x128xf32>
    %256 = vector.shape_cast %255 : vector<16x128xf32> to vector<2x8x128xf32>
    %257 = arith.addf %239, %256 : vector<2x8x128xf32>
    %258 = vector.extract_strided_slice %5 {offsets = [13, 0], sizes = [1, 128], strides = [1, 1]} : vector<15x128xf32> to vector<1x128xf32>
    %259 = vector.extract_strided_slice %5 {offsets = [14, 0], sizes = [1, 128], strides = [1, 1]} : vector<15x128xf32> to vector<1x128xf32>
    %cst_96 = arith.constant dense<0.000000e+00> : vector<2x8xf32>
    %260 = vector.multi_reduction <add>, %257, %cst_96 [2] : vector<2x8x128xf32> to vector<2x8xf32>
    %261 = vector.shape_cast %260 : vector<2x8xf32> to vector<2x8x1xf32>
    %cst_97 = arith.constant 1.280000e+02 : f32
    %262 = vector.broadcast %cst_97 : f32 to vector<2x8x1xf32>
    %263 = arith.divf %261, %262 : vector<2x8x1xf32>
    %264 = vector.broadcast %263 : vector<2x8x1xf32> to vector<2x8x128xf32>
    %265 = arith.subf %257, %264 : vector<2x8x128xf32>
    %266 = arith.mulf %265, %265 : vector<2x8x128xf32>
    %cst_98 = arith.constant dense<0.000000e+00> : vector<2x8xf32>
    %267 = vector.multi_reduction <add>, %266, %cst_98 [2] : vector<2x8x128xf32> to vector<2x8xf32>
    %268 = vector.shape_cast %267 : vector<2x8xf32> to vector<2x8x1xf32>
    %cst_99 = arith.constant 1.280000e+02 : f32
    %269 = vector.broadcast %cst_99 : f32 to vector<2x8x1xf32>
    %270 = arith.divf %268, %269 : vector<2x8x1xf32>
    %271 = vector.broadcast %263 : vector<2x8x1xf32> to vector<2x8x128xf32>
    %272 = arith.subf %257, %271 : vector<2x8x128xf32>
    %cst_100 = arith.constant 9.99999974E-6 : f32
    %273 = vector.broadcast %cst_100 : f32 to vector<2x8x1xf32>
    %274 = arith.addf %270, %273 : vector<2x8x1xf32>
    %275 = math.rsqrt %274 : vector<2x8x1xf32>
    %276 = vector.broadcast %275 : vector<2x8x1xf32> to vector<2x8x128xf32>
    %277 = arith.mulf %272, %276 : vector<2x8x128xf32>
    %278 = vector.shape_cast %258 : vector<1x128xf32> to vector<1x1x128xf32>
    %279 = vector.broadcast %278 : vector<1x1x128xf32> to vector<2x8x128xf32>
    %280 = arith.mulf %277, %279 : vector<2x8x128xf32>
    %281 = vector.shape_cast %259 : vector<1x128xf32> to vector<1x1x128xf32>
    %282 = vector.broadcast %281 : vector<1x1x128xf32> to vector<2x8x128xf32>
    %283 = arith.addf %280, %282 : vector<2x8x128xf32>
    %c0_101 = arith.constant 0 : index
    %c0_102 = arith.constant 0 : index
    %c0_103 = arith.constant 0 : index
    %284 = vector.load %arg16[%c0_101, %c0_102, %c0_103] : memref<2x8x128xf32, #tpu.memory_space<vmem>>, vector<2x8x128xf32>
    tpu.vector_store %arg16[%c0_101, %c0_102, %c0_103], %283 {strides = array<i32>} : memref<2x8x128xf32, #tpu.memory_space<vmem>>, vector<2x8x128xf32>,
    return
  }
  func.func @transform_0(%arg0: i32, %arg1: i32) -> (i32, i32, i32) {
    %c0_i32 = arith.constant 0 : i32
    %c0_i32_0 = arith.constant 0 : i32
    %c0_i32_1 = arith.constant 0 : i32
    return %arg0, %c0_i32, %c0_i32_0 : i32, i32, i32
  }
  func.func @transform_1(%arg0: i32, %arg1: i32) -> (i32, i32, i32) {
    %c0_i32 = arith.constant 0 : i32
    %c0_i32_0 = arith.constant 0 : i32
    %c0_i32_1 = arith.constant 0 : i32
    return %arg0, %c0_i32, %c0_i32_0 : i32, i32, i32
  }
  func.func @transform_2(%arg0: i32, %arg1: i32) -> (i32, i32, i32) {
    %c0_i32 = arith.constant 0 : i32
    %c0_i32_0 = arith.constant 0 : i32
    %c0_i32_1 = arith.constant 0 : i32
    return %arg1, %c0_i32, %c0_i32_0 : i32, i32, i32
  }
  func.func @transform_3(%arg0: i32, %arg1: i32) -> (i32, i32, i32) {
    %c0_i32 = arith.constant 0 : i32
    %c0_i32_0 = arith.constant 0 : i32
    %c0_i32_1 = arith.constant 0 : i32
    return %arg1, %c0_i32, %c0_i32_0 : i32, i32, i32
  }
  func.func @transform_4(%arg0: i32, %arg1: i32) -> (i32, i32, i32) {
    %c0_i32 = arith.constant 0 : i32
    %c0_i32_0 = arith.constant 0 : i32
    %c0_i32_1 = arith.constant 0 : i32
    return %arg1, %c0_i32, %c0_i32_0 : i32, i32, i32
  }
  func.func @transform_5(%arg0: i32, %arg1: i32) -> (i32, i32, i32) {
    %c0_i32 = arith.constant 0 : i32
    %c0_i32_0 = arith.constant 0 : i32
    %c0_i32_1 = arith.constant 0 : i32
    return %arg1, %c0_i32, %c0_i32_0 : i32, i32, i32
  }
  func.func @transform_6(%arg0: i32, %arg1: i32) -> (i32, i32, i32) {
    %c0_i32 = arith.constant 0 : i32
    %c0_i32_0 = arith.constant 0 : i32
    %c0_i32_1 = arith.constant 0 : i32
    return %arg1, %c0_i32, %c0_i32_0 : i32, i32, i32
  }
  func.func @transform_7(%arg0: i32, %arg1: i32) -> (i32, i32, i32) {
    %c0_i32 = arith.constant 0 : i32
    %c0_i32_0 = arith.constant 0 : i32
    %c0_i32_1 = arith.constant 0 : i32
    return %arg1, %c0_i32, %c0_i32_0 : i32, i32, i32
  }
  func.func @transform_8(%arg0: i32, %arg1: i32) -> (i32, i32, i32) {
    %c0_i32 = arith.constant 0 : i32
    %c0_i32_0 = arith.constant 0 : i32
    %c0_i32_1 = arith.constant 0 : i32
    return %arg1, %c0_i32, %c0_i32_0 : i32, i32, i32
  }
  func.func @transform_9(%arg0: i32, %arg1: i32) -> (i32, i32, i32) {
    %c0_i32 = arith.constant 0 : i32
    %c0_i32_0 = arith.constant 0 : i32
    %c0_i32_1 = arith.constant 0 : i32
    return %arg1, %c0_i32, %c0_i32_0 : i32, i32, i32
  }
  func.func @transform_10(%arg0: i32, %arg1: i32) -> (i32, i32, i32) {
    %c0_i32 = arith.constant 0 : i32
    %c0_i32_0 = arith.constant 0 : i32
    %c0_i32_1 = arith.constant 0 : i32
    return %arg1, %c0_i32, %c0_i32_0 : i32, i32, i32
  }
  func.func @transform_11(%arg0: i32, %arg1: i32) -> (i32, i32, i32) {
    %c0_i32 = arith.constant 0 : i32
    %c0_i32_0 = arith.constant 0 : i32
    %c0_i32_1 = arith.constant 0 : i32
    return %arg1, %c0_i32, %c0_i32_0 : i32, i32, i32
  }
  func.func @transform_12(%arg0: i32, %arg1: i32) -> (i32, i32, i32) {
    %c0_i32 = arith.constant 0 : i32
    %c0_i32_0 = arith.constant 0 : i32
    %c0_i32_1 = arith.constant 0 : i32
    return %arg1, %c0_i32, %c0_i32_0 : i32, i32, i32
  }
  func.func @transform_13(%arg0: i32, %arg1: i32) -> (i32, i32, i32) {
    %c0_i32 = arith.constant 0 : i32
    %c0_i32_0 = arith.constant 0 : i32
    %c0_i32_1 = arith.constant 0 : i32
    return %arg1, %c0_i32, %c0_i32_0 : i32, i32, i32
  }
  func.func @transform_14(%arg0: i32, %arg1: i32) -> (i32, i32, i32) {
    %c0_i32 = arith.constant 0 : i32
    %c0_i32_0 = arith.constant 0 : i32
    %c0_i32_1 = arith.constant 0 : i32
    return %arg0, %c0_i32, %c0_i32_0 : i32, i32, i32
  }
}

</mosaic_0001>

<llo_original>
// kernel: tpu_custom_call.1
$region0: #{tpu_custom_call.1}
  #allocation0 [shape = 'u32[]', space=smem, size = 0x4, offset = 0x4, fixed_abs, tag = 'smem constant byte address 0x4 - core index']
  #allocation1 [shape = 'u32[144,128]{1,0:T(1,128)}', space=vmem, size = 0x12000, scoped, tag = 'internal scratch']
  %s0 = inlined_call_operand.vmem [shape: f32[2,8,128], index: 0, kind: input, shape index: {}]
  %s1 = inlined_call_operand.vmem [shape: f32[2,16,128], index: 1, kind: input, shape index: {}]
  %s2 = inlined_call_operand.hbm [shape: f32[2,128,128], index: 2, kind: input, shape index: {}]
  %s3 = inlined_call_operand.hbm [shape: f32[2,128,128], index: 3, kind: input, shape index: {}]
  %s4 = inlined_call_operand.hbm [shape: f32[2,128,128], index: 4, kind: input, shape index: {}]
  %s5 = inlined_call_operand.hbm [shape: f32[2,128,128], index: 5, kind: input, shape index: {}]
  %s6 = inlined_call_operand.hbm [shape: f32[2,128,128], index: 6, kind: input, shape index: {}]
  %s7 = inlined_call_operand.hbm [shape: f32[2,128,128], index: 7, kind: input, shape index: {}]
  %s8 = inlined_call_operand.hbm [shape: f32[2,128,128], index: 8, kind: input, shape index: {}]
  %s9 = inlined_call_operand.hbm [shape: f32[2,128,128], index: 9, kind: input, shape index: {}]
  %s10 = inlined_call_operand.hbm [shape: f32[2,128,256], index: 10, kind: input, shape index: {}]
  %s11 = inlined_call_operand.hbm [shape: f32[2,256,128], index: 11, kind: input, shape index: {}]
  %s12 = inlined_call_operand.vmem [shape: f32[2,15,128], index: 12, kind: input, shape index: {}]
  %s13 = inlined_call_operand.vmem [shape: f32[2,1,256], index: 13, kind: input, shape index: {}]
  %s14 = inlined_call_operand.hbm [shape: f32[2,8,128], index: 14, kind: output, shape index: {}]
  %s15 = sld [smem:[#allocation0]]
  $region133: #{tpu_custom_call.1} parent=0
    _
  %s17 = ssub.s32 1, %s15
  %s18 = scalar_select 0, %s17, %s15
  $region1: #{tpu_custom_call.1} parent=0
    #allocation2 [shape = 'u8[131072]{0}', space=vmem, size = 0x20000, scoped, tag = 'input window, operand 2']
    #allocation3 [shape = 's32[2]{0}', space=sflag, size = 0x8, scoped, tag = 'scoped memory for tpu_custom_call.1']
    #allocation4 [shape = 's32[2]{0}', space=sflag, size = 0x8, scoped, tag = 'scoped memory for tpu_custom_call.1']
    #allocation5 [shape = 'u8[131072]{0}', space=vmem, size = 0x20000, scoped, tag = 'input window, operand 3']
    #allocation6 [shape = 's32[2]{0}', space=sflag, size = 0x8, scoped, tag = 'scoped memory for tpu_custom_call.1']
    #allocation7 [shape = 'u8[131072]{0}', space=vmem, size = 0x20000, scoped, tag = 'input window, operand 4']
    #allocation8 [shape = 'u8[131072]{0}', space=vmem, size = 0x20000, scoped, tag = 'input window, operand 5']
    #allocation9 [shape = 's32[2]{0}', space=sflag, size = 0x8, scoped, tag = 'scoped memory for tpu_custom_call.1']
    #allocation10 [shape = 'u8[131072]{0}', space=vmem, size = 0x20000, scoped, tag = 'input window, operand 6']
    #allocation11 [shape = 'u8[131072]{0}', space=vmem, size = 0x20000, scoped, tag = 'input window, operand 7']
    #allocation12 [shape = 's32[2]{0}', space=sflag, size = 0x8, scoped, tag = 'scoped memory for tpu_custom_call.1']
    #allocation13 [shape = 'u8[131072]{0}', space=vmem, size = 0x20000, scoped, tag = 'input window, operand 8']
    #allocation14 [shape = 'u8[131072]{0}', space=vmem, size = 0x20000, scoped, tag = 'input window, operand 9']
    #allocation15 [shape = 's32[2]{0}', space=sflag, size = 0x8, scoped, tag = 'scoped memory for tpu_custom_call.1']
    #allocation16 [shape = 'u8[262144]{0}', space=vmem, size = 0x40000, scoped, tag = 'input window, operand 10']
    #allocation17 [shape = 'u8[262144]{0}', space=vmem, size = 0x40000, scoped, tag = 'input window, operand 11']
    #allocation18 [shape = 's32[2]{0}', space=sflag, size = 0x8, scoped, tag = 'scoped memory for tpu_custom_call.1']
    #allocation19 [shape = 'u8[8192]{0}', space=vmem, size = 0x2000, scoped, tag = 'output window, operand 0, single buffered']
    %19 = vsyncpa [#allocation3], 0
    %s20 = scalar_lea.sflag [#allocation3], 1
    %21 = vsyncpa %s20, 0
    %22 = vsyncpa [#allocation6], 0
    %s23 = scalar_lea.sflag [#allocation6], 1
    %24 = vsyncpa %s23, 0
    %25 = vsyncpa [#allocation9], 0
    %s26 = scalar_lea.sflag [#allocation9], 1
    %27 = vsyncpa %s26, 0
    %28 = vsyncpa [#allocation12], 0
    %s29 = scalar_lea.sflag [#allocation12], 1
    %30 = vsyncpa %s29, 0
    %31 = vsyncpa [#allocation15], 0
    %s32 = scalar_lea.sflag [#allocation15], 1
    %33 = vsyncpa %s32, 0
    %34 = vsyncpa [#allocation18], 0
    %s35 = scalar_lea.sflag [#allocation18], 1
    %36 = vsyncpa %s35, 0
    %37 = vsyncpa [#allocation4], 0
    loop: start=0, step=1, limit=4
    $region2: #{tpu_custom_call.1} parent=1 // loop_pre_header
      _
    $region3: #{tpu_custom_call.1} parent=1 // loop_header
      %s39 = sphi 0, %s43
      %p40 = scmp.ge.s32.totalorder %s39, 4
      %s46 = sphi 0, %s58
      %s47 = sphi 0, %s54
      %s48 = sphi 0, %s46
      %s49 = sphi 0, %s47
      %s50 = sphi 0, %s48
      %s51 = sphi 0, %s49
      %s61 = sphi 0, %s63
      %s64 = sphi 0, %s61
      %s65 = sphi 0, %s64
      %s81 = sphi 0, %s65
      %s87 = sphi 0, %s89
      %s90 = sphi 0, %s87
      %s91 = sphi 0, %s90
      %s107 = sphi 0, %s91
      %s113 = sphi 0, %s115
      %s116 = sphi 0, %s113
      %s117 = sphi 0, %s116
      %s133 = sphi 0, %s117
      %s139 = sphi 0, %s141
      %s142 = sphi 0, %s139
      %s143 = sphi 0, %s142
      %s159 = sphi 0, %s143
      %s165 = sphi 0, %s167
      %s168 = sphi 0, %s165
      %s169 = sphi 0, %s168
      %s185 = sphi 0, %s169
      %s191 = sphi 0, %s193
      %s194 = sphi 0, %s191
      %s195 = sphi 0, %s194
      %s211 = sphi 0, %s195
      %s217 = sphi 0, %s219
      %s220 = sphi 0, %s217
      %s221 = sphi 0, %s220
      %s237 = sphi 0, %s221
      %s243 = sphi 0, %s245
      %s246 = sphi 0, %s243
      %s247 = sphi 0, %s246
      %s263 = sphi 0, %s247
      %s269 = sphi 0, %s271
      %s272 = sphi 0, %s269
      %s273 = sphi 0, %s272
      %s289 = sphi 0, %s273
      %s295 = sphi 0, %s297
      %s298 = sphi 0, %s295
      %s299 = sphi 0, %s298
      %s315 = sphi 0, %s299
      %s321 = sphi 0, %s323
      %s324 = sphi 0, %s321
      %s325 = sphi 0, %s324
      %s341 = sphi 0, %s325
      %s347 = sphi 0, %s349
      %s350 = sphi 0, %s347
      %s351 = sphi 0, %s350
      %s367 = sphi 0, %s351
      %s373 = sphi 0, %s375
      %s376 = sphi 0, %s373
      %s377 = sphi 0, %s376
      %s393 = sphi 0, %s377
      %s399 = sphi 0, %s401
      %s402 = sphi 0, %s399
      %s403 = sphi 0, %s402
      %s419 = sphi 0, %s403
      %s425 = sphi 0, %s427
      %s428 = sphi 0, %s425
      %s429 = sphi 0, %s428
      %s445 = sphi 0, %s429
    $region4: #{tpu_custom_call.1} parent=1 // loop_header_branch
      %42 = sbr.rel (%p40) target = $region8
    $region5: #{tpu_custom_call.1} parent=1 // loop_body
      %s44 = ssub.s32 %s39, 1
      %s45 = ssub.s32 %s39, 2
      %s52 = sadd.s32 1, %s47
      %p53 = scmp.ge.s32.totalorder %s52, 2
      %s54 = scalar_select %p53, 0, %s52
      %s55 = sadd.s32 1, %s46
      %s56 = scalar_select %p53, %s55, %s46
      %p57 = scmp.ge.s32.totalorder %s56, 1
      %s58 = scalar_select %p57, 0, %s56
      %s59 = ssub.s32 %s46, %s58
      %p60 = scmp.eq.s32.totalorder %s59, 0
      %s62 = sadd.s32 %s61, 1
      %s63 = scalar_select %p60, %s61, %s62
      %p66 = pneg %p60
      %p67 = scmp.eq.s32.totalorder %s39, 1
      %p68 = por %p66, %p67
      %p69 = scmp.ne.s32.totalorder %s61, %s64
      %p70 = scmp.eq.s32.totalorder %s39, 0
      %p71 = por %p69, %p70
      %p72 = scmp.ne.s32.totalorder %s61, %s64
      %p73 = scmp.eq.s32.totalorder %s44, 1
      %p74 = por %p72, %p73
      %p75 = scmp.ne.s32.totalorder %s64, %s65
      %p76 = scmp.eq.s32.totalorder %s44, 0
      %p77 = por %p75, %p76
      %p78 = scmp.ne.s32.totalorder %s64, %s65
      %p79 = scmp.eq.s32.totalorder %s45, 1
      %p80 = por %p78, %p79
      %p82 = scmp.ne.s32.totalorder %s65, %s81
      %p83 = scmp.eq.s32.totalorder %s45, 0
      %p84 = por %p82, %p83
      %s85 = ssub.s32 %s46, %s58
      %p86 = scmp.eq.s32.totalorder %s85, 0
      %s88 = sadd.s32 %s87, 1
      %s89 = scalar_select %p86, %s87, %s88
      %p92 = pneg %p86
      %p93 = scmp.eq.s32.totalorder %s39, 1
      %p94 = por %p92, %p93
      %p95 = scmp.ne.s32.totalorder %s87, %s90
      %p96 = scmp.eq.s32.totalorder %s39, 0
      %p97 = por %p95, %p96
      %p98 = scmp.ne.s32.totalorder %s87, %s90
      %p99 = scmp.eq.s32.totalorder %s44, 1
      %p100 = por %p98, %p99
      %p101 = scmp.ne.s32.totalorder %s90, %s91
      %p102 = scmp.eq.s32.totalorder %s44, 0
      %p103 = por %p101, %p102
      %p104 = scmp.ne.s32.totalorder %s90, %s91
      %p105 = scmp.eq.s32.totalorder %s45, 1
      %p106 = por %p104, %p105
      %p108 = scmp.ne.s32.totalorder %s91, %s107
      %p109 = scmp.eq.s32.totalorder %s45, 0
      %p110 = por %p108, %p109
      %s111 = ssub.s32 %s47, %s54
      %p112 = scmp.eq.s32.totalorder %s111, 0
      %s114 = sadd.s32 %s113, 1
      %s115 = scalar_select %p112, %s113, %s114
      %p118 = pneg %p112
      %p119 = scmp.eq.s32.totalorder %s39, 1
      %p120 = por %p118, %p119
      %p121 = scmp.ne.s32.totalorder %s113, %s116
      %p122 = scmp.eq.s32.totalorder %s39, 0
      %p123 = por %p121, %p122
      %p124 = scmp.ne.s32.totalorder %s113, %s116
      %p125 = scmp.eq.s32.totalorder %s44, 1
      %p126 = por %p124, %p125
      %p127 = scmp.ne.s32.totalorder %s116, %s117
      %p128 = scmp.eq.s32.totalorder %s44, 0
      %p129 = por %p127, %p128
      %p130 = scmp.ne.s32.totalorder %s116, %s117
      %p131 = scmp.eq.s32.totalorder %s45, 1
      %p132 = por %p130, %p131
      %p134 = scmp.ne.s32.totalorder %s117, %s133
      %p135 = scmp.eq.s32.totalorder %s45, 0
      %p136 = por %p134, %p135
      %s137 = ssub.s32 %s47, %s54
      %p138 = scmp.eq.s32.totalorder %s137, 0
      %s140 = sadd.s32 %s139, 1
      %s141 = scalar_select %p138, %s139, %s140
      %p144 = pneg %p138
      %p145 = scmp.eq.s32.totalorder %s39, 1
      %p146 = por %p144, %p145
      %p147 = scmp.ne.s32.totalorder %s139, %s142
      %p148 = scmp.eq.s32.totalorder %s39, 0
      %p149 = por %p147, %p148
      %p150 = scmp.ne.s32.totalorder %s139, %s142
      %p151 = scmp.eq.s32.totalorder %s44, 1
      %p152 = por %p150, %p151
      %p153 = scmp.ne.s32.totalorder %s142, %s143
      %p154 = scmp.eq.s32.totalorder %s44, 0
      %p155 = por %p153, %p154
      %p156 = scmp.ne.s32.totalorder %s142, %s143
      %p157 = scmp.eq.s32.totalorder %s45, 1
      %p158 = por %p156, %p157
      %p160 = scmp.ne.s32.totalorder %s143, %s159
      %p161 = scmp.eq.s32.totalorder %s45, 0
      %p162 = por %p160, %p161
      %s163 = ssub.s32 %s47, %s54
      %p164 = scmp.eq.s32.totalorder %s163, 0
      %s166 = sadd.s32 %s165, 1
      %s167 = scalar_select %p164, %s165, %s166
      %p170 = pneg %p164
      %p171 = scmp.eq.s32.totalorder %s39, 1
      %p172 = por %p170, %p171
      %p173 = scmp.ne.s32.totalorder %s165, %s168
      %p174 = scmp.eq.s32.totalorder %s39, 0
      %p175 = por %p173, %p174
      %p176 = scmp.ne.s32.totalorder %s165, %s168
      %p177 = scmp.eq.s32.totalorder %s44, 1
      %p178 = por %p176, %p177
      %p179 = scmp.ne.s32.totalorder %s168, %s169
      %p180 = scmp.eq.s32.totalorder %s44, 0
      %p181 = por %p179, %p180
      %p182 = scmp.ne.s32.totalorder %s168, %s169
      %p183 = scmp.eq.s32.totalorder %s45, 1
      %p184 = por %p182, %p183
      %p186 = scmp.ne.s32.totalorder %s169, %s185
      %p187 = scmp.eq.s32.totalorder %s45, 0
      %p188 = por %p186, %p187
      %s189 = ssub.s32 %s47, %s54
      %p190 = scmp.eq.s32.totalorder %s189, 0
      %s192 = sadd.s32 %s191, 1
      %s193 = scalar_select %p190, %s191, %s192
      %p196 = pneg %p190
      %p197 = scmp.eq.s32.totalorder %s39, 1
      %p198 = por %p196, %p197
      %p199 = scmp.ne.s32.totalorder %s191, %s194
      %p200 = scmp.eq.s32.totalorder %s39, 0
      %p201 = por %p199, %p200
      %p202 = scmp.ne.s32.totalorder %s191, %s194
      %p203 = scmp.eq.s32.totalorder %s44, 1
      %p204 = por %p202, %p203
      %p205 = scmp.ne.s32.totalorder %s194, %s195
      %p206 = scmp.eq.s32.totalorder %s44, 0
      %p207 = por %p205, %p206
      %p208 = scmp.ne.s32.totalorder %s194, %s195
      %p209 = scmp.eq.s32.totalorder %s45, 1
      %p210 = por %p208, %p209
      %p212 = scmp.ne.s32.totalorder %s195, %s211
      %p213 = scmp.eq.s32.totalorder %s45, 0
      %p214 = por %p212, %p213
      %s215 = ssub.s32 %s47, %s54
      %p216 = scmp.eq.s32.totalorder %s215, 0
      %s218 = sadd.s32 %s217, 1
      %s219 = scalar_select %p216, %s217, %s218
      %p222 = pneg %p216
      %p223 = scmp.eq.s32.totalorder %s39, 1
      %p224 = por %p222, %p223
      %p225 = scmp.ne.s32.totalorder %s217, %s220
      %p226 = scmp.eq.s32.totalorder %s39, 0
      %p227 = por %p225, %p226
      %p228 = scmp.ne.s32.totalorder %s217, %s220
      %p229 = scmp.eq.s32.totalorder %s44, 1
      %p230 = por %p228, %p229
      %p231 = scmp.ne.s32.totalorder %s220, %s221
      %p232 = scmp.eq.s32.totalorder %s44, 0
      %p233 = por %p231, %p232
      %p234 = scmp.ne.s32.totalorder %s220, %s221
      %p235 = scmp.eq.s32.totalorder %s45, 1
      %p236 = por %p234, %p235
      %p238 = scmp.ne.s32.totalorder %s221, %s237
      %p239 = scmp.eq.s32.totalorder %s45, 0
      %p240 = por %p238, %p239
      %s241 = ssub.s32 %s47, %s54
      %p242 = scmp.eq.s32.totalorder %s241, 0
      %s244 = sadd.s32 %s243, 1
      %s245 = scalar_select %p242, %s243, %s244
      %p248 = pneg %p242
      %p249 = scmp.eq.s32.totalorder %s39, 1
      %p250 = por %p248, %p249
      %p251 = scmp.ne.s32.totalorder %s243, %s246
      %p252 = scmp.eq.s32.totalorder %s39, 0
      %p253 = por %p251, %p252
      %p254 = scmp.ne.s32.totalorder %s243, %s246
      %p255 = scmp.eq.s32.totalorder %s44, 1
      %p256 = por %p254, %p255
      %p257 = scmp.ne.s32.totalorder %s246, %s247
      %p258 = scmp.eq.s32.totalorder %s44, 0
      %p259 = por %p257, %p258
      %p260 = scmp.ne.s32.totalorder %s246, %s247
      %p261 = scmp.eq.s32.totalorder %s45, 1
      %p262 = por %p260, %p261
      %p264 = scmp.ne.s32.totalorder %s247, %s263
      %p265 = scmp.eq.s32.totalorder %s45, 0
      %p266 = por %p264, %p265
      %s267 = ssub.s32 %s47, %s54
      %p268 = scmp.eq.s32.totalorder %s267, 0
      %s270 = sadd.s32 %s269, 1
      %s271 = scalar_select %p268, %s269, %s270
      %p274 = pneg %p268
      %p275 = scmp.eq.s32.totalorder %s39, 1
      %p276 = por %p274, %p275
      %p277 = scmp.ne.s32.totalorder %s269, %s272
      %p278 = scmp.eq.s32.totalorder %s39, 0
      %p279 = por %p277, %p278
      %p280 = scmp.ne.s32.totalorder %s269, %s272
      %p281 = scmp.eq.s32.totalorder %s44, 1
      %p282 = por %p280, %p281
      %p283 = scmp.ne.s32.totalorder %s272, %s273
      %p284 = scmp.eq.s32.totalorder %s44, 0
      %p285 = por %p283, %p284
      %p286 = scmp.ne.s32.totalorder %s272, %s273
      %p287 = scmp.eq.s32.totalorder %s45, 1
      %p288 = por %p286, %p287
      %p290 = scmp.ne.s32.totalorder %s273, %s289
      %p291 = scmp.eq.s32.totalorder %s45, 0
      %p292 = por %p290, %p291
      %s293 = ssub.s32 %s47, %s54
      %p294 = scmp.eq.s32.totalorder %s293, 0
      %s296 = sadd.s32 %s295, 1
      %s297 = scalar_select %p294, %s295, %s296
      %p300 = pneg %p294
      %p301 = scmp.eq.s32.totalorder %s39, 1
      %p302 = por %p300, %p301
      %p303 = scmp.ne.s32.totalorder %s295, %s298
      %p304 = scmp.eq.s32.totalorder %s39, 0
      %p305 = por %p303, %p304
      %p306 = scmp.ne.s32.totalorder %s295, %s298
      %p307 = scmp.eq.s32.totalorder %s44, 1
      %p308 = por %p306, %p307
      %p309 = scmp.ne.s32.totalorder %s298, %s299
      %p310 = scmp.eq.s32.totalorder %s44, 0
      %p311 = por %p309, %p310
      %p312 = scmp.ne.s32.totalorder %s298, %s299
      %p313 = scmp.eq.s32.totalorder %s45, 1
      %p314 = por %p312, %p313
      %p316 = scmp.ne.s32.totalorder %s299, %s315
      %p317 = scmp.eq.s32.totalorder %s45, 0
      %p318 = por %p316, %p317
      %s319 = ssub.s32 %s47, %s54
      %p320 = scmp.eq.s32.totalorder %s319, 0
      %s322 = sadd.s32 %s321, 1
      %s323 = scalar_select %p320, %s321, %s322
      %p326 = pneg %p320
      %p327 = scmp.eq.s32.totalorder %s39, 1
      %p328 = por %p326, %p327
      %p329 = scmp.ne.s32.totalorder %s321, %s324
      %p330 = scmp.eq.s32.totalorder %s39, 0
      %p331 = por %p329, %p330
      %p332 = scmp.ne.s32.totalorder %s321, %s324
      %p333 = scmp.eq.s32.totalorder %s44, 1
      %p334 = por %p332, %p333
      %p335 = scmp.ne.s32.totalorder %s324, %s325
      %p336 = scmp.eq.s32.totalorder %s44, 0
      %p337 = por %p335, %p336
      %p338 = scmp.ne.s32.totalorder %s324, %s325
      %p339 = scmp.eq.s32.totalorder %s45, 1
      %p340 = por %p338, %p339
      %p342 = scmp.ne.s32.totalorder %s325, %s341
      %p343 = scmp.eq.s32.totalorder %s45, 0
      %p344 = por %p342, %p343
      %s345 = ssub.s32 %s47, %s54
      %p346 = scmp.eq.s32.totalorder %s345, 0
      %s348 = sadd.s32 %s347, 1
      %s349 = scalar_select %p346, %s347, %s348
      %p352 = pneg %p346
      %p353 = scmp.eq.s32.totalorder %s39, 1
      %p354 = por %p352, %p353
      %p355 = scmp.ne.s32.totalorder %s347, %s350
      %p356 = scmp.eq.s32.totalorder %s39, 0
      %p357 = por %p355, %p356
      %p358 = scmp.ne.s32.totalorder %s347, %s350
      %p359 = scmp.eq.s32.totalorder %s44, 1
      %p360 = por %p358, %p359
      %p361 = scmp.ne.s32.totalorder %s350, %s351
      %p362 = scmp.eq.s32.totalorder %s44, 0
      %p363 = por %p361, %p362
      %p364 = scmp.ne.s32.totalorder %s350, %s351
      %p365 = scmp.eq.s32.totalorder %s45, 1
      %p366 = por %p364, %p365
      %p368 = scmp.ne.s32.totalorder %s351, %s367
      %p369 = scmp.eq.s32.totalorder %s45, 0
      %p370 = por %p368, %p369
      %s371 = ssub.s32 %s47, %s54
      %p372 = scmp.eq.s32.totalorder %s371, 0
      %s374 = sadd.s32 %s373, 1
      %s375 = scalar_select %p372, %s373, %s374
      %p378 = pneg %p372
      %p379 = scmp.eq.s32.totalorder %s39, 1
      %p380 = por %p378, %p379
      %p381 = scmp.ne.s32.totalorder %s373, %s376
      %p382 = scmp.eq.s32.totalorder %s39, 0
      %p383 = por %p381, %p382
      %p384 = scmp.ne.s32.totalorder %s373, %s376
      %p385 = scmp.eq.s32.totalorder %s44, 1
      %p386 = por %p384, %p385
      %p387 = scmp.ne.s32.totalorder %s376, %s377
      %p388 = scmp.eq.s32.totalorder %s44, 0
      %p389 = por %p387, %p388
      %p390 = scmp.ne.s32.totalorder %s376, %s377
      %p391 = scmp.eq.s32.totalorder %s45, 1
      %p392 = por %p390, %p391
      %p394 = scmp.ne.s32.totalorder %s377, %s393
      %p395 = scmp.eq.s32.totalorder %s45, 0
      %p396 = por %p394, %p395
      %s397 = ssub.s32 %s47, %s54
      %p398 = scmp.eq.s32.totalorder %s397, 0
      %s400 = sadd.s32 %s399, 1
      %s401 = scalar_select %p398, %s399, %s400
      %p404 = pneg %p398
      %p405 = scmp.eq.s32.totalorder %s39, 1
      %p406 = por %p404, %p405
      %p407 = scmp.ne.s32.totalorder %s399, %s402
      %p408 = scmp.eq.s32.totalorder %s39, 0
      %p409 = por %p407, %p408
      %p410 = scmp.ne.s32.totalorder %s399, %s402
      %p411 = scmp.eq.s32.totalorder %s44, 1
      %p412 = por %p410, %p411
      %p413 = scmp.ne.s32.totalorder %s402, %s403
      %p414 = scmp.eq.s32.totalorder %s44, 0
      %p415 = por %p413, %p414
      %p416 = scmp.ne.s32.totalorder %s402, %s403
      %p417 = scmp.eq.s32.totalorder %s45, 1
      %p418 = por %p416, %p417
      %p420 = scmp.ne.s32.totalorder %s403, %s419
      %p421 = scmp.eq.s32.totalorder %s45, 0
      %p422 = por %p420, %p421
      %s423 = ssub.s32 %s46, %s58
      %p424 = scmp.eq.s32.totalorder %s423, 0
      %s426 = sadd.s32 %s425, 1
      %s427 = scalar_select %p424, %s425, %s426
      %p430 = pneg %p424
      %p431 = scmp.eq.s32.totalorder %s39, 1
      %p432 = por %p430, %p431
      %p433 = scmp.ne.s32.totalorder %s425, %s428
      %p434 = scmp.eq.s32.totalorder %s39, 0
      %p435 = por %p433, %p434
      %p436 = scmp.ne.s32.totalorder %s425, %s428
      %p437 = scmp.eq.s32.totalorder %s44, 1
      %p438 = por %p436, %p437
      %p439 = scmp.ne.s32.totalorder %s428, %s429
      %p440 = scmp.eq.s32.totalorder %s44, 0
      %p441 = por %p439, %p440
      %p442 = scmp.ne.s32.totalorder %s428, %s429
      %p443 = scmp.eq.s32.totalorder %s45, 1
      %p444 = por %p442, %p443
      %p446 = scmp.ne.s32.totalorder %s429, %s445
      %p447 = scmp.eq.s32.totalorder %s45, 0
      %p448 = por %p446, %p447
      %p449 = scmp.le.s32.totalorder 1, %s39
      %p450 = scmp.lt.s32.totalorder %s39, 3
      %p451 = pnand %p449, %p450
      %p452 = pneg %p451
      // Predicated region
      $region9: #{tpu_custom_call.1} parent=5 // pred_check
        _
      $region10: #{tpu_custom_call.1} parent=5 // pred_check_branch
        %454 = sbr.rel (%p451) target = $region12
      $region11: #{tpu_custom_call.1} parent=5 // pred_region
        %s455 = ssub.s32 %s39, 1
        // Predicated region
        $region13: #{tpu_custom_call.1} parent=11 // pred_check
          %p456 = pneg %p77
        $region14: #{tpu_custom_call.1} parent=11 // pred_check_branch
          %458 = sbr.rel (%p456) target = $region16
        $region15: #{tpu_custom_call.1} parent=11 // pred_region
          %s459 = smul.u32 2, %s48
          %p460 = scmp.lt.s32.totalorder %s459, 1
          %s461 = scalar_select %p460, %s459, 1
          %s462 = smul.addr %s461, 8
          %s463 = scalar_lea.vmem %s0, %s462
          %s464 = smul.u32 2, %s48
        $region16: #{tpu_custom_call.1} parent=11 // pred_fallthru
          _
        // Predicated region
        $region17: #{tpu_custom_call.1} parent=11 // pred_check
          %p465 = pneg %p103
        $region18: #{tpu_custom_call.1} parent=11 // pred_check_branch
          %467 = sbr.rel (%p465) target = $region20
        $region19: #{tpu_custom_call.1} parent=11 // pred_region
          %s468 = smul.u32 2, %s48
          %p469 = scmp.lt.s32.totalorder %s468, 1
          %s470 = scalar_select %p469, %s468, 1
          %s471 = smul.addr %s470, 2
          %s472 = smul.addr %s471, 8
          %s473 = scalar_lea.vmem %s1, %s472
          %s474 = smul.u32 2, %s48
        $region20: #{tpu_custom_call.1} parent=11 // pred_fallthru
          _
      $region12: #{tpu_custom_call.1} parent=5 // pred_fallthru
        _
      %p475 = scmp.lt.s32.totalorder %s39, 2
      // Predicated region
      $region21: #{tpu_custom_call.1} parent=5 // pred_check
        %p476 = pneg %p475
      $region22: #{tpu_custom_call.1} parent=5 // pred_check_branch
        %478 = sbr.rel (%p476) target = $region24
      $region23: #{tpu_custom_call.1} parent=5 // pred_region
        // Predicated region
        $region25: #{tpu_custom_call.1} parent=23 // pred_check
          %p479 = pneg %p123
        $region26: #{tpu_custom_call.1} parent=23 // pred_check_branch
          %481 = sbr.rel (%p479) target = $region28
        $region27: #{tpu_custom_call.1} parent=23 // pred_region
          %s482 = sand.u32 %s113, 1
          %s483 = scalar_lea.sflag [#allocation3], %s482
          %s484 = sand.u32 %s113, 1
          %s485 = smul.addr %s484, 128
          %s486 = scalar_lea.vmem [#allocation2], %s485
          %s488 = ssub.s32 2048, 2048
          %489 = vsyncadd %s483, %s488
          %s490 = smul.addr %s47, 16
          %s491 = smul.addr %s490, 128
          %s492 = scalar_lea.hbm %s2, %s491
          %s493 = sshll.u32 %s486, 4
          %s494 = int_to_ptr.vmem [resolvable:$true] %s493
          %499 = dma.hbm_to_vmem [thread:$0]  %s492, 2048, %s494, %s483, 128, 128, 8
        $region28: #{tpu_custom_call.1} parent=23 // pred_fallthru
          _
        // Predicated region
        $region29: #{tpu_custom_call.1} parent=23 // pred_check
          %p500 = pneg %p149
        $region30: #{tpu_custom_call.1} parent=23 // pred_check_branch
          %502 = sbr.rel (%p500) target = $region32
        $region31: #{tpu_custom_call.1} parent=23 // pred_region
          %s503 = sand.u32 %s39, 1
          %s504 = scalar_lea.sflag [#allocation6], %s503
          %s505 = sand.u32 %s139, 1
          %s506 = smul.addr %s505, 128
          %s507 = scalar_lea.vmem [#allocation5], %s506
          %s509 = ssub.s32 2048, 2048
          %510 = vsyncadd %s504, %s509
          %s511 = smul.addr %s47, 16
          %s512 = smul.addr %s511, 128
          %s513 = scalar_lea.hbm %s3, %s512
          %s514 = sshll.u32 %s507, 4
          %s515 = int_to_ptr.vmem [resolvable:$true] %s514
          %520 = dma.hbm_to_vmem [thread:$0]  %s513, 2048, %s515, %s504, 128, 128, 8
        $region32: #{tpu_custom_call.1} parent=23 // pred_fallthru
          _
        // Predicated region
        $region33: #{tpu_custom_call.1} parent=23 // pred_check
          %p521 = pneg %p175
        $region34: #{tpu_custom_call.1} parent=23 // pred_check_branch
          %523 = sbr.rel (%p521) target = $region36
        $region35: #{tpu_custom_call.1} parent=23 // pred_region
          %s524 = sand.u32 %s39, 1
          %s525 = scalar_lea.sflag [#allocation6], %s524
          %s526 = sand.u32 %s165, 1
          %s527 = smul.addr %s526, 128
          %s528 = scalar_lea.vmem [#allocation7], %s527
          %s530 = ssub.s32 2048, 2048
          %531 = vsyncadd %s525, %s530
          %s532 = smul.addr %s47, 16
          %s533 = smul.addr %s532, 128
          %s534 = scalar_lea.hbm %s4, %s533
          %s535 = sshll.u32 %s528, 4
          %s536 = int_to_ptr.vmem [resolvable:$true] %s535
          %541 = dma.hbm_to_vmem [thread:$0]  %s534, 2048, %s536, %s525, 128, 128, 8
        $region36: #{tpu_custom_call.1} parent=23 // pred_fallthru
          _
        // Predicated region
        $region37: #{tpu_custom_call.1} parent=23 // pred_check
          %p542 = pneg %p201
        $region38: #{tpu_custom_call.1} parent=23 // pred_check_branch
          %544 = sbr.rel (%p542) target = $region40
        $region39: #{tpu_custom_call.1} parent=23 // pred_region
          %s545 = sand.u32 %s39, 1
          %s546 = scalar_lea.sflag [#allocation9], %s545
          %s547 = sand.u32 %s191, 1
          %s548 = smul.addr %s547, 128
          %s549 = scalar_lea.vmem [#allocation8], %s548
          %s551 = ssub.s32 2048, 2048
          %552 = vsyncadd %s546, %s551
          %s553 = smul.addr %s47, 16
          %s554 = smul.addr %s553, 128
          %s555 = scalar_lea.hbm %s5, %s554
          %s556 = sshll.u32 %s549, 4
          %s557 = int_to_ptr.vmem [resolvable:$true] %s556
          %562 = dma.hbm_to_vmem [thread:$0]  %s555, 2048, %s557, %s546, 128, 128, 8
        $region40: #{tpu_custom_call.1} parent=23 // pred_fallthru
          _
        // Predicated region
        $region41: #{tpu_custom_call.1} parent=23 // pred_check
          %p563 = pneg %p227
        $region42: #{tpu_custom_call.1} parent=23 // pred_check_branch
          %565 = sbr.rel (%p563) target = $region44
        $region43: #{tpu_custom_call.1} parent=23 // pred_region
          %s566 = sand.u32 %s39, 1
          %s567 = scalar_lea.sflag [#allocation9], %s566
          %s568 = sand.u32 %s217, 1
          %s569 = smul.addr %s568, 128
          %s570 = scalar_lea.vmem [#allocation10], %s569
          %s572 = ssub.s32 2048, 2048
          %573 = vsyncadd %s567, %s572
          %s574 = smul.addr %s47, 16
          %s575 = smul.addr %s574, 128
          %s576 = scalar_lea.hbm %s6, %s575
          %s577 = sshll.u32 %s570, 4
          %s578 = int_to_ptr.vmem [resolvable:$true] %s577
          %583 = dma.hbm_to_vmem [thread:$0]  %s576, 2048, %s578, %s567, 128, 128, 8
        $region44: #{tpu_custom_call.1} parent=23 // pred_fallthru
          _
        // Predicated region
        $region45: #{tpu_custom_call.1} parent=23 // pred_check
          %p584 = pneg %p253
        $region46: #{tpu_custom_call.1} parent=23 // pred_check_branch
          %586 = sbr.rel (%p584) target = $region48
        $region47: #{tpu_custom_call.1} parent=23 // pred_region
          %s587 = sand.u32 %s39, 1
          %s588 = scalar_lea.sflag [#allocation12], %s587
          %s589 = sand.u32 %s243, 1
          %s590 = smul.addr %s589, 128
          %s591 = scalar_lea.vmem [#allocation11], %s590
          %s593 = ssub.s32 2048, 2048
          %594 = vsyncadd %s588, %s593
          %s595 = smul.addr %s47, 16
          %s596 = smul.addr %s595, 128
          %s597 = scalar_lea.hbm %s7, %s596
          %s598 = sshll.u32 %s591, 4
          %s599 = int_to_ptr.vmem [resolvable:$true] %s598
          %604 = dma.hbm_to_vmem [thread:$0]  %s597, 2048, %s599, %s588, 128, 128, 8
        $region48: #{tpu_custom_call.1} parent=23 // pred_fallthru
          _
        // Predicated region
        $region49: #{tpu_custom_call.1} parent=23 // pred_check
          %p605 = pneg %p279
        $region50: #{tpu_custom_call.1} parent=23 // pred_check_branch
          %607 = sbr.rel (%p605) target = $region52
        $region51: #{tpu_custom_call.1} parent=23 // pred_region
          %s608 = sand.u32 %s39, 1
          %s609 = scalar_lea.sflag [#allocation12], %s608
          %s610 = sand.u32 %s269, 1
          %s611 = smul.addr %s610, 128
          %s612 = scalar_lea.vmem [#allocation13], %s611
          %s614 = ssub.s32 2048, 2048
          %615 = vsyncadd %s609, %s614
          %s616 = smul.addr %s47, 16
          %s617 = smul.addr %s616, 128
          %s618 = scalar_lea.hbm %s8, %s617
          %s619 = sshll.u32 %s612, 4
          %s620 = int_to_ptr.vmem [resolvable:$true] %s619
          %625 = dma.hbm_to_vmem [thread:$0]  %s618, 2048, %s620, %s609, 128, 128, 8
        $region52: #{tpu_custom_call.1} parent=23 // pred_fallthru
          _
        // Predicated region
        $region53: #{tpu_custom_call.1} parent=23 // pred_check
          %p626 = pneg %p305
        $region54: #{tpu_custom_call.1} parent=23 // pred_check_branch
          %628 = sbr.rel (%p626) target = $region56
        $region55: #{tpu_custom_call.1} parent=23 // pred_region
          %s629 = sand.u32 %s39, 1
          %s630 = scalar_lea.sflag [#allocation15], %s629
          %s631 = sand.u32 %s295, 1
          %s632 = smul.addr %s631, 128
          %s633 = scalar_lea.vmem [#allocation14], %s632
          %s635 = ssub.s32 2048, 2048
          %636 = vsyncadd %s630, %s635
          %s637 = smul.addr %s47, 16
          %s638 = smul.addr %s637, 128
          %s639 = scalar_lea.hbm %s9, %s638
          %s640 = sshll.u32 %s633, 4
          %s641 = int_to_ptr.vmem [resolvable:$true] %s640
          %646 = dma.hbm_to_vmem [thread:$0]  %s639, 2048, %s641, %s630, 128, 128, 8
        $region56: #{tpu_custom_call.1} parent=23 // pred_fallthru
          _
        // Predicated region
        $region57: #{tpu_custom_call.1} parent=23 // pred_check
          %p647 = pneg %p331
        $region58: #{tpu_custom_call.1} parent=23 // pred_check_branch
          %649 = sbr.rel (%p647) target = $region60
        $region59: #{tpu_custom_call.1} parent=23 // pred_region
          %s650 = sand.u32 %s39, 1
          %s651 = scalar_lea.sflag [#allocation15], %s650
          %s652 = sand.u32 %s321, 1
          %s653 = smul.addr %s652, 256
          %s654 = scalar_lea.vmem [#allocation16], %s653
          %s656 = ssub.s32 4096, 4096
          %657 = vsyncadd %s651, %s656
          %s658 = smul.addr %s47, 32
          %s659 = smul.addr %s658, 128
          %s660 = scalar_lea.hbm %s10, %s659
          %s661 = sshll.u32 %s654, 4
          %s662 = int_to_ptr.vmem [resolvable:$true] %s661
          %667 = dma.hbm_to_vmem [thread:$0]  %s660, 4096, %s662, %s651, 256, 256, 16
        $region60: #{tpu_custom_call.1} parent=23 // pred_fallthru
          _
        // Predicated region
        $region61: #{tpu_custom_call.1} parent=23 // pred_check
          %p668 = pneg %p357
        $region62: #{tpu_custom_call.1} parent=23 // pred_check_branch
          %670 = sbr.rel (%p668) target = $region64
        $region63: #{tpu_custom_call.1} parent=23 // pred_region
          %s671 = sand.u32 %s347, 1
          %s672 = scalar_lea.sflag [#allocation18], %s671
          %s673 = sand.u32 %s347, 1
          %s674 = smul.addr %s673, 256
          %s675 = scalar_lea.vmem [#allocation17], %s674
          %s677 = ssub.s32 4096, 4096
          %678 = vsyncadd %s672, %s677
          %s679 = smul.addr %s47, 32
          %s680 = smul.addr %s679, 128
          %s681 = scalar_lea.hbm %s11, %s680
          %s682 = sshll.u32 %s675, 4
          %s683 = int_to_ptr.vmem [resolvable:$true] %s682
          %688 = dma.hbm_to_vmem [thread:$0]  %s681, 4096, %s683, %s672, 128, 128, 8
        $region64: #{tpu_custom_call.1} parent=23 // pred_fallthru
          _
        // Predicated region
        $region65: #{tpu_custom_call.1} parent=23 // pred_check
          %p689 = pneg %p383
        $region66: #{tpu_custom_call.1} parent=23 // pred_check_branch
          %691 = sbr.rel (%p689) target = $region68
        $region67: #{tpu_custom_call.1} parent=23 // pred_region
          %p692 = scmp.lt.s32.totalorder %s47, 1
          %s693 = scalar_select %p692, %s47, 1
          %s694 = smul.addr %s693, 2
          %s695 = smul.addr %s694, 8
          %s696 = scalar_lea.vmem %s12, %s695
        $region68: #{tpu_custom_call.1} parent=23 // pred_fallthru
          _
        // Predicated region
        $region69: #{tpu_custom_call.1} parent=23 // pred_check
          %p697 = pneg %p409
        $region70: #{tpu_custom_call.1} parent=23 // pred_check_branch
          %699 = sbr.rel (%p697) target = $region72
        $region71: #{tpu_custom_call.1} parent=23 // pred_region
          %p700 = scmp.lt.s32.totalorder %s47, 1
          %s701 = scalar_select %p700, %s47, 1
          %s702 = smul.addr %s701, 2
          %s703 = scalar_lea.vmem %s13, %s702
        $region72: #{tpu_custom_call.1} parent=23 // pred_fallthru
          _
      $region24: #{tpu_custom_call.1} parent=5 // pred_fallthru
        _
      %p704 = scmp.le.s32.totalorder 1, %s39
      %p705 = scmp.lt.s32.totalorder %s39, 3
      %p706 = pnand %p704, %p705
      %p707 = pneg %p706
      // Predicated region
      $region73: #{tpu_custom_call.1} parent=5 // pred_check
        _
      $region74: #{tpu_custom_call.1} parent=5 // pred_check_branch
        %709 = sbr.rel (%p706) target = $region76
      $region75: #{tpu_custom_call.1} parent=5 // pred_region
        %s710 = ssub.s32 %s39, 1
        %s711 = sand.u32 %s116, 1
        %s712 = scalar_lea.sflag [#allocation3], %s711
        %s713 = sand.u32 %s116, 1
        %s714 = smul.addr %s713, 128
        %s715 = scalar_lea.vmem [#allocation2], %s714
        // Predicated region
        $region77: #{tpu_custom_call.1} parent=75 // pred_check
          %p716 = pneg %p129
        $region78: #{tpu_custom_call.1} parent=75 // pred_check_branch
          %718 = sbr.rel (%p716) target = $region80
        $region79: #{tpu_custom_call.1} parent=75 // pred_region
          %719 = dma.done %s712, 2048
        $region80: #{tpu_custom_call.1} parent=75 // pred_fallthru
          _
        %s720 = sand.u32 %s44, 1
        %s721 = scalar_lea.sflag [#allocation6], %s720
        %s722 = sand.u32 %s142, 1
        %s723 = smul.addr %s722, 128
        %s724 = scalar_lea.vmem [#allocation5], %s723
        // Predicated region
        $region81: #{tpu_custom_call.1} parent=75 // pred_check
          %p725 = pneg %p155
        $region82: #{tpu_custom_call.1} parent=75 // pred_check_branch
          %727 = sbr.rel (%p725) target = $region84
        $region83: #{tpu_custom_call.1} parent=75 // pred_region
          %728 = dma.done %s721, 2048
        $region84: #{tpu_custom_call.1} parent=75 // pred_fallthru
          _
        %s729 = sand.u32 %s44, 1
        %s730 = scalar_lea.sflag [#allocation6], %s729
        %s731 = sand.u32 %s168, 1
        %s732 = smul.addr %s731, 128
        %s733 = scalar_lea.vmem [#allocation7], %s732
        // Predicated region
        $region85: #{tpu_custom_call.1} parent=75 // pred_check
          %p734 = pneg %p181
        $region86: #{tpu_custom_call.1} parent=75 // pred_check_branch
          %736 = sbr.rel (%p734) target = $region88
        $region87: #{tpu_custom_call.1} parent=75 // pred_region
          %737 = dma.done %s730, 2048
        $region88: #{tpu_custom_call.1} parent=75 // pred_fallthru
          _
        %s738 = sand.u32 %s44, 1
        %s739 = scalar_lea.sflag [#allocation9], %s738
        %s740 = sand.u32 %s194, 1
        %s741 = smul.addr %s740, 128
        %s742 = scalar_lea.vmem [#allocation8], %s741
        // Predicated region
        $region89: #{tpu_custom_call.1} parent=75 // pred_check
          %p743 = pneg %p207
        $region90: #{tpu_custom_call.1} parent=75 // pred_check_branch
          %745 = sbr.rel (%p743) target = $region92
        $region91: #{tpu_custom_call.1} parent=75 // pred_region
          %746 = dma.done %s739, 2048
        $region92: #{tpu_custom_call.1} parent=75 // pred_fallthru
          _
        %s747 = sand.u32 %s44, 1
        %s748 = scalar_lea.sflag [#allocation9], %s747
        %s749 = sand.u32 %s220, 1
        %s750 = smul.addr %s749, 128
        %s751 = scalar_lea.vmem [#allocation10], %s750
        // Predicated region
        $region93: #{tpu_custom_call.1} parent=75 // pred_check
          %p752 = pneg %p233
        $region94: #{tpu_custom_call.1} parent=75 // pred_check_branch
          %754 = sbr.rel (%p752) target = $region96
        $region95: #{tpu_custom_call.1} parent=75 // pred_region
          %755 = dma.done %s748, 2048
        $region96: #{tpu_custom_call.1} parent=75 // pred_fallthru
          _
        %s756 = sand.u32 %s44, 1
        %s757 = scalar_lea.sflag [#allocation12], %s756
        %s758 = sand.u32 %s246, 1
        %s759 = smul.addr %s758, 128
        %s760 = scalar_lea.vmem [#allocation11], %s759
        // Predicated region
        $region97: #{tpu_custom_call.1} parent=75 // pred_check
          %p761 = pneg %p259
        $region98: #{tpu_custom_call.1} parent=75 // pred_check_branch
          %763 = sbr.rel (%p761) target = $region100
        $region99: #{tpu_custom_call.1} parent=75 // pred_region
          %764 = dma.done %s757, 2048
        $region100: #{tpu_custom_call.1} parent=75 // pred_fallthru
          _
        %s765 = sand.u32 %s44, 1
        %s766 = scalar_lea.sflag [#allocation12], %s765
        %s767 = sand.u32 %s272, 1
        %s768 = smul.addr %s767, 128
        %s769 = scalar_lea.vmem [#allocation13], %s768
        // Predicated region
        $region101: #{tpu_custom_call.1} parent=75 // pred_check
          %p770 = pneg %p285
        $region102: #{tpu_custom_call.1} parent=75 // pred_check_branch
          %772 = sbr.rel (%p770) target = $region104
        $region103: #{tpu_custom_call.1} parent=75 // pred_region
          %773 = dma.done %s766, 2048
        $region104: #{tpu_custom_call.1} parent=75 // pred_fallthru
          _
        %s774 = sand.u32 %s44, 1
        %s775 = scalar_lea.sflag [#allocation15], %s774
        %s776 = sand.u32 %s298, 1
        %s777 = smul.addr %s776, 128
        %s778 = scalar_lea.vmem [#allocation14], %s777
        // Predicated region
        $region105: #{tpu_custom_call.1} parent=75 // pred_check
          %p779 = pneg %p311
        $region106: #{tpu_custom_call.1} parent=75 // pred_check_branch
          %781 = sbr.rel (%p779) target = $region108
        $region107: #{tpu_custom_call.1} parent=75 // pred_region
          %782 = dma.done %s775, 2048
        $region108: #{tpu_custom_call.1} parent=75 // pred_fallthru
          _
        %s783 = sand.u32 %s44, 1
        %s784 = scalar_lea.sflag [#allocation15], %s783
        %s785 = sand.u32 %s324, 1
        %s786 = smul.addr %s785, 256
        %s787 = scalar_lea.vmem [#allocation16], %s786
        // Predicated region
        $region109: #{tpu_custom_call.1} parent=75 // pred_check
          %p788 = pneg %p337
        $region110: #{tpu_custom_call.1} parent=75 // pred_check_branch
          %790 = sbr.rel (%p788) target = $region112
        $region111: #{tpu_custom_call.1} parent=75 // pred_region
          %791 = dma.done %s784, 4096
        $region112: #{tpu_custom_call.1} parent=75 // pred_fallthru
          _
        %s792 = sand.u32 %s350, 1
        %s793 = scalar_lea.sflag [#allocation18], %s792
        %s794 = sand.u32 %s350, 1
        %s795 = smul.addr %s794, 256
        %s796 = scalar_lea.vmem [#allocation17], %s795
        // Predicated region
        $region113: #{tpu_custom_call.1} parent=75 // pred_check
          %p797 = pneg %p363
        $region114: #{tpu_custom_call.1} parent=75 // pred_check_branch
          %799 = sbr.rel (%p797) target = $region116
        $region115: #{tpu_custom_call.1} parent=75 // pred_region
          %800 = dma.done %s793, 4096
        $region116: #{tpu_custom_call.1} parent=75 // pred_fallthru
          _
        %s801 = smul.u32 2, %s48
        %p802 = scmp.lt.s32.totalorder %s801, 1
        %s803 = scalar_select %p802, %s801, 1
        %s804 = smul.addr %s803, 8
        %s805 = scalar_lea.vmem %s0, %s804
        %p806 = pneg %p77
        %p807 = pneg %p74
        %s808 = smul.u32 2, %s48
        %p809 = scmp.lt.s32.totalorder %s808, 1
        %s810 = scalar_select %p809, %s808, 1
        %s811 = smul.addr %s810, 2
        %s812 = smul.addr %s811, 8
        %s813 = scalar_lea.vmem %s1, %s812
        %p814 = pneg %p103
        %p815 = pneg %p100
        %s816 = sand.u32 %s116, 1
        %s817 = scalar_lea.sflag [#allocation3], %s816
        %s818 = sand.u32 %s116, 1
        %s819 = smul.addr %s818, 128
        %s820 = scalar_lea.vmem [#allocation2], %s819
        %p821 = pneg %p129
        %p822 = pneg %p126
        %s823 = sand.u32 %s44, 1
        %s824 = scalar_lea.sflag [#allocation6], %s823
        %s825 = sand.u32 %s142, 1
        %s826 = smul.addr %s825, 128
        %s827 = scalar_lea.vmem [#allocation5], %s826
        %p828 = pneg %p155
        %p829 = pneg %p152
        %s830 = sand.u32 %s44, 1
        %s831 = scalar_lea.sflag [#allocation6], %s830
        %s832 = sand.u32 %s168, 1
        %s833 = smul.addr %s832, 128
        %s834 = scalar_lea.vmem [#allocation7], %s833
        %p835 = pneg %p181
        %p836 = pneg %p178
        %s837 = sand.u32 %s44, 1
        %s838 = scalar_lea.sflag [#allocation9], %s837
        %s839 = sand.u32 %s194, 1
        %s840 = smul.addr %s839, 128
        %s841 = scalar_lea.vmem [#allocation8], %s840
        %p842 = pneg %p207
        %p843 = pneg %p204
        %s844 = sand.u32 %s44, 1
        %s845 = scalar_lea.sflag [#allocation9], %s844
        %s846 = sand.u32 %s220, 1
        %s847 = smul.addr %s846, 128
        %s848 = scalar_lea.vmem [#allocation10], %s847
        %p849 = pneg %p233
        %p850 = pneg %p230
        %s851 = sand.u32 %s44, 1
        %s852 = scalar_lea.sflag [#allocation12], %s851
        %s853 = sand.u32 %s246, 1
        %s854 = smul.addr %s853, 128
        %s855 = scalar_lea.vmem [#allocation11], %s854
        %p856 = pneg %p259
        %p857 = pneg %p256
        %s858 = sand.u32 %s44, 1
        %s859 = scalar_lea.sflag [#allocation12], %s858
        %s860 = sand.u32 %s272, 1
        %s861 = smul.addr %s860, 128
        %s862 = scalar_lea.vmem [#allocation13], %s861
        %p863 = pneg %p285
        %p864 = pneg %p282
        %s865 = sand.u32 %s44, 1
        %s866 = scalar_lea.sflag [#allocation15], %s865
        %s867 = sand.u32 %s298, 1
        %s868 = smul.addr %s867, 128
        %s869 = scalar_lea.vmem [#allocation14], %s868
        %p870 = pneg %p311
        %p871 = pneg %p308
        %s872 = sand.u32 %s44, 1
        %s873 = scalar_lea.sflag [#allocation15], %s872
        %s874 = sand.u32 %s324, 1
        %s875 = smul.addr %s874, 256
        %s876 = scalar_lea.vmem [#allocation16], %s875
        %p877 = pneg %p337
        %p878 = pneg %p334
        %s879 = sand.u32 %s350, 1
        %s880 = scalar_lea.sflag [#allocation18], %s879
        %s881 = sand.u32 %s350, 1
        %s882 = smul.addr %s881, 256
        %s883 = scalar_lea.vmem [#allocation17], %s882
        %p884 = pneg %p363
        %p885 = pneg %p360
        %p886 = scmp.lt.s32.totalorder %s49, 1
        %s887 = scalar_select %p886, %s49, 1
        %s888 = smul.addr %s887, 2
        %s889 = smul.addr %s888, 8
        %s890 = scalar_lea.vmem %s12, %s889
        %p891 = pneg %p389
        %p892 = pneg %p386
        %p893 = scmp.lt.s32.totalorder %s49, 1
        %s894 = scalar_select %p893, %s49, 1
        %s895 = smul.addr %s894, 2
        %s896 = scalar_lea.vmem %s13, %s895
        %p897 = pneg %p415
        %p898 = pneg %p412
        %p899 = pneg %p441
        %p900 = pneg %p438
        %s901 = smul.u32 2, %s48
        %p902 = scmp.lt.s32.totalorder %s901, 1
        %s903 = scalar_select %p902, %s901, 1
        %s904 = smul.addr %s903, 8
        %s905 = scalar_lea.vmem %s0, %s904
        %s906 = smul.u32 2, %s48
        %s907 = smul.u32 2, %s48
        %p908 = scmp.lt.s32.totalorder %s907, 1
        %s909 = scalar_select %p908, %s907, 1
        %s910 = smul.addr %s909, 2
        %s911 = smul.addr %s910, 8
        %s912 = scalar_lea.vmem %s1, %s911
        %s913 = smul.u32 2, %s48
        %p914 = scmp.lt.s32.totalorder %s49, 1
        %s915 = scalar_select %p914, %s49, 1
        %s916 = smul.addr %s915, 2
        %s917 = smul.addr %s916, 8
        %s918 = scalar_lea.vmem %s12, %s917
        %p919 = scmp.lt.s32.totalorder %s49, 1
        %s920 = scalar_select %p919, %s49, 1
        %s921 = smul.addr %s920, 2
        %s922 = scalar_lea.vmem %s13, %s921
        %s923 = smul.u32 2, %s48
        %p924 = scmp.eq.s32.totalorder %s49, 0
        // Predicated region
        $region117: #{tpu_custom_call.1} parent=75 // pred_check
          %p925 = pneg %p924
        $region118: #{tpu_custom_call.1} parent=75 // pred_check_branch
          %927 = sbr.rel (%p925) target = $region120
        $region119: #{tpu_custom_call.1} parent=75 // pred_region
          %v928 = vld [vmem:[%s905] sm:$0xff]
          %v929 = vld [vmem:[%s905 + $0x8] sm:$0xff]
          %930 = vst [vmem:[#allocation19] sm:$0xff] %v928
          %931 = vst [vmem:[#allocation19 + $0x8] sm:$0xff] %v929
        $region120: #{tpu_custom_call.1} parent=75 // pred_fallthru
          _
        %v932 = vld [vmem:[#allocation19] sm:$0xff]
        %v933 = vld [vmem:[#allocation19 + $0x8] sm:$0xff]
        %v934 = vld [vmem:[%s918] sm:$0xff]
        %v935 = vld [vmem:[%s918 + $0x8] sm:$0x7f]
        %v936 = vld [vmem:[%s912] sm:$0xff]
        %v937 = vld [vmem:[%s912 + $0x8] sm:$0xff]
        %v938 = vld [vmem:[%s912 + $0x10] sm:$0xff]
        %v939 = vld [vmem:[%s912 + $0x18] sm:$0xff]
        %v940 = vld [vmem:[%s715] sm:$0xff]
        %v941 = vld [vmem:[%s715 + $0x8] sm:$0xff]
        %v942 = vld [vmem:[%s715 + $0x10] sm:$0xff]
        %v943 = vld [vmem:[%s715 + $0x18] sm:$0xff]
        %v944 = vld [vmem:[%s715 + $0x20] sm:$0xff]
        %v945 = vld [vmem:[%s715 + $0x28] sm:$0xff]
        %v946 = vld [vmem:[%s715 + $0x30] sm:$0xff]
        %v947 = vld [vmem:[%s715 + $0x38] sm:$0xff]
        %v948 = vld [vmem:[%s715 + $0x40] sm:$0xff]
        %v949 = vld [vmem:[%s715 + $0x48] sm:$0xff]
        %v950 = vld [vmem:[%s715 + $0x50] sm:$0xff]
        %v951 = vld [vmem:[%s715 + $0x58] sm:$0xff]
        %v952 = vld [vmem:[%s715 + $0x60] sm:$0xff]
        %v953 = vld [vmem:[%s715 + $0x68] sm:$0xff]
        %v954 = vld [vmem:[%s715 + $0x70] sm:$0xff]
        %v955 = vld [vmem:[%s715 + $0x78] sm:$0xff]
        %v956 = vld [vmem:[%s724] sm:$0xff]
        %v957 = vld [vmem:[%s724 + $0x8] sm:$0xff]
        %v958 = vld [vmem:[%s724 + $0x10] sm:$0xff]
        %v959 = vld [vmem:[%s724 + $0x18] sm:$0xff]
        %v960 = vld [vmem:[%s724 + $0x20] sm:$0xff]
        %v961 = vld [vmem:[%s724 + $0x28] sm:$0xff]
        %v962 = vld [vmem:[%s724 + $0x30] sm:$0xff]
        %v963 = vld [vmem:[%s724 + $0x38] sm:$0xff]
        %v964 = vld [vmem:[%s724 + $0x40] sm:$0xff]
        %v965 = vld [vmem:[%s724 + $0x48] sm:$0xff]
        %v966 = vld [vmem:[%s724 + $0x50] sm:$0xff]
        %v967 = vld [vmem:[%s724 + $0x58] sm:$0xff]
        %v968 = vld [vmem:[%s724 + $0x60] sm:$0xff]
        %v969 = vld [vmem:[%s724 + $0x68] sm:$0xff]
        %v970 = vld [vmem:[%s724 + $0x70] sm:$0xff]
        %v971 = vld [vmem:[%s724 + $0x78] sm:$0xff]
        %v972 = vld [vmem:[%s733] sm:$0xff]
        %v973 = vld [vmem:[%s733 + $0x8] sm:$0xff]
        %v974 = vld [vmem:[%s733 + $0x10] sm:$0xff]
        %v975 = vld [vmem:[%s733 + $0x18] sm:$0xff]
        %v976 = vld [vmem:[%s733 + $0x20] sm:$0xff]
        %v977 = vld [vmem:[%s733 + $0x28] sm:$0xff]
        %v978 = vld [vmem:[%s733 + $0x30] sm:$0xff]
        %v979 = vld [vmem:[%s733 + $0x38] sm:$0xff]
        %v980 = vld [vmem:[%s733 + $0x40] sm:$0xff]
        %v981 = vld [vmem:[%s733 + $0x48] sm:$0xff]
        %v982 = vld [vmem:[%s733 + $0x50] sm:$0xff]
        %v983 = vld [vmem:[%s733 + $0x58] sm:$0xff]
        %v984 = vld [vmem:[%s733 + $0x60] sm:$0xff]
        %v985 = vld [vmem:[%s733 + $0x68] sm:$0xff]
        %v986 = vld [vmem:[%s733 + $0x70] sm:$0xff]
        %v987 = vld [vmem:[%s733 + $0x78] sm:$0xff]
        %v988 = vld [vmem:[%s742] sm:$0xff]
        %v989 = vld [vmem:[%s742 + $0x8] sm:$0xff]
        %v990 = vld [vmem:[%s742 + $0x10] sm:$0xff]
        %v991 = vld [vmem:[%s742 + $0x18] sm:$0xff]
        %v992 = vld [vmem:[%s742 + $0x20] sm:$0xff]
        %v993 = vld [vmem:[%s742 + $0x28] sm:$0xff]
        %v994 = vld [vmem:[%s742 + $0x30] sm:$0xff]
        %v995 = vld [vmem:[%s742 + $0x38] sm:$0xff]
        %v996 = vld [vmem:[%s742 + $0x40] sm:$0xff]
        %v997 = vld [vmem:[%s742 + $0x48] sm:$0xff]
        %v998 = vld [vmem:[%s742 + $0x50] sm:$0xff]
        %v999 = vld [vmem:[%s742 + $0x58] sm:$0xff]
        %v1000 = vld [vmem:[%s742 + $0x60] sm:$0xff]
        %v1001 = vld [vmem:[%s742 + $0x68] sm:$0xff]
        %v1002 = vld [vmem:[%s742 + $0x70] sm:$0xff]
        %v1003 = vld [vmem:[%s742 + $0x78] sm:$0xff]
        %v1004 = vlaneseq
        %v1005 = vshrl.u32 %v1004, 7
        %v1006 = vsub.s32 0, %v1005
        %v1007 = vrot.slane %v934, %v1006
        %1008 = vmatprep.subr.mxu0 0.0
        %1009 = vmatpush1.msra.mxu0 %v940
        %1010 = vmatprep.subr.mxu0 0.0
        %1011 = vmatpush1.msra.mxu0 %v941
        %1012 = vmatprep.subr.mxu0 0.0
        %1013 = vmatpush1.msra.mxu0 %v942
        %1014 = vmatprep.subr.mxu0 0.0
        %1015 = vmatpush1.msra.mxu0 %v943
        %1016 = vmatprep.subr.mxu0 0.0
        %1017 = vmatpush1.msra.mxu0 %v944
        %1018 = vmatprep.subr.mxu0 0.0
        %1019 = vmatpush1.msra.mxu0 %v945
        %1020 = vmatprep.subr.mxu0 0.0
        %1021 = vmatpush1.msra.mxu0 %v946
        %1022 = vmatprep.subr.mxu0 0.0
        %1023 = vmatpush1.msra.mxu0 %v947
        %1024 = vmatprep.subr.mxu0 0.0
        %1025 = vmatpush1.msra.mxu0 %v948
        %1026 = vmatprep.subr.mxu0 0.0
        %1027 = vmatpush1.msra.mxu0 %v949
        %1028 = vmatprep.subr.mxu0 0.0
        %1029 = vmatpush1.msra.mxu0 %v950
        %1030 = vmatprep.subr.mxu0 0.0
        %1031 = vmatpush1.msra.mxu0 %v951
        %1032 = vmatprep.subr.mxu0 0.0
        %1033 = vmatpush1.msra.mxu0 %v952
        %1034 = vmatprep.subr.mxu0 0.0
        %1035 = vmatpush1.msra.mxu0 %v953
        %1036 = vmatprep.subr.mxu0 0.0
        %1037 = vmatpush1.msra.mxu0 %v954
        %1038 = vmatprep.subr.mxu0 0.0
        %1039 = vmatpush1.msra.mxu0 %v955
        %1040 = vmatprep.subr.mxu0 0.0
        %1041 = vmatpush1.msra.mxu0 0.0
        %1042 = vmatprep.subr.mxu0 0.0
        %1043 = vmatpush1.msra.mxu0 0.0
        %1044 = vmatprep.subr.mxu0 0.0
        %1045 = vmatpush1.msra.mxu0 0.0
        %1046 = vmatprep.subr.mxu0 0.0
        %1047 = vmatpush1.msra.mxu0 0.0
        %1048 = vmatprep.subr.mxu0 0.0
        %1049 = vmatpush1.msra.mxu0 0.0
        %1050 = vmatprep.subr.mxu0 0.0
        %1051 = vmatpush1.msra.mxu0 0.0
        %1052 = vmatprep.subr.mxu0 0.0
        %1053 = vmatpush1.msra.mxu0 0.0
        %1054 = vmatprep.subr.mxu0 0.0
        %1055 = vmatpush1.msra.mxu0 0.0
        %1056 = vmatprep.subr.mxu0 0.0
        %1057 = vmatpush1.msra.mxu0 0.0
        %1058 = vmatprep.subr.mxu0 0.0
        %1059 = vmatpush1.msra.mxu0 0.0
        %1060 = vmatprep.subr.mxu0 0.0
        %1061 = vmatpush1.msra.mxu0 0.0
        %1062 = vmatprep.subr.mxu0 0.0
        %1063 = vmatpush1.msra.mxu0 0.0
        %1064 = vmatprep.subr.mxu0 0.0
        %1065 = vmatpush1.msra.mxu0 0.0
        %1066 = vmatprep.subr.mxu0 0.0
        %1067 = vmatpush1.msra.mxu0 0.0
        %1068 = vmatprep.subr.mxu0 0.0
        %1069 = vmatpush1.msra.mxu0 0.0
        %1070 = vmatprep.subr.mxu0 0.0
        %1071 = vmatpush1.msra.mxu0 0.0
        %1072 = vmatprep.mubr.f32.mxu0 0.0
        %1073 = vmatmul.mubr.f32.gmra.mrb[0].mxu0 %v932
        %v1074 = vpop.f32.mrb[0].mxu0
        %v1075 = vadd.f32 %v1007, %v1074
        %v1076 = vpop.f32.mrb[0].mxu0
        %1077 = vmatprep.mubr.f32.mxu0 0.0
        %1078 = vmatmul.mubr.f32.gmra.mrb[0].mxu0 %v933
        %v1079 = vpop.f32.mrb[0].mxu0
        %v1080 = vadd.f32 %v1007, %v1079
        %v1081 = vpop.f32.mrb[0].mxu0
        %1082 = vdwg.mxu0
        %v1083 = vmul.f32 %v1075, 0.17677669
        %v1084 = vmul.f32 %v1080, 0.17677669
        %v1085 = vlaneseq
        %v1086 = vshrl.u32 %v1085, 7
        %v1087 = vsub.s32 1, %v1086
        %v1088 = vrot.slane %v934, %v1087
        %1089 = vmatprep.subr.mxu0 0.0
        %1090 = vmatpush1.msra.mxu0 %v956
        %1091 = vmatprep.subr.mxu0 0.0
        %1092 = vmatpush1.msra.mxu0 %v957
        %1093 = vmatprep.subr.mxu0 0.0
        %1094 = vmatpush1.msra.mxu0 %v958
        %1095 = vmatprep.subr.mxu0 0.0
        %1096 = vmatpush1.msra.mxu0 %v959
        %1097 = vmatprep.subr.mxu0 0.0
        %1098 = vmatpush1.msra.mxu0 %v960
        %1099 = vmatprep.subr.mxu0 0.0
        %1100 = vmatpush1.msra.mxu0 %v961
        %1101 = vmatprep.subr.mxu0 0.0
        %1102 = vmatpush1.msra.mxu0 %v962
        %1103 = vmatprep.subr.mxu0 0.0
        %1104 = vmatpush1.msra.mxu0 %v963
        %1105 = vmatprep.subr.mxu0 0.0
        %1106 = vmatpush1.msra.mxu0 %v964
        %1107 = vmatprep.subr.mxu0 0.0
        %1108 = vmatpush1.msra.mxu0 %v965
        %1109 = vmatprep.subr.mxu0 0.0
        %1110 = vmatpush1.msra.mxu0 %v966
        %1111 = vmatprep.subr.mxu0 0.0
        %1112 = vmatpush1.msra.mxu0 %v967
        %1113 = vmatprep.subr.mxu0 0.0
        %1114 = vmatpush1.msra.mxu0 %v968
        %1115 = vmatprep.subr.mxu0 0.0
        %1116 = vmatpush1.msra.mxu0 %v969
        %1117 = vmatprep.subr.mxu0 0.0
        %1118 = vmatpush1.msra.mxu0 %v970
        %1119 = vmatprep.subr.mxu0 0.0
        %1120 = vmatpush1.msra.mxu0 %v971
        %1121 = vmatprep.subr.mxu0 0.0
        %1122 = vmatpush1.msra.mxu0 0.0
        %1123 = vmatprep.subr.mxu0 0.0
        %1124 = vmatpush1.msra.mxu0 0.0
        %1125 = vmatprep.subr.mxu0 0.0
        %1126 = vmatpush1.msra.mxu0 0.0
        %1127 = vmatprep.subr.mxu0 0.0
        %1128 = vmatpush1.msra.mxu0 0.0
        %1129 = vmatprep.subr.mxu0 0.0
        %1130 = vmatpush1.msra.mxu0 0.0
        %1131 = vmatprep.subr.mxu0 0.0
        %1132 = vmatpush1.msra.mxu0 0.0
        %1133 = vmatprep.subr.mxu0 0.0
        %1134 = vmatpush1.msra.mxu0 0.0
        %1135 = vmatprep.subr.mxu0 0.0
        %1136 = vmatpush1.msra.mxu0 0.0
        %1137 = vmatprep.subr.mxu0 0.0
        %1138 = vmatpush1.msra.mxu0 0.0
        %1139 = vmatprep.subr.mxu0 0.0
        %1140 = vmatpush1.msra.mxu0 0.0
        %1141 = vmatprep.subr.mxu0 0.0
        %1142 = vmatpush1.msra.mxu0 0.0
        %1143 = vmatprep.subr.mxu0 0.0
        %1144 = vmatpush1.msra.mxu0 0.0
        %1145 = vmatprep.subr.mxu0 0.0
        %1146 = vmatpush1.msra.mxu0 0.0
        %1147 = vmatprep.subr.mxu0 0.0
        %1148 = vmatpush1.msra.mxu0 0.0
        %1149 = vmatprep.subr.mxu0 0.0
        %1150 = vmatpush1.msra.mxu0 0.0
        %1151 = vmatprep.subr.mxu0 0.0
        %1152 = vmatpush1.msra.mxu0 0.0
        %1153 = vmatprep.mubr.f32.mxu0 0.0
        %1154 = vmatmul.mubr.f32.gmra.mrb[0].mxu0 %v932
        %v1155 = vpop.f32.mrb[0].mxu0
        %v1156 = vadd.f32 %v1088, %v1155
        %v1157 = vpop.f32.mrb[0].mxu0
        %1158 = vmatprep.mubr.f32.mxu0 0.0
        %1159 = vmatmul.mubr.f32.gmra.mrb[0].mxu0 %v933
        %v1160 = vpop.f32.mrb[0].mxu0
        %v1161 = vadd.f32 %v1088, %v1160
        %v1162 = vpop.f32.mrb[0].mxu0
        %1163 = vdwg.mxu0
        %v1164 = vlaneseq
        %v1165 = vshrl.u32 %v1164, 7
        %v1166 = vsub.s32 2, %v1165
        %v1167 = vrot.slane %v934, %v1166
        %1168 = vmatprep.subr.mxu0 0.0
        %1169 = vmatpush1.msra.mxu0 %v972
        %1170 = vmatprep.subr.mxu0 0.0
        %1171 = vmatpush1.msra.mxu0 %v973
        %1172 = vmatprep.subr.mxu0 0.0
        %1173 = vmatpush1.msra.mxu0 %v974
        %1174 = vmatprep.subr.mxu0 0.0
        %1175 = vmatpush1.msra.mxu0 %v975
        %1176 = vmatprep.subr.mxu0 0.0
        %1177 = vmatpush1.msra.mxu0 %v976
        %1178 = vmatprep.subr.mxu0 0.0
        %1179 = vmatpush1.msra.mxu0 %v977
        %1180 = vmatprep.subr.mxu0 0.0
        %1181 = vmatpush1.msra.mxu0 %v978
        %1182 = vmatprep.subr.mxu0 0.0
        %1183 = vmatpush1.msra.mxu0 %v979
        %1184 = vmatprep.subr.mxu0 0.0
        %1185 = vmatpush1.msra.mxu0 %v980
        %1186 = vmatprep.subr.mxu0 0.0
        %1187 = vmatpush1.msra.mxu0 %v981
        %1188 = vmatprep.subr.mxu0 0.0
        %1189 = vmatpush1.msra.mxu0 %v982
        %1190 = vmatprep.subr.mxu0 0.0
        %1191 = vmatpush1.msra.mxu0 %v983
        %1192 = vmatprep.subr.mxu0 0.0
        %1193 = vmatpush1.msra.mxu0 %v984
        %1194 = vmatprep.subr.mxu0 0.0
        %1195 = vmatpush1.msra.mxu0 %v985
        %1196 = vmatprep.subr.mxu0 0.0
        %1197 = vmatpush1.msra.mxu0 %v986
        %1198 = vmatprep.subr.mxu0 0.0
        %1199 = vmatpush1.msra.mxu0 %v987
        %1200 = vmatprep.subr.mxu0 0.0
        %1201 = vmatpush1.msra.mxu0 0.0
        %1202 = vmatprep.subr.mxu0 0.0
        %1203 = vmatpush1.msra.mxu0 0.0
        %1204 = vmatprep.subr.mxu0 0.0
        %1205 = vmatpush1.msra.mxu0 0.0
        %1206 = vmatprep.subr.mxu0 0.0
        %1207 = vmatpush1.msra.mxu0 0.0
        %1208 = vmatprep.subr.mxu0 0.0
        %1209 = vmatpush1.msra.mxu0 0.0
        %1210 = vmatprep.subr.mxu0 0.0
        %1211 = vmatpush1.msra.mxu0 0.0
        %1212 = vmatprep.subr.mxu0 0.0
        %1213 = vmatpush1.msra.mxu0 0.0
        %1214 = vmatprep.subr.mxu0 0.0
        %1215 = vmatpush1.msra.mxu0 0.0
        %1216 = vmatprep.subr.mxu0 0.0
        %1217 = vmatpush1.msra.mxu0 0.0
        %1218 = vmatprep.subr.mxu0 0.0
        %1219 = vmatpush1.msra.mxu0 0.0
        %1220 = vmatprep.subr.mxu0 0.0
        %1221 = vmatpush1.msra.mxu0 0.0
        %1222 = vmatprep.subr.mxu0 0.0
        %1223 = vmatpush1.msra.mxu0 0.0
        %1224 = vmatprep.subr.mxu0 0.0
        %1225 = vmatpush1.msra.mxu0 0.0
        %1226 = vmatprep.subr.mxu0 0.0
        %1227 = vmatpush1.msra.mxu0 0.0
        %1228 = vmatprep.subr.mxu0 0.0
        %1229 = vmatpush1.msra.mxu0 0.0
        %1230 = vmatprep.subr.mxu0 0.0
        %1231 = vmatpush1.msra.mxu0 0.0
        %1232 = vmatprep.mubr.f32.mxu0 0.0
        %1233 = vmatmul.mubr.f32.gmra.mrb[0].mxu0 %v932
        %v1234 = vpop.f32.mrb[0].mxu0
        %v1235 = vadd.f32 %v1167, %v1234
        %v1236 = vpop.f32.mrb[0].mxu0
        %1237 = vmatprep.mubr.f32.mxu0 0.0
        %1238 = vmatmul.mubr.f32.gmra.mrb[0].mxu0 %v933
        %v1239 = vpop.f32.mrb[0].mxu0
        %v1240 = vadd.f32 %v1167, %v1239
        %v1241 = vpop.f32.mrb[0].mxu0
        %1242 = vdwg.mxu0
        %vm1243 = vcmask 261120
        %v1245 = vsel %vm1243, %v1083, 0
        %v1248 = vsel %vm1243, %v1156, 0
        %1250 = vmatprep.subr.mxu0 0.0
        %1251 = vmatpush1.xpose.msra.mxu0 %v1248
        %1252 = vmatprep.subr.mxu0 0.0
        %1253 = vmatpush1.xpose.msra.mxu0 0.0
        %1254 = vmatprep.subr.mxu0 0.0
        %1255 = vmatpush1.xpose.msra.mxu0 0.0
        %1256 = vmatprep.subr.mxu0 0.0
        %1257 = vmatpush1.xpose.msra.mxu0 0.0
        %1258 = vmatprep.subr.mxu0 0.0
        %1259 = vmatpush1.xpose.msra.mxu0 0.0
        %1260 = vmatprep.subr.mxu0 0.0
        %1261 = vmatpush1.xpose.msra.mxu0 0.0
        %1262 = vmatprep.subr.mxu0 0.0
        %1263 = vmatpush1.xpose.msra.mxu0 0.0
        %1264 = vmatprep.subr.mxu0 0.0
        %1265 = vmatpush1.xpose.msra.mxu0 0.0
        %1266 = vmatprep.subr.mxu0 0.0
        %1267 = vmatpush1.xpose.msra.mxu0 0.0
        %1268 = vmatprep.subr.mxu0 0.0
        %1269 = vmatpush1.xpose.msra.mxu0 0.0
        %1270 = vmatprep.subr.mxu0 0.0
        %1271 = vmatpush1.xpose.msra.mxu0 0.0
        %1272 = vmatprep.subr.mxu0 0.0
        %1273 = vmatpush1.xpose.msra.mxu0 0.0
        %1274 = vmatprep.subr.mxu0 0.0
        %1275 = vmatpush1.xpose.msra.mxu0 0.0
        %1276 = vmatprep.subr.mxu0 0.0
        %1277 = vmatpush1.xpose.msra.mxu0 0.0
        %1278 = vmatprep.subr.mxu0 0.0
        %1279 = vmatpush1.xpose.msra.mxu0 0.0
        %1280 = vmatprep.subr.mxu0 0.0
        %1281 = vmatpush1.xpose.msra.mxu0 0.0
        %1282 = vmatprep.subr.mxu0 0.0
        %1283 = vmatpush1.xpose.msra.mxu0 0.0
        %1284 = vmatprep.subr.mxu0 0.0
        %1285 = vmatpush1.xpose.msra.mxu0 0.0
        %1286 = vmatprep.subr.mxu0 0.0
        %1287 = vmatpush1.xpose.msra.mxu0 0.0
        %1288 = vmatprep.subr.mxu0 0.0
        %1289 = vmatpush1.xpose.msra.mxu0 0.0
        %1290 = vmatprep.subr.mxu0 0.0
        %1291 = vmatpush1.xpose.msra.mxu0 0.0
        %1292 = vmatprep.subr.mxu0 0.0
        %1293 = vmatpush1.xpose.msra.mxu0 0.0
        %1294 = vmatprep.subr.mxu0 0.0
        %1295 = vmatpush1.xpose.msra.mxu0 0.0
        %1296 = vmatprep.subr.mxu0 0.0
        %1297 = vmatpush1.xpose.msra.mxu0 0.0
        %1298 = vmatprep.subr.mxu0 0.0
        %1299 = vmatpush1.xpose.msra.mxu0 0.0
        %1300 = vmatprep.subr.mxu0 0.0
        %1301 = vmatpush1.xpose.msra.mxu0 0.0
        %1302 = vmatprep.subr.mxu0 0.0
        %1303 = vmatpush1.xpose.msra.mxu0 0.0
        %1304 = vmatprep.subr.mxu0 0.0
        %1305 = vmatpush1.xpose.msra.mxu0 0.0
        %1306 = vmatprep.subr.mxu0 0.0
        %1307 = vmatpush1.xpose.msra.mxu0 0.0
        %1308 = vmatprep.subr.mxu0 0.0
        %1309 = vmatpush1.xpose.msra.mxu0 0.0
        %1310 = vmatprep.subr.mxu0 0.0
        %1311 = vmatpush1.xpose.msra.mxu0 0.0
        %1312 = vmatprep.subr.mxu0 0.0
        %1313 = vmatpush1.xpose.msra.mxu0 0.0
        %1314 = vmatprep.mubr.f32.mxu0 0.0
        %1315 = vmatmul.mubr.f32.gmra.mrb[0].mxu0 %v1245
        %v1316 = vpop.f32.mrb[0].mxu0
        %v1317 = vadd.f32 0.0, %v1316
        %v1318 = vpop.f32.mrb[0].mxu0
        %1319 = vdwg.mxu0
        %v1321 = vsel %vm1243, %v1084, 0
        %v1324 = vsel %vm1243, %v1161, 0
        %1326 = vmatprep.subr.mxu0 0.0
        %1327 = vmatpush1.xpose.msra.mxu0 %v1324
        %1328 = vmatprep.subr.mxu0 0.0
        %1329 = vmatpush1.xpose.msra.mxu0 0.0
        %1330 = vmatprep.subr.mxu0 0.0
        %1331 = vmatpush1.xpose.msra.mxu0 0.0
        %1332 = vmatprep.subr.mxu0 0.0
        %1333 = vmatpush1.xpose.msra.mxu0 0.0
        %1334 = vmatprep.subr.mxu0 0.0
        %1335 = vmatpush1.xpose.msra.mxu0 0.0
        %1336 = vmatprep.subr.mxu0 0.0
        %1337 = vmatpush1.xpose.msra.mxu0 0.0
        %1338 = vmatprep.subr.mxu0 0.0
        %1339 = vmatpush1.xpose.msra.mxu0 0.0
        %1340 = vmatprep.subr.mxu0 0.0
        %1341 = vmatpush1.xpose.msra.mxu0 0.0
        %1342 = vmatprep.subr.mxu0 0.0
        %1343 = vmatpush1.xpose.msra.mxu0 0.0
        %1344 = vmatprep.subr.mxu0 0.0
        %1345 = vmatpush1.xpose.msra.mxu0 0.0
        %1346 = vmatprep.subr.mxu0 0.0
        %1347 = vmatpush1.xpose.msra.mxu0 0.0
        %1348 = vmatprep.subr.mxu0 0.0
        %1349 = vmatpush1.xpose.msra.mxu0 0.0
        %1350 = vmatprep.subr.mxu0 0.0
        %1351 = vmatpush1.xpose.msra.mxu0 0.0
        %1352 = vmatprep.subr.mxu0 0.0
        %1353 = vmatpush1.xpose.msra.mxu0 0.0
        %1354 = vmatprep.subr.mxu0 0.0
        %1355 = vmatpush1.xpose.msra.mxu0 0.0
        %1356 = vmatprep.subr.mxu0 0.0
        %1357 = vmatpush1.xpose.msra.mxu0 0.0
        %1358 = vmatprep.subr.mxu0 0.0
        %1359 = vmatpush1.xpose.msra.mxu0 0.0
        %1360 = vmatprep.subr.mxu0 0.0
        %1361 = vmatpush1.xpose.msra.mxu0 0.0
        %1362 = vmatprep.subr.mxu0 0.0
        %1363 = vmatpush1.xpose.msra.mxu0 0.0
        %1364 = vmatprep.subr.mxu0 0.0
        %1365 = vmatpush1.xpose.msra.mxu0 0.0
        %1366 = vmatprep.subr.mxu0 0.0
        %1367 = vmatpush1.xpose.msra.mxu0 0.0
        %1368 = vmatprep.subr.mxu0 0.0
        %1369 = vmatpush1.xpose.msra.mxu0 0.0
        %1370 = vmatprep.subr.mxu0 0.0
        %1371 = vmatpush1.xpose.msra.mxu0 0.0
        %1372 = vmatprep.subr.mxu0 0.0
        %1373 = vmatpush1.xpose.msra.mxu0 0.0
        %1374 = vmatprep.subr.mxu0 0.0
        %1375 = vmatpush1.xpose.msra.mxu0 0.0
        %1376 = vmatprep.subr.mxu0 0.0
        %1377 = vmatpush1.xpose.msra.mxu0 0.0
        %1378 = vmatprep.subr.mxu0 0.0
        %1379 = vmatpush1.xpose.msra.mxu0 0.0
        %1380 = vmatprep.subr.mxu0 0.0
        %1381 = vmatpush1.xpose.msra.mxu0 0.0
        %1382 = vmatprep.subr.mxu0 0.0
        %1383 = vmatpush1.xpose.msra.mxu0 0.0
        %1384 = vmatprep.subr.mxu0 0.0
        %1385 = vmatpush1.xpose.msra.mxu0 0.0
        %1386 = vmatprep.subr.mxu0 0.0
        %1387 = vmatpush1.xpose.msra.mxu0 0.0
        %1388 = vmatprep.subr.mxu0 0.0
        %1389 = vmatpush1.xpose.msra.mxu0 0.0
        %1390 = vmatprep.mubr.f32.mxu0 0.0
        %1391 = vmatmul.mubr.f32.gmra.mrb[0].mxu0 %v1321
        %v1392 = vpop.f32.mrb[0].mxu0
        %v1393 = vadd.f32 0.0, %v1392
        %v1394 = vpop.f32.mrb[0].mxu0
        %1395 = vdwg.mxu0
        %vm1396 = vcmask 64512
        %v1397 = vsel %vm1396, %v1317, -inf
        %1398 = vmax.xlane.f32.xlu0 %v1397
        %v1399 = vpop.xlane.xlu0 %1398
        %v1400 = vsel %vm1396, %v1393, -inf
        %1401 = vmax.xlane.f32.xlu0 %v1400
        %v1402 = vpop.xlane.xlu0 %1401
        %v1403 = vsub.f32 %v1317, %v1399
        %v1404 = vsub.f32 %v1393, %v1402
        %v1405 = vmul.f32 %v1403, 1.442695
        %v1406 = vpow.pop %v1405
        %v1407 = vmul.f32 %v1404, 1.442695
        %v1408 = vpow.pop %v1407
        %v1409 = vsel %vm1396, %v1406, 0.0
        %1410 = vadd.xlane.f32.xlu0 %v1409
        %v1411 = vpop.xlane.xlu0 %1410
        %v1412 = vsel %vm1396, %v1408, 0.0
        %1413 = vadd.xlane.f32.xlu0 %v1412
        %v1414 = vpop.xlane.xlu0 %1413
        %v1415 = vrcp.pop %v1411
        %v1416 = vmul.f32 %v1406, %v1415
        %v1417 = vrcp.pop %v1414
        %v1418 = vmul.f32 %v1408, %v1417
        %v1420 = vsel %vm1396, %v1416, 0
        %1422 = vmatprep.subr.mxu0 0.0
        %1423 = vmatpush1.msra.mxu0 %v1235
        %1424 = vmatprep.subr.mxu0 0.0
        %1425 = vmatpush1.msra.mxu0 0.0
        %1426 = vmatprep.subr.mxu0 0.0
        %1427 = vmatpush1.msra.mxu0 0.0
        %1428 = vmatprep.subr.mxu0 0.0
        %1429 = vmatpush1.msra.mxu0 0.0
        %1430 = vmatprep.subr.mxu0 0.0
        %1431 = vmatpush1.msra.mxu0 0.0
        %1432 = vmatprep.subr.mxu0 0.0
        %1433 = vmatpush1.msra.mxu0 0.0
        %1434 = vmatprep.subr.mxu0 0.0
        %1435 = vmatpush1.msra.mxu0 0.0
        %1436 = vmatprep.subr.mxu0 0.0
        %1437 = vmatpush1.msra.mxu0 0.0
        %1438 = vmatprep.subr.mxu0 0.0
        %1439 = vmatpush1.msra.mxu0 0.0
        %1440 = vmatprep.subr.mxu0 0.0
        %1441 = vmatpush1.msra.mxu0 0.0
        %1442 = vmatprep.subr.mxu0 0.0
        %1443 = vmatpush1.msra.mxu0 0.0
        %1444 = vmatprep.subr.mxu0 0.0
        %1445 = vmatpush1.msra.mxu0 0.0
        %1446 = vmatprep.subr.mxu0 0.0
        %1447 = vmatpush1.msra.mxu0 0.0
        %1448 = vmatprep.subr.mxu0 0.0
        %1449 = vmatpush1.msra.mxu0 0.0
        %1450 = vmatprep.subr.mxu0 0.0
        %1451 = vmatpush1.msra.mxu0 0.0
        %1452 = vmatprep.subr.mxu0 0.0
        %1453 = vmatpush1.msra.mxu0 0.0
        %1454 = vmatprep.subr.mxu0 0.0
        %1455 = vmatpush1.msra.mxu0 0.0
        %1456 = vmatprep.subr.mxu0 0.0
        %1457 = vmatpush1.msra.mxu0 0.0
        %1458 = vmatprep.subr.mxu0 0.0
        %1459 = vmatpush1.msra.mxu0 0.0
        %1460 = vmatprep.subr.mxu0 0.0
        %1461 = vmatpush1.msra.mxu0 0.0
        %1462 = vmatprep.subr.mxu0 0.0
        %1463 = vmatpush1.msra.mxu0 0.0
        %1464 = vmatprep.subr.mxu0 0.0
        %1465 = vmatpush1.msra.mxu0 0.0
        %1466 = vmatprep.subr.mxu0 0.0
        %1467 = vmatpush1.msra.mxu0 0.0
        %1468 = vmatprep.subr.mxu0 0.0
        %1469 = vmatpush1.msra.mxu0 0.0
        %1470 = vmatprep.subr.mxu0 0.0
        %1471 = vmatpush1.msra.mxu0 0.0
        %1472 = vmatprep.subr.mxu0 0.0
        %1473 = vmatpush1.msra.mxu0 0.0
        %1474 = vmatprep.subr.mxu0 0.0
        %1475 = vmatpush1.msra.mxu0 0.0
        %1476 = vmatprep.subr.mxu0 0.0
        %1477 = vmatpush1.msra.mxu0 0.0
        %1478 = vmatprep.subr.mxu0 0.0
        %1479 = vmatpush1.msra.mxu0 0.0
        %1480 = vmatprep.subr.mxu0 0.0
        %1481 = vmatpush1.msra.mxu0 0.0
        %1482 = vmatprep.subr.mxu0 0.0
        %1483 = vmatpush1.msra.mxu0 0.0
        %1484 = vmatprep.subr.mxu0 0.0
        %1485 = vmatpush1.msra.mxu0 0.0
        %1486 = vmatprep.mubr.f32.mxu0 0.0
        %1487 = vmatmul.mubr.f32.gmra.mrb[0].mxu0 %v1420
        %v1488 = vpop.f32.mrb[0].mxu0
        %v1489 = vadd.f32 0.0, %v1488
        %v1490 = vpop.f32.mrb[0].mxu0
        %1491 = vdwg.mxu0
        %v1493 = vsel %vm1396, %v1418, 0
        %1495 = vmatprep.subr.mxu0 0.0
        %1496 = vmatpush1.msra.mxu0 %v1240
        %1497 = vmatprep.subr.mxu0 0.0
        %1498 = vmatpush1.msra.mxu0 0.0
        %1499 = vmatprep.subr.mxu0 0.0
        %1500 = vmatpush1.msra.mxu0 0.0
        %1501 = vmatprep.subr.mxu0 0.0
        %1502 = vmatpush1.msra.mxu0 0.0
        %1503 = vmatprep.subr.mxu0 0.0
        %1504 = vmatpush1.msra.mxu0 0.0
        %1505 = vmatprep.subr.mxu0 0.0
        %1506 = vmatpush1.msra.mxu0 0.0
        %1507 = vmatprep.subr.mxu0 0.0
        %1508 = vmatpush1.msra.mxu0 0.0
        %1509 = vmatprep.subr.mxu0 0.0
        %1510 = vmatpush1.msra.mxu0 0.0
        %1511 = vmatprep.subr.mxu0 0.0
        %1512 = vmatpush1.msra.mxu0 0.0
        %1513 = vmatprep.subr.mxu0 0.0
        %1514 = vmatpush1.msra.mxu0 0.0
        %1515 = vmatprep.subr.mxu0 0.0
        %1516 = vmatpush1.msra.mxu0 0.0
        %1517 = vmatprep.subr.mxu0 0.0
        %1518 = vmatpush1.msra.mxu0 0.0
        %1519 = vmatprep.subr.mxu0 0.0
        %1520 = vmatpush1.msra.mxu0 0.0
        %1521 = vmatprep.subr.mxu0 0.0
        %1522 = vmatpush1.msra.mxu0 0.0
        %1523 = vmatprep.subr.mxu0 0.0
        %1524 = vmatpush1.msra.mxu0 0.0
        %1525 = vmatprep.subr.mxu0 0.0
        %1526 = vmatpush1.msra.mxu0 0.0
        %1527 = vmatprep.subr.mxu0 0.0
        %1528 = vmatpush1.msra.mxu0 0.0
        %1529 = vmatprep.subr.mxu0 0.0
        %1530 = vmatpush1.msra.mxu0 0.0
        %1531 = vmatprep.subr.mxu0 0.0
        %1532 = vmatpush1.msra.mxu0 0.0
        %1533 = vmatprep.subr.mxu0 0.0
        %1534 = vmatpush1.msra.mxu0 0.0
        %1535 = vmatprep.subr.mxu0 0.0
        %1536 = vmatpush1.msra.mxu0 0.0
        %1537 = vmatprep.subr.mxu0 0.0
        %1538 = vmatpush1.msra.mxu0 0.0
        %1539 = vmatprep.subr.mxu0 0.0
        %1540 = vmatpush1.msra.mxu0 0.0
        %1541 = vmatprep.subr.mxu0 0.0
        %1542 = vmatpush1.msra.mxu0 0.0
        %1543 = vmatprep.subr.mxu0 0.0
        %1544 = vmatpush1.msra.mxu0 0.0
        %1545 = vmatprep.subr.mxu0 0.0
        %1546 = vmatpush1.msra.mxu0 0.0
        %1547 = vmatprep.subr.mxu0 0.0
        %1548 = vmatpush1.msra.mxu0 0.0
        %1549 = vmatprep.subr.mxu0 0.0
        %1550 = vmatpush1.msra.mxu0 0.0
        %1551 = vmatprep.subr.mxu0 0.0
        %1552 = vmatpush1.msra.mxu0 0.0
        %1553 = vmatprep.subr.mxu0 0.0
        %1554 = vmatpush1.msra.mxu0 0.0
        %1555 = vmatprep.subr.mxu0 0.0
        %1556 = vmatpush1.msra.mxu0 0.0
        %1557 = vmatprep.subr.mxu0 0.0
        %1558 = vmatpush1.msra.mxu0 0.0
        %1559 = vmatprep.mubr.f32.mxu0 0.0
        %1560 = vmatmul.mubr.f32.gmra.mrb[0].mxu0 %v1493
        %v1561 = vpop.f32.mrb[0].mxu0
        %v1562 = vadd.f32 0.0, %v1561
        %v1563 = vpop.f32.mrb[0].mxu0
        %1564 = vdwg.mxu0
        %1565 = vrot.lane.b32.xlu0 %v1083, 96
        %v1566 = vpop.permute.xlu0 %1565
        %1567 = vrot.lane.b32.xlu0 %v1156, 96
        %v1568 = vpop.permute.xlu0 %1567
        %v1569 = vsel %vm1243, %v1566, 0
        %v1571 = vsel %vm1243, %v1568, 0
        %1573 = vmatprep.subr.mxu0 0.0
        %1574 = vmatpush1.xpose.msra.mxu0 %v1571
        %1575 = vmatprep.subr.mxu0 0.0
        %1576 = vmatpush1.xpose.msra.mxu0 0.0
        %1577 = vmatprep.subr.mxu0 0.0
        %1578 = vmatpush1.xpose.msra.mxu0 0.0
        %1579 = vmatprep.subr.mxu0 0.0
        %1580 = vmatpush1.xpose.msra.mxu0 0.0
        %1581 = vmatprep.subr.mxu0 0.0
        %1582 = vmatpush1.xpose.msra.mxu0 0.0
        %1583 = vmatprep.subr.mxu0 0.0
        %1584 = vmatpush1.xpose.msra.mxu0 0.0
        %1585 = vmatprep.subr.mxu0 0.0
        %1586 = vmatpush1.xpose.msra.mxu0 0.0
        %1587 = vmatprep.subr.mxu0 0.0
        %1588 = vmatpush1.xpose.msra.mxu0 0.0
        %1589 = vmatprep.subr.mxu0 0.0
        %1590 = vmatpush1.xpose.msra.mxu0 0.0
        %1591 = vmatprep.subr.mxu0 0.0
        %1592 = vmatpush1.xpose.msra.mxu0 0.0
        %1593 = vmatprep.subr.mxu0 0.0
        %1594 = vmatpush1.xpose.msra.mxu0 0.0
        %1595 = vmatprep.subr.mxu0 0.0
        %1596 = vmatpush1.xpose.msra.mxu0 0.0
        %1597 = vmatprep.subr.mxu0 0.0
        %1598 = vmatpush1.xpose.msra.mxu0 0.0
        %1599 = vmatprep.subr.mxu0 0.0
        %1600 = vmatpush1.xpose.msra.mxu0 0.0
        %1601 = vmatprep.subr.mxu0 0.0
        %1602 = vmatpush1.xpose.msra.mxu0 0.0
        %1603 = vmatprep.subr.mxu0 0.0
        %1604 = vmatpush1.xpose.msra.mxu0 0.0
        %1605 = vmatprep.subr.mxu0 0.0
        %1606 = vmatpush1.xpose.msra.mxu0 0.0
        %1607 = vmatprep.subr.mxu0 0.0
        %1608 = vmatpush1.xpose.msra.mxu0 0.0
        %1609 = vmatprep.subr.mxu0 0.0
        %1610 = vmatpush1.xpose.msra.mxu0 0.0
        %1611 = vmatprep.subr.mxu0 0.0
        %1612 = vmatpush1.xpose.msra.mxu0 0.0
        %1613 = vmatprep.subr.mxu0 0.0
        %1614 = vmatpush1.xpose.msra.mxu0 0.0
        %1615 = vmatprep.subr.mxu0 0.0
        %1616 = vmatpush1.xpose.msra.mxu0 0.0
        %1617 = vmatprep.subr.mxu0 0.0
        %1618 = vmatpush1.xpose.msra.mxu0 0.0
        %1619 = vmatprep.subr.mxu0 0.0
        %1620 = vmatpush1.xpose.msra.mxu0 0.0
        %1621 = vmatprep.subr.mxu0 0.0
        %1622 = vmatpush1.xpose.msra.mxu0 0.0
        %1623 = vmatprep.subr.mxu0 0.0
        %1624 = vmatpush1.xpose.msra.mxu0 0.0
        %1625 = vmatprep.subr.mxu0 0.0
        %1626 = vmatpush1.xpose.msra.mxu0 0.0
        %1627 = vmatprep.subr.mxu0 0.0
        %1628 = vmatpush1.xpose.msra.mxu0 0.0
        %1629 = vmatprep.subr.mxu0 0.0
        %1630 = vmatpush1.xpose.msra.mxu0 0.0
        %1631 = vmatprep.subr.mxu0 0.0
        %1632 = vmatpush1.xpose.msra.mxu0 0.0
        %1633 = vmatprep.subr.mxu0 0.0
        %1634 = vmatpush1.xpose.msra.mxu0 0.0
        %1635 = vmatprep.subr.mxu0 0.0
        %1636 = vmatpush1.xpose.msra.mxu0 0.0
        %1637 = vmatprep.mubr.f32.mxu0 0.0
        %1638 = vmatmul.mubr.f32.gmra.mrb[0].mxu0 %v1569
        %v1639 = vpop.f32.mrb[0].mxu0
        %v1640 = vadd.f32 0.0, %v1639
        %v1641 = vpop.f32.mrb[0].mxu0
        %1642 = vdwg.mxu0
        %1643 = vrot.lane.b32.xlu0 %v1084, 96
        %v1644 = vpop.permute.xlu0 %1643
        %1645 = vrot.lane.b32.xlu0 %v1161, 96
        %v1646 = vpop.permute.xlu0 %1645
        %v1647 = vsel %vm1243, %v1644, 0
        %v1649 = vsel %vm1243, %v1646, 0
        %1651 = vmatprep.subr.mxu0 0.0
        %1652 = vmatpush1.xpose.msra.mxu0 %v1649
        %1653 = vmatprep.subr.mxu0 0.0
        %1654 = vmatpush1.xpose.msra.mxu0 0.0
        %1655 = vmatprep.subr.mxu0 0.0
        %1656 = vmatpush1.xpose.msra.mxu0 0.0
        %1657 = vmatprep.subr.mxu0 0.0
        %1658 = vmatpush1.xpose.msra.mxu0 0.0
        %1659 = vmatprep.subr.mxu0 0.0
        %1660 = vmatpush1.xpose.msra.mxu0 0.0
        %1661 = vmatprep.subr.mxu0 0.0
        %1662 = vmatpush1.xpose.msra.mxu0 0.0
        %1663 = vmatprep.subr.mxu0 0.0
        %1664 = vmatpush1.xpose.msra.mxu0 0.0
        %1665 = vmatprep.subr.mxu0 0.0
        %1666 = vmatpush1.xpose.msra.mxu0 0.0
        %1667 = vmatprep.subr.mxu0 0.0
        %1668 = vmatpush1.xpose.msra.mxu0 0.0
        %1669 = vmatprep.subr.mxu0 0.0
        %1670 = vmatpush1.xpose.msra.mxu0 0.0
        %1671 = vmatprep.subr.mxu0 0.0
        %1672 = vmatpush1.xpose.msra.mxu0 0.0
        %1673 = vmatprep.subr.mxu0 0.0
        %1674 = vmatpush1.xpose.msra.mxu0 0.0
        %1675 = vmatprep.subr.mxu0 0.0
        %1676 = vmatpush1.xpose.msra.mxu0 0.0
        %1677 = vmatprep.subr.mxu0 0.0
        %1678 = vmatpush1.xpose.msra.mxu0 0.0
        %1679 = vmatprep.subr.mxu0 0.0
        %1680 = vmatpush1.xpose.msra.mxu0 0.0
        %1681 = vmatprep.subr.mxu0 0.0
        %1682 = vmatpush1.xpose.msra.mxu0 0.0
        %1683 = vmatprep.subr.mxu0 0.0
        %1684 = vmatpush1.xpose.msra.mxu0 0.0
        %1685 = vmatprep.subr.mxu0 0.0
        %1686 = vmatpush1.xpose.msra.mxu0 0.0
        %1687 = vmatprep.subr.mxu0 0.0
        %1688 = vmatpush1.xpose.msra.mxu0 0.0
        %1689 = vmatprep.subr.mxu0 0.0
        %1690 = vmatpush1.xpose.msra.mxu0 0.0
        %1691 = vmatprep.subr.mxu0 0.0
        %1692 = vmatpush1.xpose.msra.mxu0 0.0
        %1693 = vmatprep.subr.mxu0 0.0
        %1694 = vmatpush1.xpose.msra.mxu0 0.0
        %1695 = vmatprep.subr.mxu0 0.0
        %1696 = vmatpush1.xpose.msra.mxu0 0.0
        %1697 = vmatprep.subr.mxu0 0.0
        %1698 = vmatpush1.xpose.msra.mxu0 0.0
        %1699 = vmatprep.subr.mxu0 0.0
        %1700 = vmatpush1.xpose.msra.mxu0 0.0
        %1701 = vmatprep.subr.mxu0 0.0
        %1702 = vmatpush1.xpose.msra.mxu0 0.0
        %1703 = vmatprep.subr.mxu0 0.0
        %1704 = vmatpush1.xpose.msra.mxu0 0.0
        %1705 = vmatprep.subr.mxu0 0.0
        %1706 = vmatpush1.xpose.msra.mxu0 0.0
        %1707 = vmatprep.subr.mxu0 0.0
        %1708 = vmatpush1.xpose.msra.mxu0 0.0
        %1709 = vmatprep.subr.mxu0 0.0
        %1710 = vmatpush1.xpose.msra.mxu0 0.0
        %1711 = vmatprep.subr.mxu0 0.0
        %1712 = vmatpush1.xpose.msra.mxu0 0.0
        %1713 = vmatprep.subr.mxu0 0.0
        %1714 = vmatpush1.xpose.msra.mxu0 0.0
        %1715 = vmatprep.mubr.f32.mxu0 0.0
        %1716 = vmatmul.mubr.f32.gmra.mrb[0].mxu0 %v1647
        %v1717 = vpop.f32.mrb[0].mxu0
        %v1718 = vadd.f32 0.0, %v1717
        %v1719 = vpop.f32.mrb[0].mxu0
        %1720 = vdwg.mxu0
        %v1721 = vsel %vm1396, %v1640, -inf
        %1722 = vmax.xlane.f32.xlu0 %v1721
        %v1723 = vpop.xlane.xlu0 %1722
        %v1724 = vsel %vm1396, %v1718, -inf
        %1725 = vmax.xlane.f32.xlu0 %v1724
        %v1726 = vpop.xlane.xlu0 %1725
        %v1727 = vsub.f32 %v1640, %v1723
        %v1728 = vsub.f32 %v1718, %v1726
        %v1729 = vmul.f32 %v1727, 1.442695
        %v1730 = vpow.pop %v1729
        %v1731 = vmul.f32 %v1728, 1.442695
        %v1732 = vpow.pop %v1731
        %v1733 = vsel %vm1396, %v1730, 0.0
        %1734 = vadd.xlane.f32.xlu0 %v1733
        %v1735 = vpop.xlane.xlu0 %1734
        %v1736 = vsel %vm1396, %v1732, 0.0
        %1737 = vadd.xlane.f32.xlu0 %v1736
        %v1738 = vpop.xlane.xlu0 %1737
        %v1739 = vrcp.pop %v1735
        %v1740 = vmul.f32 %v1730, %v1739
        %v1741 = vrcp.pop %v1738
        %v1742 = vmul.f32 %v1732, %v1741
        %1744 = vrot.lane.b32.xlu0 %v1235, 96
        %v1745 = vpop.permute.xlu0 %1744
        %v1748 = vsel %vm1396, %v1740, 0
        %1750 = vmatprep.subr.mxu0 0.0
        %1751 = vmatpush1.msra.mxu0 %v1745
        %1752 = vmatprep.subr.mxu0 0.0
        %1753 = vmatpush1.msra.mxu0 0.0
        %1754 = vmatprep.subr.mxu0 0.0
        %1755 = vmatpush1.msra.mxu0 0.0
        %1756 = vmatprep.subr.mxu0 0.0
        %1757 = vmatpush1.msra.mxu0 0.0
        %1758 = vmatprep.subr.mxu0 0.0
        %1759 = vmatpush1.msra.mxu0 0.0
        %1760 = vmatprep.subr.mxu0 0.0
        %1761 = vmatpush1.msra.mxu0 0.0
        %1762 = vmatprep.subr.mxu0 0.0
        %1763 = vmatpush1.msra.mxu0 0.0
        %1764 = vmatprep.subr.mxu0 0.0
        %1765 = vmatpush1.msra.mxu0 0.0
        %1766 = vmatprep.subr.mxu0 0.0
        %1767 = vmatpush1.msra.mxu0 0.0
        %1768 = vmatprep.subr.mxu0 0.0
        %1769 = vmatpush1.msra.mxu0 0.0
        %1770 = vmatprep.subr.mxu0 0.0
        %1771 = vmatpush1.msra.mxu0 0.0
        %1772 = vmatprep.subr.mxu0 0.0
        %1773 = vmatpush1.msra.mxu0 0.0
        %1774 = vmatprep.subr.mxu0 0.0
        %1775 = vmatpush1.msra.mxu0 0.0
        %1776 = vmatprep.subr.mxu0 0.0
        %1777 = vmatpush1.msra.mxu0 0.0
        %1778 = vmatprep.subr.mxu0 0.0
        %1779 = vmatpush1.msra.mxu0 0.0
        %1780 = vmatprep.subr.mxu0 0.0
        %1781 = vmatpush1.msra.mxu0 0.0
        %1782 = vmatprep.subr.mxu0 0.0
        %1783 = vmatpush1.msra.mxu0 0.0
        %1784 = vmatprep.subr.mxu0 0.0
        %1785 = vmatpush1.msra.mxu0 0.0
        %1786 = vmatprep.subr.mxu0 0.0
        %1787 = vmatpush1.msra.mxu0 0.0
        %1788 = vmatprep.subr.mxu0 0.0
        %1789 = vmatpush1.msra.mxu0 0.0
        %1790 = vmatprep.subr.mxu0 0.0
        %1791 = vmatpush1.msra.mxu0 0.0
        %1792 = vmatprep.subr.mxu0 0.0
        %1793 = vmatpush1.msra.mxu0 0.0
        %1794 = vmatprep.subr.mxu0 0.0
        %1795 = vmatpush1.msra.mxu0 0.0
        %1796 = vmatprep.subr.mxu0 0.0
        %1797 = vmatpush1.msra.mxu0 0.0
        %1798 = vmatprep.subr.mxu0 0.0
        %1799 = vmatpush1.msra.mxu0 0.0
        %1800 = vmatprep.subr.mxu0 0.0
        %1801 = vmatpush1.msra.mxu0 0.0
        %1802 = vmatprep.subr.mxu0 0.0
        %1803 = vmatpush1.msra.mxu0 0.0
        %1804 = vmatprep.subr.mxu0 0.0
        %1805 = vmatpush1.msra.mxu0 0.0
        %1806 = vmatprep.subr.mxu0 0.0
        %1807 = vmatpush1.msra.mxu0 0.0
        %1808 = vmatprep.subr.mxu0 0.0
        %1809 = vmatpush1.msra.mxu0 0.0
        %1810 = vmatprep.subr.mxu0 0.0
        %1811 = vmatpush1.msra.mxu0 0.0
        %1812 = vmatprep.subr.mxu0 0.0
        %1813 = vmatpush1.msra.mxu0 0.0
        %1814 = vmatprep.mubr.f32.mxu0 0.0
        %1815 = vmatmul.mubr.f32.gmra.mrb[0].mxu0 %v1748
        %v1816 = vpop.f32.mrb[0].mxu0
        %v1817 = vadd.f32 0.0, %v1816
        %v1818 = vpop.f32.mrb[0].mxu0
        %1819 = vdwg.mxu0
        %1821 = vrot.lane.b32.xlu0 %v1240, 96
        %v1822 = vpop.permute.xlu0 %1821
        %v1825 = vsel %vm1396, %v1742, 0
        %1827 = vmatprep.subr.mxu0 0.0
        %1828 = vmatpush1.msra.mxu0 %v1822
        %1829 = vmatprep.subr.mxu0 0.0
        %1830 = vmatpush1.msra.mxu0 0.0
        %1831 = vmatprep.subr.mxu0 0.0
        %1832 = vmatpush1.msra.mxu0 0.0
        %1833 = vmatprep.subr.mxu0 0.0
        %1834 = vmatpush1.msra.mxu0 0.0
        %1835 = vmatprep.subr.mxu0 0.0
        %1836 = vmatpush1.msra.mxu0 0.0
        %1837 = vmatprep.subr.mxu0 0.0
        %1838 = vmatpush1.msra.mxu0 0.0
        %1839 = vmatprep.subr.mxu0 0.0
        %1840 = vmatpush1.msra.mxu0 0.0
        %1841 = vmatprep.subr.mxu0 0.0
        %1842 = vmatpush1.msra.mxu0 0.0
        %1843 = vmatprep.subr.mxu0 0.0
        %1844 = vmatpush1.msra.mxu0 0.0
        %1845 = vmatprep.subr.mxu0 0.0
        %1846 = vmatpush1.msra.mxu0 0.0
        %1847 = vmatprep.subr.mxu0 0.0
        %1848 = vmatpush1.msra.mxu0 0.0
        %1849 = vmatprep.subr.mxu0 0.0
        %1850 = vmatpush1.msra.mxu0 0.0
        %1851 = vmatprep.subr.mxu0 0.0
        %1852 = vmatpush1.msra.mxu0 0.0
        %1853 = vmatprep.subr.mxu0 0.0
        %1854 = vmatpush1.msra.mxu0 0.0
        %1855 = vmatprep.subr.mxu0 0.0
        %1856 = vmatpush1.msra.mxu0 0.0
        %1857 = vmatprep.subr.mxu0 0.0
        %1858 = vmatpush1.msra.mxu0 0.0
        %1859 = vmatprep.subr.mxu0 0.0
        %1860 = vmatpush1.msra.mxu0 0.0
        %1861 = vmatprep.subr.mxu0 0.0
        %1862 = vmatpush1.msra.mxu0 0.0
        %1863 = vmatprep.subr.mxu0 0.0
        %1864 = vmatpush1.msra.mxu0 0.0
        %1865 = vmatprep.subr.mxu0 0.0
        %1866 = vmatpush1.msra.mxu0 0.0
        %1867 = vmatprep.subr.mxu0 0.0
        %1868 = vmatpush1.msra.mxu0 0.0
        %1869 = vmatprep.subr.mxu0 0.0
        %1870 = vmatpush1.msra.mxu0 0.0
        %1871 = vmatprep.subr.mxu0 0.0
        %1872 = vmatpush1.msra.mxu0 0.0
        %1873 = vmatprep.subr.mxu0 0.0
        %1874 = vmatpush1.msra.mxu0 0.0
        %1875 = vmatprep.subr.mxu0 0.0
        %1876 = vmatpush1.msra.mxu0 0.0
        %1877 = vmatprep.subr.mxu0 0.0
        %1878 = vmatpush1.msra.mxu0 0.0
        %1879 = vmatprep.subr.mxu0 0.0
        %1880 = vmatpush1.msra.mxu0 0.0
        %1881 = vmatprep.subr.mxu0 0.0
        %1882 = vmatpush1.msra.mxu0 0.0
        %1883 = vmatprep.subr.mxu0 0.0
        %1884 = vmatpush1.msra.mxu0 0.0
        %1885 = vmatprep.subr.mxu0 0.0
        %1886 = vmatpush1.msra.mxu0 0.0
        %1887 = vmatprep.subr.mxu0 0.0
        %1888 = vmatpush1.msra.mxu0 0.0
        %1889 = vmatprep.subr.mxu0 0.0
        %1890 = vmatpush1.msra.mxu0 0.0
        %1891 = vmatprep.mubr.f32.mxu0 0.0
        %1892 = vmatmul.mubr.f32.gmra.mrb[0].mxu0 %v1825
        %v1893 = vpop.f32.mrb[0].mxu0
        %v1894 = vadd.f32 0.0, %v1893
        %v1895 = vpop.f32.mrb[0].mxu0
        %1896 = vdwg.mxu0
        %1897 = vrot.lane.b32.xlu0 %v1083, 64
        %v1898 = vpop.permute.xlu0 %1897
        %1899 = vrot.lane.b32.xlu0 %v1156, 64
        %v1900 = vpop.permute.xlu0 %1899
        %v1901 = vsel %vm1243, %v1898, 0
        %v1903 = vsel %vm1243, %v1900, 0
        %1905 = vmatprep.subr.mxu0 0.0
        %1906 = vmatpush1.xpose.msra.mxu0 %v1903
        %1907 = vmatprep.subr.mxu0 0.0
        %1908 = vmatpush1.xpose.msra.mxu0 0.0
        %1909 = vmatprep.subr.mxu0 0.0
        %1910 = vmatpush1.xpose.msra.mxu0 0.0
        %1911 = vmatprep.subr.mxu0 0.0
        %1912 = vmatpush1.xpose.msra.mxu0 0.0
        %1913 = vmatprep.subr.mxu0 0.0
        %1914 = vmatpush1.xpose.msra.mxu0 0.0
        %1915 = vmatprep.subr.mxu0 0.0
        %1916 = vmatpush1.xpose.msra.mxu0 0.0
        %1917 = vmatprep.subr.mxu0 0.0
        %1918 = vmatpush1.xpose.msra.mxu0 0.0
        %1919 = vmatprep.subr.mxu0 0.0
        %1920 = vmatpush1.xpose.msra.mxu0 0.0
        %1921 = vmatprep.subr.mxu0 0.0
        %1922 = vmatpush1.xpose.msra.mxu0 0.0
        %1923 = vmatprep.subr.mxu0 0.0
        %1924 = vmatpush1.xpose.msra.mxu0 0.0
        %1925 = vmatprep.subr.mxu0 0.0
        %1926 = vmatpush1.xpose.msra.mxu0 0.0
        %1927 = vmatprep.subr.mxu0 0.0
        %1928 = vmatpush1.xpose.msra.mxu0 0.0
        %1929 = vmatprep.subr.mxu0 0.0
        %1930 = vmatpush1.xpose.msra.mxu0 0.0
        %1931 = vmatprep.subr.mxu0 0.0
        %1932 = vmatpush1.xpose.msra.mxu0 0.0
        %1933 = vmatprep.subr.mxu0 0.0
        %1934 = vmatpush1.xpose.msra.mxu0 0.0
        %1935 = vmatprep.subr.mxu0 0.0
        %1936 = vmatpush1.xpose.msra.mxu0 0.0
        %1937 = vmatprep.subr.mxu0 0.0
        %1938 = vmatpush1.xpose.msra.mxu0 0.0
        %1939 = vmatprep.subr.mxu0 0.0
        %1940 = vmatpush1.xpose.msra.mxu0 0.0
        %1941 = vmatprep.subr.mxu0 0.0
        %1942 = vmatpush1.xpose.msra.mxu0 0.0
        %1943 = vmatprep.subr.mxu0 0.0
        %1944 = vmatpush1.xpose.msra.mxu0 0.0
        %1945 = vmatprep.subr.mxu0 0.0
        %1946 = vmatpush1.xpose.msra.mxu0 0.0
        %1947 = vmatprep.subr.mxu0 0.0
        %1948 = vmatpush1.xpose.msra.mxu0 0.0
        %1949 = vmatprep.subr.mxu0 0.0
        %1950 = vmatpush1.xpose.msra.mxu0 0.0
        %1951 = vmatprep.subr.mxu0 0.0
        %1952 = vmatpush1.xpose.msra.mxu0 0.0
        %1953 = vmatprep.subr.mxu0 0.0
        %1954 = vmatpush1.xpose.msra.mxu0 0.0
        %1955 = vmatprep.subr.mxu0 0.0
        %1956 = vmatpush1.xpose.msra.mxu0 0.0
        %1957 = vmatprep.subr.mxu0 0.0
        %1958 = vmatpush1.xpose.msra.mxu0 0.0
        %1959 = vmatprep.subr.mxu0 0.0
        %1960 = vmatpush1.xpose.msra.mxu0 0.0
        %1961 = vmatprep.subr.mxu0 0.0
        %1962 = vmatpush1.xpose.msra.mxu0 0.0
        %1963 = vmatprep.subr.mxu0 0.0
        %1964 = vmatpush1.xpose.msra.mxu0 0.0
        %1965 = vmatprep.subr.mxu0 0.0
        %1966 = vmatpush1.xpose.msra.mxu0 0.0
        %1967 = vmatprep.subr.mxu0 0.0
        %1968 = vmatpush1.xpose.msra.mxu0 0.0
        %1969 = vmatprep.mubr.f32.mxu0 0.0
        %1970 = vmatmul.mubr.f32.gmra.mrb[0].mxu0 %v1901
        %v1971 = vpop.f32.mrb[0].mxu0
        %v1972 = vadd.f32 0.0, %v1971
        %v1973 = vpop.f32.mrb[0].mxu0
        %1974 = vdwg.mxu0
        %1975 = vrot.lane.b32.xlu0 %v1084, 64
        %v1976 = vpop.permute.xlu0 %1975
        %1977 = vrot.lane.b32.xlu0 %v1161, 64
        %v1978 = vpop.permute.xlu0 %1977
        %v1979 = vsel %vm1243, %v1976, 0
        %v1981 = vsel %vm1243, %v1978, 0
        %1983 = vmatprep.subr.mxu0 0.0
        %1984 = vmatpush1.xpose.msra.mxu0 %v1981
        %1985 = vmatprep.subr.mxu0 0.0
        %1986 = vmatpush1.xpose.msra.mxu0 0.0
        %1987 = vmatprep.subr.mxu0 0.0
        %1988 = vmatpush1.xpose.msra.mxu0 0.0
        %1989 = vmatprep.subr.mxu0 0.0
        %1990 = vmatpush1.xpose.msra.mxu0 0.0
        %1991 = vmatprep.subr.mxu0 0.0
        %1992 = vmatpush1.xpose.msra.mxu0 0.0
        %1993 = vmatprep.subr.mxu0 0.0
        %1994 = vmatpush1.xpose.msra.mxu0 0.0
        %1995 = vmatprep.subr.mxu0 0.0
        %1996 = vmatpush1.xpose.msra.mxu0 0.0
        %1997 = vmatprep.subr.mxu0 0.0
        %1998 = vmatpush1.xpose.msra.mxu0 0.0
        %1999 = vmatprep.subr.mxu0 0.0
        %2000 = vmatpush1.xpose.msra.mxu0 0.0
        %2001 = vmatprep.subr.mxu0 0.0
        %2002 = vmatpush1.xpose.msra.mxu0 0.0
        %2003 = vmatprep.subr.mxu0 0.0
        %2004 = vmatpush1.xpose.msra.mxu0 0.0
        %2005 = vmatprep.subr.mxu0 0.0
        %2006 = vmatpush1.xpose.msra.mxu0 0.0
        %2007 = vmatprep.subr.mxu0 0.0
        %2008 = vmatpush1.xpose.msra.mxu0 0.0
        %2009 = vmatprep.subr.mxu0 0.0
        %2010 = vmatpush1.xpose.msra.mxu0 0.0
        %2011 = vmatprep.subr.mxu0 0.0
        %2012 = vmatpush1.xpose.msra.mxu0 0.0
        %2013 = vmatprep.subr.mxu0 0.0
        %2014 = vmatpush1.xpose.msra.mxu0 0.0
        %2015 = vmatprep.subr.mxu0 0.0
        %2016 = vmatpush1.xpose.msra.mxu0 0.0
        %2017 = vmatprep.subr.mxu0 0.0
        %2018 = vmatpush1.xpose.msra.mxu0 0.0
        %2019 = vmatprep.subr.mxu0 0.0
        %2020 = vmatpush1.xpose.msra.mxu0 0.0
        %2021 = vmatprep.subr.mxu0 0.0
        %2022 = vmatpush1.xpose.msra.mxu0 0.0
        %2023 = vmatprep.subr.mxu0 0.0
        %2024 = vmatpush1.xpose.msra.mxu0 0.0
        %2025 = vmatprep.subr.mxu0 0.0
        %2026 = vmatpush1.xpose.msra.mxu0 0.0
        %2027 = vmatprep.subr.mxu0 0.0
        %2028 = vmatpush1.xpose.msra.mxu0 0.0
        %2029 = vmatprep.subr.mxu0 0.0
        %2030 = vmatpush1.xpose.msra.mxu0 0.0
        %2031 = vmatprep.subr.mxu0 0.0
        %2032 = vmatpush1.xpose.msra.mxu0 0.0
        %2033 = vmatprep.subr.mxu0 0.0
        %2034 = vmatpush1.xpose.msra.mxu0 0.0
        %2035 = vmatprep.subr.mxu0 0.0
        %2036 = vmatpush1.xpose.msra.mxu0 0.0
        %2037 = vmatprep.subr.mxu0 0.0
        %2038 = vmatpush1.xpose.msra.mxu0 0.0
        %2039 = vmatprep.subr.mxu0 0.0
        %2040 = vmatpush1.xpose.msra.mxu0 0.0
        %2041 = vmatprep.subr.mxu0 0.0
        %2042 = vmatpush1.xpose.msra.mxu0 0.0
        %2043 = vmatprep.subr.mxu0 0.0
        %2044 = vmatpush1.xpose.msra.mxu0 0.0
        %2045 = vmatprep.subr.mxu0 0.0
        %2046 = vmatpush1.xpose.msra.mxu0 0.0
        %2047 = vmatprep.mubr.f32.mxu0 0.0
        %2048 = vmatmul.mubr.f32.gmra.mrb[0].mxu0 %v1979
        %v2049 = vpop.f32.mrb[0].mxu0
        %v2050 = vadd.f32 0.0, %v2049
        %v2051 = vpop.f32.mrb[0].mxu0
        %2052 = vdwg.mxu0
        %v2053 = vsel %vm1396, %v1972, -inf
        %2054 = vmax.xlane.f32.xlu0 %v2053
        %v2055 = vpop.xlane.xlu0 %2054
        %v2056 = vsel %vm1396, %v2050, -inf
        %2057 = vmax.xlane.f32.xlu0 %v2056
        %v2058 = vpop.xlane.xlu0 %2057
        %v2059 = vsub.f32 %v1972, %v2055
        %v2060 = vsub.f32 %v2050, %v2058
        %v2061 = vmul.f32 %v2059, 1.442695
        %v2062 = vpow.pop %v2061
        %v2063 = vmul.f32 %v2060, 1.442695
        %v2064 = vpow.pop %v2063
        %v2065 = vsel %vm1396, %v2062, 0.0
        %2066 = vadd.xlane.f32.xlu0 %v2065
        %v2067 = vpop.xlane.xlu0 %2066
        %v2068 = vsel %vm1396, %v2064, 0.0
        %2069 = vadd.xlane.f32.xlu0 %v2068
        %v2070 = vpop.xlane.xlu0 %2069
        %v2071 = vrcp.pop %v2067
        %v2072 = vmul.f32 %v2062, %v2071
        %v2073 = vrcp.pop %v2070
        %v2074 = vmul.f32 %v2064, %v2073
        %2075 = vrot.lane.b32.xlu0 %v1235, 64
        %v2076 = vpop.permute.xlu0 %2075
        %v2079 = vsel %vm1396, %v2072, 0
        %2081 = vmatprep.subr.mxu0 0.0
        %2082 = vmatpush1.msra.mxu0 %v2076
        %2083 = vmatprep.subr.mxu0 0.0
        %2084 = vmatpush1.msra.mxu0 0.0
        %2085 = vmatprep.subr.mxu0 0.0
        %2086 = vmatpush1.msra.mxu0 0.0
        %2087 = vmatprep.subr.mxu0 0.0
        %2088 = vmatpush1.msra.mxu0 0.0
        %2089 = vmatprep.subr.mxu0 0.0
        %2090 = vmatpush1.msra.mxu0 0.0
        %2091 = vmatprep.subr.mxu0 0.0
        %2092 = vmatpush1.msra.mxu0 0.0
        %2093 = vmatprep.subr.mxu0 0.0
        %2094 = vmatpush1.msra.mxu0 0.0
        %2095 = vmatprep.subr.mxu0 0.0
        %2096 = vmatpush1.msra.mxu0 0.0
        %2097 = vmatprep.subr.mxu0 0.0
        %2098 = vmatpush1.msra.mxu0 0.0
        %2099 = vmatprep.subr.mxu0 0.0
        %2100 = vmatpush1.msra.mxu0 0.0
        %2101 = vmatprep.subr.mxu0 0.0
        %2102 = vmatpush1.msra.mxu0 0.0
        %2103 = vmatprep.subr.mxu0 0.0
        %2104 = vmatpush1.msra.mxu0 0.0
        %2105 = vmatprep.subr.mxu0 0.0
        %2106 = vmatpush1.msra.mxu0 0.0
        %2107 = vmatprep.subr.mxu0 0.0
        %2108 = vmatpush1.msra.mxu0 0.0
        %2109 = vmatprep.subr.mxu0 0.0
        %2110 = vmatpush1.msra.mxu0 0.0
        %2111 = vmatprep.subr.mxu0 0.0
        %2112 = vmatpush1.msra.mxu0 0.0
        %2113 = vmatprep.subr.mxu0 0.0
        %2114 = vmatpush1.msra.mxu0 0.0
        %2115 = vmatprep.subr.mxu0 0.0
        %2116 = vmatpush1.msra.mxu0 0.0
        %2117 = vmatprep.subr.mxu0 0.0
        %2118 = vmatpush1.msra.mxu0 0.0
        %2119 = vmatprep.subr.mxu0 0.0
        %2120 = vmatpush1.msra.mxu0 0.0
        %2121 = vmatprep.subr.mxu0 0.0
        %2122 = vmatpush1.msra.mxu0 0.0
        %2123 = vmatprep.subr.mxu0 0.0
        %2124 = vmatpush1.msra.mxu0 0.0
        %2125 = vmatprep.subr.mxu0 0.0
        %2126 = vmatpush1.msra.mxu0 0.0
        %2127 = vmatprep.subr.mxu0 0.0
        %2128 = vmatpush1.msra.mxu0 0.0
        %2129 = vmatprep.subr.mxu0 0.0
        %2130 = vmatpush1.msra.mxu0 0.0
        %2131 = vmatprep.subr.mxu0 0.0
        %2132 = vmatpush1.msra.mxu0 0.0
        %2133 = vmatprep.subr.mxu0 0.0
        %2134 = vmatpush1.msra.mxu0 0.0
        %2135 = vmatprep.subr.mxu0 0.0
        %2136 = vmatpush1.msra.mxu0 0.0
        %2137 = vmatprep.subr.mxu0 0.0
        %2138 = vmatpush1.msra.mxu0 0.0
        %2139 = vmatprep.subr.mxu0 0.0
        %2140 = vmatpush1.msra.mxu0 0.0
        %2141 = vmatprep.subr.mxu0 0.0
        %2142 = vmatpush1.msra.mxu0 0.0
        %2143 = vmatprep.subr.mxu0 0.0
        %2144 = vmatpush1.msra.mxu0 0.0
        %2145 = vmatprep.mubr.f32.mxu0 0.0
        %2146 = vmatmul.mubr.f32.gmra.mrb[0].mxu0 %v2079
        %v2147 = vpop.f32.mrb[0].mxu0
        %v2148 = vadd.f32 0.0, %v2147
        %v2149 = vpop.f32.mrb[0].mxu0
        %2150 = vdwg.mxu0
        %2151 = vrot.lane.b32.xlu0 %v1240, 64
        %v2152 = vpop.permute.xlu0 %2151
        %v2155 = vsel %vm1396, %v2074, 0
        %2157 = vmatprep.subr.mxu0 0.0
        %2158 = vmatpush1.msra.mxu0 %v2152
        %2159 = vmatprep.subr.mxu0 0.0
        %2160 = vmatpush1.msra.mxu0 0.0
        %2161 = vmatprep.subr.mxu0 0.0
        %2162 = vmatpush1.msra.mxu0 0.0
        %2163 = vmatprep.subr.mxu0 0.0
        %2164 = vmatpush1.msra.mxu0 0.0
        %2165 = vmatprep.subr.mxu0 0.0
        %2166 = vmatpush1.msra.mxu0 0.0
        %2167 = vmatprep.subr.mxu0 0.0
        %2168 = vmatpush1.msra.mxu0 0.0
        %2169 = vmatprep.subr.mxu0 0.0
        %2170 = vmatpush1.msra.mxu0 0.0
        %2171 = vmatprep.subr.mxu0 0.0
        %2172 = vmatpush1.msra.mxu0 0.0
        %2173 = vmatprep.subr.mxu0 0.0
        %2174 = vmatpush1.msra.mxu0 0.0
        %2175 = vmatprep.subr.mxu0 0.0
        %2176 = vmatpush1.msra.mxu0 0.0
        %2177 = vmatprep.subr.mxu0 0.0
        %2178 = vmatpush1.msra.mxu0 0.0
        %2179 = vmatprep.subr.mxu0 0.0
        %2180 = vmatpush1.msra.mxu0 0.0
        %2181 = vmatprep.subr.mxu0 0.0
        %2182 = vmatpush1.msra.mxu0 0.0
        %2183 = vmatprep.subr.mxu0 0.0
        %2184 = vmatpush1.msra.mxu0 0.0
        %2185 = vmatprep.subr.mxu0 0.0
        %2186 = vmatpush1.msra.mxu0 0.0
        %2187 = vmatprep.subr.mxu0 0.0
        %2188 = vmatpush1.msra.mxu0 0.0
        %2189 = vmatprep.subr.mxu0 0.0
        %2190 = vmatpush1.msra.mxu0 0.0
        %2191 = vmatprep.subr.mxu0 0.0
        %2192 = vmatpush1.msra.mxu0 0.0
        %2193 = vmatprep.subr.mxu0 0.0
        %2194 = vmatpush1.msra.mxu0 0.0
        %2195 = vmatprep.subr.mxu0 0.0
        %2196 = vmatpush1.msra.mxu0 0.0
        %2197 = vmatprep.subr.mxu0 0.0
        %2198 = vmatpush1.msra.mxu0 0.0
        %2199 = vmatprep.subr.mxu0 0.0
        %2200 = vmatpush1.msra.mxu0 0.0
        %2201 = vmatprep.subr.mxu0 0.0
        %2202 = vmatpush1.msra.mxu0 0.0
        %2203 = vmatprep.subr.mxu0 0.0
        %2204 = vmatpush1.msra.mxu0 0.0
        %2205 = vmatprep.subr.mxu0 0.0
        %2206 = vmatpush1.msra.mxu0 0.0
        %2207 = vmatprep.subr.mxu0 0.0
        %2208 = vmatpush1.msra.mxu0 0.0
        %2209 = vmatprep.subr.mxu0 0.0
        %2210 = vmatpush1.msra.mxu0 0.0
        %2211 = vmatprep.subr.mxu0 0.0
        %2212 = vmatpush1.msra.mxu0 0.0
        %2213 = vmatprep.subr.mxu0 0.0
        %2214 = vmatpush1.msra.mxu0 0.0
        %2215 = vmatprep.subr.mxu0 0.0
        %2216 = vmatpush1.msra.mxu0 0.0
        %2217 = vmatprep.subr.mxu0 0.0
        %2218 = vmatpush1.msra.mxu0 0.0
        %2219 = vmatprep.subr.mxu0 0.0
        %2220 = vmatpush1.msra.mxu0 0.0
        %2221 = vmatprep.mubr.f32.mxu0 0.0
        %2222 = vmatmul.mubr.f32.gmra.mrb[0].mxu0 %v2155
        %v2223 = vpop.f32.mrb[0].mxu0
        %v2224 = vadd.f32 0.0, %v2223
        %v2225 = vpop.f32.mrb[0].mxu0
        %2226 = vdwg.mxu0
        %2227 = vrot.lane.b32.xlu0 %v1083, 32
        %v2228 = vpop.permute.xlu0 %2227
        %2229 = vrot.lane.b32.xlu0 %v1156, 32
        %v2230 = vpop.permute.xlu0 %2229
        %v2231 = vsel %vm1243, %v2228, 0
        %v2233 = vsel %vm1243, %v2230, 0
        %2235 = vmatprep.subr.mxu0 0.0
        %2236 = vmatpush1.xpose.msra.mxu0 %v2233
        %2237 = vmatprep.subr.mxu0 0.0
        %2238 = vmatpush1.xpose.msra.mxu0 0.0
        %2239 = vmatprep.subr.mxu0 0.0
        %2240 = vmatpush1.xpose.msra.mxu0 0.0
        %2241 = vmatprep.subr.mxu0 0.0
        %2242 = vmatpush1.xpose.msra.mxu0 0.0
        %2243 = vmatprep.subr.mxu0 0.0
        %2244 = vmatpush1.xpose.msra.mxu0 0.0
        %2245 = vmatprep.subr.mxu0 0.0
        %2246 = vmatpush1.xpose.msra.mxu0 0.0
        %2247 = vmatprep.subr.mxu0 0.0
        %2248 = vmatpush1.xpose.msra.mxu0 0.0
        %2249 = vmatprep.subr.mxu0 0.0
        %2250 = vmatpush1.xpose.msra.mxu0 0.0
        %2251 = vmatprep.subr.mxu0 0.0
        %2252 = vmatpush1.xpose.msra.mxu0 0.0
        %2253 = vmatprep.subr.mxu0 0.0
        %2254 = vmatpush1.xpose.msra.mxu0 0.0
        %2255 = vmatprep.subr.mxu0 0.0
        %2256 = vmatpush1.xpose.msra.mxu0 0.0
        %2257 = vmatprep.subr.mxu0 0.0
        %2258 = vmatpush1.xpose.msra.mxu0 0.0
        %2259 = vmatprep.subr.mxu0 0.0
        %2260 = vmatpush1.xpose.msra.mxu0 0.0
        %2261 = vmatprep.subr.mxu0 0.0
        %2262 = vmatpush1.xpose.msra.mxu0 0.0
        %2263 = vmatprep.subr.mxu0 0.0
        %2264 = vmatpush1.xpose.msra.mxu0 0.0
        %2265 = vmatprep.subr.mxu0 0.0
        %2266 = vmatpush1.xpose.msra.mxu0 0.0
        %2267 = vmatprep.subr.mxu0 0.0
        %2268 = vmatpush1.xpose.msra.mxu0 0.0
        %2269 = vmatprep.subr.mxu0 0.0
        %2270 = vmatpush1.xpose.msra.mxu0 0.0
        %2271 = vmatprep.subr.mxu0 0.0
        %2272 = vmatpush1.xpose.msra.mxu0 0.0
        %2273 = vmatprep.subr.mxu0 0.0
        %2274 = vmatpush1.xpose.msra.mxu0 0.0
        %2275 = vmatprep.subr.mxu0 0.0
        %2276 = vmatpush1.xpose.msra.mxu0 0.0
        %2277 = vmatprep.subr.mxu0 0.0
        %2278 = vmatpush1.xpose.msra.mxu0 0.0
        %2279 = vmatprep.subr.mxu0 0.0
        %2280 = vmatpush1.xpose.msra.mxu0 0.0
        %2281 = vmatprep.subr.mxu0 0.0
        %2282 = vmatpush1.xpose.msra.mxu0 0.0
        %2283 = vmatprep.subr.mxu0 0.0
        %2284 = vmatpush1.xpose.msra.mxu0 0.0
        %2285 = vmatprep.subr.mxu0 0.0
        %2286 = vmatpush1.xpose.msra.mxu0 0.0
        %2287 = vmatprep.subr.mxu0 0.0
        %2288 = vmatpush1.xpose.msra.mxu0 0.0
        %2289 = vmatprep.subr.mxu0 0.0
        %2290 = vmatpush1.xpose.msra.mxu0 0.0
        %2291 = vmatprep.subr.mxu0 0.0
        %2292 = vmatpush1.xpose.msra.mxu0 0.0
        %2293 = vmatprep.subr.mxu0 0.0
        %2294 = vmatpush1.xpose.msra.mxu0 0.0
        %2295 = vmatprep.subr.mxu0 0.0
        %2296 = vmatpush1.xpose.msra.mxu0 0.0
        %2297 = vmatprep.subr.mxu0 0.0
        %2298 = vmatpush1.xpose.msra.mxu0 0.0
        %2299 = vmatprep.mubr.f32.mxu0 0.0
        %2300 = vmatmul.mubr.f32.gmra.mrb[0].mxu0 %v2231
        %v2301 = vpop.f32.mrb[0].mxu0
        %v2302 = vadd.f32 0.0, %v2301
        %v2303 = vpop.f32.mrb[0].mxu0
        %2304 = vdwg.mxu0
        %2305 = vrot.lane.b32.xlu0 %v1084, 32
        %v2306 = vpop.permute.xlu0 %2305
        %2307 = vrot.lane.b32.xlu0 %v1161, 32
        %v2308 = vpop.permute.xlu0 %2307
        %v2309 = vsel %vm1243, %v2306, 0
        %v2311 = vsel %vm1243, %v2308, 0
        %2313 = vmatprep.subr.mxu0 0.0
        %2314 = vmatpush1.xpose.msra.mxu0 %v2311
        %2315 = vmatprep.subr.mxu0 0.0
        %2316 = vmatpush1.xpose.msra.mxu0 0.0
        %2317 = vmatprep.subr.mxu0 0.0
        %2318 = vmatpush1.xpose.msra.mxu0 0.0
        %2319 = vmatprep.subr.mxu0 0.0
        %2320 = vmatpush1.xpose.msra.mxu0 0.0
        %2321 = vmatprep.subr.mxu0 0.0
        %2322 = vmatpush1.xpose.msra.mxu0 0.0
        %2323 = vmatprep.subr.mxu0 0.0
        %2324 = vmatpush1.xpose.msra.mxu0 0.0
        %2325 = vmatprep.subr.mxu0 0.0
        %2326 = vmatpush1.xpose.msra.mxu0 0.0
        %2327 = vmatprep.subr.mxu0 0.0
        %2328 = vmatpush1.xpose.msra.mxu0 0.0
        %2329 = vmatprep.subr.mxu0 0.0
        %2330 = vmatpush1.xpose.msra.mxu0 0.0
        %2331 = vmatprep.subr.mxu0 0.0
        %2332 = vmatpush1.xpose.msra.mxu0 0.0
        %2333 = vmatprep.subr.mxu0 0.0
        %2334 = vmatpush1.xpose.msra.mxu0 0.0
        %2335 = vmatprep.subr.mxu0 0.0
        %2336 = vmatpush1.xpose.msra.mxu0 0.0
        %2337 = vmatprep.subr.mxu0 0.0
        %2338 = vmatpush1.xpose.msra.mxu0 0.0
        %2339 = vmatprep.subr.mxu0 0.0
        %2340 = vmatpush1.xpose.msra.mxu0 0.0
        %2341 = vmatprep.subr.mxu0 0.0
        %2342 = vmatpush1.xpose.msra.mxu0 0.0
        %2343 = vmatprep.subr.mxu0 0.0
        %2344 = vmatpush1.xpose.msra.mxu0 0.0
        %2345 = vmatprep.subr.mxu0 0.0
        %2346 = vmatpush1.xpose.msra.mxu0 0.0
        %2347 = vmatprep.subr.mxu0 0.0
        %2348 = vmatpush1.xpose.msra.mxu0 0.0
        %2349 = vmatprep.subr.mxu0 0.0
        %2350 = vmatpush1.xpose.msra.mxu0 0.0
        %2351 = vmatprep.subr.mxu0 0.0
        %2352 = vmatpush1.xpose.msra.mxu0 0.0
        %2353 = vmatprep.subr.mxu0 0.0
        %2354 = vmatpush1.xpose.msra.mxu0 0.0
        %2355 = vmatprep.subr.mxu0 0.0
        %2356 = vmatpush1.xpose.msra.mxu0 0.0
        %2357 = vmatprep.subr.mxu0 0.0
        %2358 = vmatpush1.xpose.msra.mxu0 0.0
        %2359 = vmatprep.subr.mxu0 0.0
        %2360 = vmatpush1.xpose.msra.mxu0 0.0
        %2361 = vmatprep.subr.mxu0 0.0
        %2362 = vmatpush1.xpose.msra.mxu0 0.0
        %2363 = vmatprep.subr.mxu0 0.0
        %2364 = vmatpush1.xpose.msra.mxu0 0.0
        %2365 = vmatprep.subr.mxu0 0.0
        %2366 = vmatpush1.xpose.msra.mxu0 0.0
        %2367 = vmatprep.subr.mxu0 0.0
        %2368 = vmatpush1.xpose.msra.mxu0 0.0
        %2369 = vmatprep.subr.mxu0 0.0
        %2370 = vmatpush1.xpose.msra.mxu0 0.0
        %2371 = vmatprep.subr.mxu0 0.0
        %2372 = vmatpush1.xpose.msra.mxu0 0.0
        %2373 = vmatprep.subr.mxu0 0.0
        %2374 = vmatpush1.xpose.msra.mxu0 0.0
        %2375 = vmatprep.subr.mxu0 0.0
        %2376 = vmatpush1.xpose.msra.mxu0 0.0
        %2377 = vmatprep.mubr.f32.mxu0 0.0
        %2378 = vmatmul.mubr.f32.gmra.mrb[0].mxu0 %v2309
        %v2379 = vpop.f32.mrb[0].mxu0
        %v2380 = vadd.f32 0.0, %v2379
        %v2381 = vpop.f32.mrb[0].mxu0
        %2382 = vdwg.mxu0
        %v2383 = vsel %vm1396, %v2302, -inf
        %2384 = vmax.xlane.f32.xlu0 %v2383
        %v2385 = vpop.xlane.xlu0 %2384
        %v2386 = vsel %vm1396, %v2380, -inf
        %2387 = vmax.xlane.f32.xlu0 %v2386
        %v2388 = vpop.xlane.xlu0 %2387
        %v2389 = vsub.f32 %v2302, %v2385
        %v2390 = vsub.f32 %v2380, %v2388
        %v2391 = vmul.f32 %v2389, 1.442695
        %v2392 = vpow.pop %v2391
        %v2393 = vmul.f32 %v2390, 1.442695
        %v2394 = vpow.pop %v2393
        %v2395 = vsel %vm1396, %v2392, 0.0
        %2396 = vadd.xlane.f32.xlu0 %v2395
        %v2397 = vpop.xlane.xlu0 %2396
        %v2398 = vsel %vm1396, %v2394, 0.0
        %2399 = vadd.xlane.f32.xlu0 %v2398
        %v2400 = vpop.xlane.xlu0 %2399
        %v2401 = vrcp.pop %v2397
        %v2402 = vmul.f32 %v2392, %v2401
        %v2403 = vrcp.pop %v2400
        %v2404 = vmul.f32 %v2394, %v2403
        %2405 = vrot.lane.b32.xlu0 %v1235, 32
        %v2406 = vpop.permute.xlu0 %2405
        %v2409 = vsel %vm1396, %v2402, 0
        %2411 = vmatprep.subr.mxu0 0.0
        %2412 = vmatpush1.msra.mxu0 %v2406
        %2413 = vmatprep.subr.mxu0 0.0
        %2414 = vmatpush1.msra.mxu0 0.0
        %2415 = vmatprep.subr.mxu0 0.0
        %2416 = vmatpush1.msra.mxu0 0.0
        %2417 = vmatprep.subr.mxu0 0.0
        %2418 = vmatpush1.msra.mxu0 0.0
        %2419 = vmatprep.subr.mxu0 0.0
        %2420 = vmatpush1.msra.mxu0 0.0
        %2421 = vmatprep.subr.mxu0 0.0
        %2422 = vmatpush1.msra.mxu0 0.0
        %2423 = vmatprep.subr.mxu0 0.0
        %2424 = vmatpush1.msra.mxu0 0.0
        %2425 = vmatprep.subr.mxu0 0.0
        %2426 = vmatpush1.msra.mxu0 0.0
        %2427 = vmatprep.subr.mxu0 0.0
        %2428 = vmatpush1.msra.mxu0 0.0
        %2429 = vmatprep.subr.mxu0 0.0
        %2430 = vmatpush1.msra.mxu0 0.0
        %2431 = vmatprep.subr.mxu0 0.0
        %2432 = vmatpush1.msra.mxu0 0.0
        %2433 = vmatprep.subr.mxu0 0.0
        %2434 = vmatpush1.msra.mxu0 0.0
        %2435 = vmatprep.subr.mxu0 0.0
        %2436 = vmatpush1.msra.mxu0 0.0
        %2437 = vmatprep.subr.mxu0 0.0
        %2438 = vmatpush1.msra.mxu0 0.0
        %2439 = vmatprep.subr.mxu0 0.0
        %2440 = vmatpush1.msra.mxu0 0.0
        %2441 = vmatprep.subr.mxu0 0.0
        %2442 = vmatpush1.msra.mxu0 0.0
        %2443 = vmatprep.subr.mxu0 0.0
        %2444 = vmatpush1.msra.mxu0 0.0
        %2445 = vmatprep.subr.mxu0 0.0
        %2446 = vmatpush1.msra.mxu0 0.0
        %2447 = vmatprep.subr.mxu0 0.0
        %2448 = vmatpush1.msra.mxu0 0.0
        %2449 = vmatprep.subr.mxu0 0.0
        %2450 = vmatpush1.msra.mxu0 0.0
        %2451 = vmatprep.subr.mxu0 0.0
        %2452 = vmatpush1.msra.mxu0 0.0
        %2453 = vmatprep.subr.mxu0 0.0
        %2454 = vmatpush1.msra.mxu0 0.0
        %2455 = vmatprep.subr.mxu0 0.0
        %2456 = vmatpush1.msra.mxu0 0.0
        %2457 = vmatprep.subr.mxu0 0.0
        %2458 = vmatpush1.msra.mxu0 0.0
        %2459 = vmatprep.subr.mxu0 0.0
        %2460 = vmatpush1.msra.mxu0 0.0
        %2461 = vmatprep.subr.mxu0 0.0
        %2462 = vmatpush1.msra.mxu0 0.0
        %2463 = vmatprep.subr.mxu0 0.0
        %2464 = vmatpush1.msra.mxu0 0.0
        %2465 = vmatprep.subr.mxu0 0.0
        %2466 = vmatpush1.msra.mxu0 0.0
        %2467 = vmatprep.subr.mxu0 0.0
        %2468 = vmatpush1.msra.mxu0 0.0
        %2469 = vmatprep.subr.mxu0 0.0
        %2470 = vmatpush1.msra.mxu0 0.0
        %2471 = vmatprep.subr.mxu0 0.0
        %2472 = vmatpush1.msra.mxu0 0.0
        %2473 = vmatprep.subr.mxu0 0.0
        %2474 = vmatpush1.msra.mxu0 0.0
        %2475 = vmatprep.mubr.f32.mxu0 0.0
        %2476 = vmatmul.mubr.f32.gmra.mrb[0].mxu0 %v2409
        %v2477 = vpop.f32.mrb[0].mxu0
        %v2478 = vadd.f32 0.0, %v2477
        %v2479 = vpop.f32.mrb[0].mxu0
        %2480 = vdwg.mxu0
        %2481 = vrot.lane.b32.xlu0 %v1240, 32
        %v2482 = vpop.permute.xlu0 %2481
        %v2485 = vsel %vm1396, %v2404, 0
        %2487 = vmatprep.subr.mxu0 0.0
        %2488 = vmatpush1.msra.mxu0 %v2482
        %2489 = vmatprep.subr.mxu0 0.0
        %2490 = vmatpush1.msra.mxu0 0.0
        %2491 = vmatprep.subr.mxu0 0.0
        %2492 = vmatpush1.msra.mxu0 0.0
        %2493 = vmatprep.subr.mxu0 0.0
        %2494 = vmatpush1.msra.mxu0 0.0
        %2495 = vmatprep.subr.mxu0 0.0
        %2496 = vmatpush1.msra.mxu0 0.0
        %2497 = vmatprep.subr.mxu0 0.0
        %2498 = vmatpush1.msra.mxu0 0.0
        %2499 = vmatprep.subr.mxu0 0.0
        %2500 = vmatpush1.msra.mxu0 0.0
        %2501 = vmatprep.subr.mxu0 0.0
        %2502 = vmatpush1.msra.mxu0 0.0
        %2503 = vmatprep.subr.mxu0 0.0
        %2504 = vmatpush1.msra.mxu0 0.0
        %2505 = vmatprep.subr.mxu0 0.0
        %2506 = vmatpush1.msra.mxu0 0.0
        %2507 = vmatprep.subr.mxu0 0.0
        %2508 = vmatpush1.msra.mxu0 0.0
        %2509 = vmatprep.subr.mxu0 0.0
        %2510 = vmatpush1.msra.mxu0 0.0
        %2511 = vmatprep.subr.mxu0 0.0
        %2512 = vmatpush1.msra.mxu0 0.0
        %2513 = vmatprep.subr.mxu0 0.0
        %2514 = vmatpush1.msra.mxu0 0.0
        %2515 = vmatprep.subr.mxu0 0.0
        %2516 = vmatpush1.msra.mxu0 0.0
        %2517 = vmatprep.subr.mxu0 0.0
        %2518 = vmatpush1.msra.mxu0 0.0
        %2519 = vmatprep.subr.mxu0 0.0
        %2520 = vmatpush1.msra.mxu0 0.0
        %2521 = vmatprep.subr.mxu0 0.0
        %2522 = vmatpush1.msra.mxu0 0.0
        %2523 = vmatprep.subr.mxu0 0.0
        %2524 = vmatpush1.msra.mxu0 0.0
        %2525 = vmatprep.subr.mxu0 0.0
        %2526 = vmatpush1.msra.mxu0 0.0
        %2527 = vmatprep.subr.mxu0 0.0
        %2528 = vmatpush1.msra.mxu0 0.0
        %2529 = vmatprep.subr.mxu0 0.0
        %2530 = vmatpush1.msra.mxu0 0.0
        %2531 = vmatprep.subr.mxu0 0.0
        %2532 = vmatpush1.msra.mxu0 0.0
        %2533 = vmatprep.subr.mxu0 0.0
        %2534 = vmatpush1.msra.mxu0 0.0
        %2535 = vmatprep.subr.mxu0 0.0
        %2536 = vmatpush1.msra.mxu0 0.0
        %2537 = vmatprep.subr.mxu0 0.0
        %2538 = vmatpush1.msra.mxu0 0.0
        %2539 = vmatprep.subr.mxu0 0.0
        %2540 = vmatpush1.msra.mxu0 0.0
        %2541 = vmatprep.subr.mxu0 0.0
        %2542 = vmatpush1.msra.mxu0 0.0
        %2543 = vmatprep.subr.mxu0 0.0
        %2544 = vmatpush1.msra.mxu0 0.0
        %2545 = vmatprep.subr.mxu0 0.0
        %2546 = vmatpush1.msra.mxu0 0.0
        %2547 = vmatprep.subr.mxu0 0.0
        %2548 = vmatpush1.msra.mxu0 0.0
        %2549 = vmatprep.subr.mxu0 0.0
        %2550 = vmatpush1.msra.mxu0 0.0
        %2551 = vmatprep.mubr.f32.mxu0 0.0
        %2552 = vmatmul.mubr.f32.gmra.mrb[0].mxu0 %v2485
        %v2553 = vpop.f32.mrb[0].mxu0
        %v2554 = vadd.f32 0.0, %v2553
        %v2555 = vpop.f32.mrb[0].mxu0
        %2556 = vdwg.mxu0
        %2559 = vrot.lane.b32.xlu0 %v1817, 32
        %v2560 = vpop.permute.xlu0 %2559
        %2561 = vrot.lane.b32.xlu0 %v1894, 32
        %v2562 = vpop.permute.xlu0 %2561
        %2567 = vrot.lane.b32.xlu0 %v2148, 64
        %v2568 = vpop.permute.xlu0 %2567
        %2569 = vrot.lane.b32.xlu0 %v2224, 64
        %v2570 = vpop.permute.xlu0 %2569
        %2575 = vrot.lane.b32.xlu0 %v2478, 96
        %v2576 = vpop.permute.xlu0 %2575
        %2577 = vrot.lane.b32.xlu0 %v2554, 96
        %v2578 = vpop.permute.xlu0 %2577
        %v2581 = vsel %vm1243, %v1489, %v2560
        %v2582 = vsel %vm1243, %v1562, %v2562
        %vm2583 = vcmask 523264
        %v2584 = vsel %vm2583, %v2581, %v2568
        %v2585 = vsel %vm2583, %v2582, %v2570
        %vm2586 = vcmask 785408
        %v2587 = vsel %vm2586, %v2584, %v2576
        %v2588 = vsel %vm2586, %v2585, %v2578
        %v2589 = vlaneseq
        %v2590 = vshrl.u32 %v2589, 7
        %v2591 = vsub.s32 3, %v2590
        %v2592 = vrot.slane %v934, %v2591
        %2593 = vmatprep.subr.mxu0 0.0
        %2594 = vmatpush1.msra.mxu0 %v988
        %2595 = vmatprep.subr.mxu0 0.0
        %2596 = vmatpush1.msra.mxu0 %v989
        %2597 = vmatprep.subr.mxu0 0.0
        %2598 = vmatpush1.msra.mxu0 %v990
        %2599 = vmatprep.subr.mxu0 0.0
        %2600 = vmatpush1.msra.mxu0 %v991
        %2601 = vmatprep.subr.mxu0 0.0
        %2602 = vmatpush1.msra.mxu0 %v992
        %2603 = vmatprep.subr.mxu0 0.0
        %2604 = vmatpush1.msra.mxu0 %v993
        %2605 = vmatprep.subr.mxu0 0.0
        %2606 = vmatpush1.msra.mxu0 %v994
        %2607 = vmatprep.subr.mxu0 0.0
        %2608 = vmatpush1.msra.mxu0 %v995
        %2609 = vmatprep.subr.mxu0 0.0
        %2610 = vmatpush1.msra.mxu0 %v996
        %2611 = vmatprep.subr.mxu0 0.0
        %2612 = vmatpush1.msra.mxu0 %v997
        %2613 = vmatprep.subr.mxu0 0.0
        %2614 = vmatpush1.msra.mxu0 %v998
        %2615 = vmatprep.subr.mxu0 0.0
        %2616 = vmatpush1.msra.mxu0 %v999
        %2617 = vmatprep.subr.mxu0 0.0
        %2618 = vmatpush1.msra.mxu0 %v1000
        %2619 = vmatprep.subr.mxu0 0.0
        %2620 = vmatpush1.msra.mxu0 %v1001
        %2621 = vmatprep.subr.mxu0 0.0
        %2622 = vmatpush1.msra.mxu0 %v1002
        %2623 = vmatprep.subr.mxu0 0.0
        %2624 = vmatpush1.msra.mxu0 %v1003
        %2625 = vmatprep.subr.mxu0 0.0
        %2626 = vmatpush1.msra.mxu0 0.0
        %2627 = vmatprep.subr.mxu0 0.0
        %2628 = vmatpush1.msra.mxu0 0.0
        %2629 = vmatprep.subr.mxu0 0.0
        %2630 = vmatpush1.msra.mxu0 0.0
        %2631 = vmatprep.subr.mxu0 0.0
        %2632 = vmatpush1.msra.mxu0 0.0
        %2633 = vmatprep.subr.mxu0 0.0
        %2634 = vmatpush1.msra.mxu0 0.0
        %2635 = vmatprep.subr.mxu0 0.0
        %2636 = vmatpush1.msra.mxu0 0.0
        %2637 = vmatprep.subr.mxu0 0.0
        %2638 = vmatpush1.msra.mxu0 0.0
        %2639 = vmatprep.subr.mxu0 0.0
        %2640 = vmatpush1.msra.mxu0 0.0
        %2641 = vmatprep.subr.mxu0 0.0
        %2642 = vmatpush1.msra.mxu0 0.0
        %2643 = vmatprep.subr.mxu0 0.0
        %2644 = vmatpush1.msra.mxu0 0.0
        %2645 = vmatprep.subr.mxu0 0.0
        %2646 = vmatpush1.msra.mxu0 0.0
        %2647 = vmatprep.subr.mxu0 0.0
        %2648 = vmatpush1.msra.mxu0 0.0
        %2649 = vmatprep.subr.mxu0 0.0
        %2650 = vmatpush1.msra.mxu0 0.0
        %2651 = vmatprep.subr.mxu0 0.0
        %2652 = vmatpush1.msra.mxu0 0.0
        %2653 = vmatprep.subr.mxu0 0.0
        %2654 = vmatpush1.msra.mxu0 0.0
        %2655 = vmatprep.subr.mxu0 0.0
        %2656 = vmatpush1.msra.mxu0 0.0
        %2657 = vmatprep.mubr.f32.mxu0 0.0
        %2658 = vmatmul.mubr.f32.gmra.mrb[0].mxu0 %v2587
        %v2659 = vpop.f32.mrb[0].mxu0
        %v2660 = vadd.f32 %v2592, %v2659
        %v2661 = vpop.f32.mrb[0].mxu0
        %2662 = vmatprep.mubr.f32.mxu0 0.0
        %2663 = vmatmul.mubr.f32.gmra.mrb[0].mxu0 %v2588
        %v2664 = vpop.f32.mrb[0].mxu0
        %v2665 = vadd.f32 %v2592, %v2664
        %v2666 = vpop.f32.mrb[0].mxu0
        %2667 = vdwg.mxu0
        %v2668 = vadd.f32 %v932, %v2660
        %v2669 = vadd.f32 %v933, %v2665
        %2670 = vadd.xlane.f32.xlu0 %v2668
        %v2671 = vpop.xlane.xlu0 %2670
        %2672 = vadd.xlane.f32.xlu0 %v2669
        %v2673 = vpop.xlane.xlu0 %2672
        %v2674 = vrcp.pop 128.0
        %v2675 = vmul.f32 %v2671, %v2674
        %v2676 = vmul.f32 %v2673, %v2674
        %v2677 = vsub.f32 %v2668, %v2675
        %v2678 = vsub.f32 %v2669, %v2676
        %v2679 = vmul.f32 %v2677, %v2677
        %v2680 = vmul.f32 %v2678, %v2678
        %2681 = vadd.xlane.f32.xlu0 %v2679
        %v2682 = vpop.xlane.xlu0 %2681
        %2683 = vadd.xlane.f32.xlu0 %v2680
        %v2684 = vpop.xlane.xlu0 %2683
        %v2685 = vmul.f32 %v2682, %v2674
        %v2686 = vmul.f32 %v2684, %v2674
        %v2687 = vadd.f32 %v2685, 1e-05
        %v2688 = vadd.f32 %v2686, 1e-05
        %v2689 = vrsqrt.pop %v2687
        %v2690 = vrsqrt.pop %v2688
        %v2691 = vmul.f32 %v2677, %v2689
        %v2692 = vmul.f32 %v2678, %v2690
        %v2693 = vlaneseq
        %v2694 = vshrl.u32 %v2693, 7
        %v2695 = vsub.s32 1, %v2694
        %v2696 = vrot.slane %v935, %v2695
        %v2697 = vmul.f32 %v2691, %v2696
        %v2698 = vmul.f32 %v2692, %v2696
        %v2699 = vlaneseq
        %v2700 = vshrl.u32 %v2699, 7
        %v2701 = vsub.s32 2, %v2700
        %v2702 = vrot.slane %v935, %v2701
        %v2703 = vadd.f32 %v2697, %v2702
        %v2704 = vadd.f32 %v2698, %v2702
        %v2705 = vld [vmem:[%s751] sm:$0xff]
        %v2706 = vld [vmem:[%s751 + $0x8] sm:$0xff]
        %v2707 = vld [vmem:[%s751 + $0x10] sm:$0xff]
        %v2708 = vld [vmem:[%s751 + $0x18] sm:$0xff]
        %v2709 = vld [vmem:[%s751 + $0x20] sm:$0xff]
        %v2710 = vld [vmem:[%s751 + $0x28] sm:$0xff]
        %v2711 = vld [vmem:[%s751 + $0x30] sm:$0xff]
        %v2712 = vld [vmem:[%s751 + $0x38] sm:$0xff]
        %v2713 = vld [vmem:[%s751 + $0x40] sm:$0xff]
        %v2714 = vld [vmem:[%s751 + $0x48] sm:$0xff]
        %v2715 = vld [vmem:[%s751 + $0x50] sm:$0xff]
        %v2716 = vld [vmem:[%s751 + $0x58] sm:$0xff]
        %v2717 = vld [vmem:[%s751 + $0x60] sm:$0xff]
        %v2718 = vld [vmem:[%s751 + $0x68] sm:$0xff]
        %v2719 = vld [vmem:[%s751 + $0x70] sm:$0xff]
        %v2720 = vld [vmem:[%s751 + $0x78] sm:$0xff]
        %v2721 = vld [vmem:[%s760] sm:$0xff]
        %v2722 = vld [vmem:[%s760 + $0x8] sm:$0xff]
        %v2723 = vld [vmem:[%s760 + $0x10] sm:$0xff]
        %v2724 = vld [vmem:[%s760 + $0x18] sm:$0xff]
        %v2725 = vld [vmem:[%s760 + $0x20] sm:$0xff]
        %v2726 = vld [vmem:[%s760 + $0x28] sm:$0xff]
        %v2727 = vld [vmem:[%s760 + $0x30] sm:$0xff]
        %v2728 = vld [vmem:[%s760 + $0x38] sm:$0xff]
        %v2729 = vld [vmem:[%s760 + $0x40] sm:$0xff]
        %v2730 = vld [vmem:[%s760 + $0x48] sm:$0xff]
        %v2731 = vld [vmem:[%s760 + $0x50] sm:$0xff]
        %v2732 = vld [vmem:[%s760 + $0x58] sm:$0xff]
        %v2733 = vld [vmem:[%s760 + $0x60] sm:$0xff]
        %v2734 = vld [vmem:[%s760 + $0x68] sm:$0xff]
        %v2735 = vld [vmem:[%s760 + $0x70] sm:$0xff]
        %v2736 = vld [vmem:[%s760 + $0x78] sm:$0xff]
        %v2737 = vld [vmem:[%s769] sm:$0xff]
        %v2738 = vld [vmem:[%s769 + $0x8] sm:$0xff]
        %v2739 = vld [vmem:[%s769 + $0x10] sm:$0xff]
        %v2740 = vld [vmem:[%s769 + $0x18] sm:$0xff]
        %v2741 = vld [vmem:[%s769 + $0x20] sm:$0xff]
        %v2742 = vld [vmem:[%s769 + $0x28] sm:$0xff]
        %v2743 = vld [vmem:[%s769 + $0x30] sm:$0xff]
        %v2744 = vld [vmem:[%s769 + $0x38] sm:$0xff]
        %v2745 = vld [vmem:[%s769 + $0x40] sm:$0xff]
        %v2746 = vld [vmem:[%s769 + $0x48] sm:$0xff]
        %v2747 = vld [vmem:[%s769 + $0x50] sm:$0xff]
        %v2748 = vld [vmem:[%s769 + $0x58] sm:$0xff]
        %v2749 = vld [vmem:[%s769 + $0x60] sm:$0xff]
        %v2750 = vld [vmem:[%s769 + $0x68] sm:$0xff]
        %v2751 = vld [vmem:[%s769 + $0x70] sm:$0xff]
        %v2752 = vld [vmem:[%s769 + $0x78] sm:$0xff]
        %v2753 = vld [vmem:[%s778] sm:$0xff]
        %v2754 = vld [vmem:[%s778 + $0x8] sm:$0xff]
        %v2755 = vld [vmem:[%s778 + $0x10] sm:$0xff]
        %v2756 = vld [vmem:[%s778 + $0x18] sm:$0xff]
        %v2757 = vld [vmem:[%s778 + $0x20] sm:$0xff]
        %v2758 = vld [vmem:[%s778 + $0x28] sm:$0xff]
        %v2759 = vld [vmem:[%s778 + $0x30] sm:$0xff]
        %v2760 = vld [vmem:[%s778 + $0x38] sm:$0xff]
        %v2761 = vld [vmem:[%s778 + $0x40] sm:$0xff]
        %v2762 = vld [vmem:[%s778 + $0x48] sm:$0xff]
        %v2763 = vld [vmem:[%s778 + $0x50] sm:$0xff]
        %v2764 = vld [vmem:[%s778 + $0x58] sm:$0xff]
        %v2765 = vld [vmem:[%s778 + $0x60] sm:$0xff]
        %v2766 = vld [vmem:[%s778 + $0x68] sm:$0xff]
        %v2767 = vld [vmem:[%s778 + $0x70] sm:$0xff]
        %v2768 = vld [vmem:[%s778 + $0x78] sm:$0xff]
        %v2769 = vlaneseq
        %v2770 = vshrl.u32 %v2769, 7
        %v2771 = vsub.s32 4, %v2770
        %v2772 = vrot.slane %v934, %v2771
        %2773 = vmatprep.subr.mxu0 0.0
        %2774 = vmatpush1.msra.mxu0 %v2705
        %2775 = vmatprep.subr.mxu0 0.0
        %2776 = vmatpush1.msra.mxu0 %v2706
        %2777 = vmatprep.subr.mxu0 0.0
        %2778 = vmatpush1.msra.mxu0 %v2707
        %2779 = vmatprep.subr.mxu0 0.0
        %2780 = vmatpush1.msra.mxu0 %v2708
        %2781 = vmatprep.subr.mxu0 0.0
        %2782 = vmatpush1.msra.mxu0 %v2709
        %2783 = vmatprep.subr.mxu0 0.0
        %2784 = vmatpush1.msra.mxu0 %v2710
        %2785 = vmatprep.subr.mxu0 0.0
        %2786 = vmatpush1.msra.mxu0 %v2711
        %2787 = vmatprep.subr.mxu0 0.0
        %2788 = vmatpush1.msra.mxu0 %v2712
        %2789 = vmatprep.subr.mxu0 0.0
        %2790 = vmatpush1.msra.mxu0 %v2713
        %2791 = vmatprep.subr.mxu0 0.0
        %2792 = vmatpush1.msra.mxu0 %v2714
        %2793 = vmatprep.subr.mxu0 0.0
        %2794 = vmatpush1.msra.mxu0 %v2715
        %2795 = vmatprep.subr.mxu0 0.0
        %2796 = vmatpush1.msra.mxu0 %v2716
        %2797 = vmatprep.subr.mxu0 0.0
        %2798 = vmatpush1.msra.mxu0 %v2717
        %2799 = vmatprep.subr.mxu0 0.0
        %2800 = vmatpush1.msra.mxu0 %v2718
        %2801 = vmatprep.subr.mxu0 0.0
        %2802 = vmatpush1.msra.mxu0 %v2719
        %2803 = vmatprep.subr.mxu0 0.0
        %2804 = vmatpush1.msra.mxu0 %v2720
        %2805 = vmatprep.subr.mxu0 0.0
        %2806 = vmatpush1.msra.mxu0 0.0
        %2807 = vmatprep.subr.mxu0 0.0
        %2808 = vmatpush1.msra.mxu0 0.0
        %2809 = vmatprep.subr.mxu0 0.0
        %2810 = vmatpush1.msra.mxu0 0.0
        %2811 = vmatprep.subr.mxu0 0.0
        %2812 = vmatpush1.msra.mxu0 0.0
        %2813 = vmatprep.subr.mxu0 0.0
        %2814 = vmatpush1.msra.mxu0 0.0
        %2815 = vmatprep.subr.mxu0 0.0
        %2816 = vmatpush1.msra.mxu0 0.0
        %2817 = vmatprep.subr.mxu0 0.0
        %2818 = vmatpush1.msra.mxu0 0.0
        %2819 = vmatprep.subr.mxu0 0.0
        %2820 = vmatpush1.msra.mxu0 0.0
        %2821 = vmatprep.subr.mxu0 0.0
        %2822 = vmatpush1.msra.mxu0 0.0
        %2823 = vmatprep.subr.mxu0 0.0
        %2824 = vmatpush1.msra.mxu0 0.0
        %2825 = vmatprep.subr.mxu0 0.0
        %2826 = vmatpush1.msra.mxu0 0.0
        %2827 = vmatprep.subr.mxu0 0.0
        %2828 = vmatpush1.msra.mxu0 0.0
        %2829 = vmatprep.subr.mxu0 0.0
        %2830 = vmatpush1.msra.mxu0 0.0
        %2831 = vmatprep.subr.mxu0 0.0
        %2832 = vmatpush1.msra.mxu0 0.0
        %2833 = vmatprep.subr.mxu0 0.0
        %2834 = vmatpush1.msra.mxu0 0.0
        %2835 = vmatprep.subr.mxu0 0.0
        %2836 = vmatpush1.msra.mxu0 0.0
        %2837 = vmatprep.mubr.f32.mxu0 0.0
        %2838 = vmatmul.mubr.f32.gmra.mrb[0].mxu0 %v2703
        %v2839 = vpop.f32.mrb[0].mxu0
        %v2840 = vadd.f32 %v2772, %v2839
        %v2841 = vpop.f32.mrb[0].mxu0
        %2842 = vmatprep.mubr.f32.mxu0 0.0
        %2843 = vmatmul.mubr.f32.gmra.mrb[0].mxu0 %v2704
        %v2844 = vpop.f32.mrb[0].mxu0
        %v2845 = vadd.f32 %v2772, %v2844
        %v2846 = vpop.f32.mrb[0].mxu0
        %2847 = vdwg.mxu0
        %v2848 = vmul.f32 %v2840, 0.17677669
        %v2849 = vmul.f32 %v2845, 0.17677669
        %v2850 = vlaneseq
        %v2851 = vshrl.u32 %v2850, 7
        %v2852 = vsub.s32 5, %v2851
        %v2853 = vrot.slane %v934, %v2852
        %2854 = vmatprep.subr.mxu0 0.0
        %2855 = vmatpush1.msra.mxu0 %v2721
        %2856 = vmatprep.subr.mxu0 0.0
        %2857 = vmatpush1.msra.mxu0 %v2722
        %2858 = vmatprep.subr.mxu0 0.0
        %2859 = vmatpush1.msra.mxu0 %v2723
        %2860 = vmatprep.subr.mxu0 0.0
        %2861 = vmatpush1.msra.mxu0 %v2724
        %2862 = vmatprep.subr.mxu0 0.0
        %2863 = vmatpush1.msra.mxu0 %v2725
        %2864 = vmatprep.subr.mxu0 0.0
        %2865 = vmatpush1.msra.mxu0 %v2726
        %2866 = vmatprep.subr.mxu0 0.0
        %2867 = vmatpush1.msra.mxu0 %v2727
        %2868 = vmatprep.subr.mxu0 0.0
        %2869 = vmatpush1.msra.mxu0 %v2728
        %2870 = vmatprep.subr.mxu0 0.0
        %2871 = vmatpush1.msra.mxu0 %v2729
        %2872 = vmatprep.subr.mxu0 0.0
        %2873 = vmatpush1.msra.mxu0 %v2730
        %2874 = vmatprep.subr.mxu0 0.0
        %2875 = vmatpush1.msra.mxu0 %v2731
        %2876 = vmatprep.subr.mxu0 0.0
        %2877 = vmatpush1.msra.mxu0 %v2732
        %2878 = vmatprep.subr.mxu0 0.0
        %2879 = vmatpush1.msra.mxu0 %v2733
        %2880 = vmatprep.subr.mxu0 0.0
        %2881 = vmatpush1.msra.mxu0 %v2734
        %2882 = vmatprep.subr.mxu0 0.0
        %2883 = vmatpush1.msra.mxu0 %v2735
        %2884 = vmatprep.subr.mxu0 0.0
        %2885 = vmatpush1.msra.mxu0 %v2736
        %2886 = vmatprep.subr.mxu0 0.0
        %2887 = vmatpush1.msra.mxu0 0.0
        %2888 = vmatprep.subr.mxu0 0.0
        %2889 = vmatpush1.msra.mxu0 0.0
        %2890 = vmatprep.subr.mxu0 0.0
        %2891 = vmatpush1.msra.mxu0 0.0
        %2892 = vmatprep.subr.mxu0 0.0
        %2893 = vmatpush1.msra.mxu0 0.0
        %2894 = vmatprep.subr.mxu0 0.0
        %2895 = vmatpush1.msra.mxu0 0.0
        %2896 = vmatprep.subr.mxu0 0.0
        %2897 = vmatpush1.msra.mxu0 0.0
        %2898 = vmatprep.subr.mxu0 0.0
        %2899 = vmatpush1.msra.mxu0 0.0
        %2900 = vmatprep.subr.mxu0 0.0
        %2901 = vmatpush1.msra.mxu0 0.0
        %2902 = vmatprep.subr.mxu0 0.0
        %2903 = vmatpush1.msra.mxu0 0.0
        %2904 = vmatprep.subr.mxu0 0.0
        %2905 = vmatpush1.msra.mxu0 0.0
        %2906 = vmatprep.subr.mxu0 0.0
        %2907 = vmatpush1.msra.mxu0 0.0
        %2908 = vmatprep.subr.mxu0 0.0
        %2909 = vmatpush1.msra.mxu0 0.0
        %2910 = vmatprep.subr.mxu0 0.0
        %2911 = vmatpush1.msra.mxu0 0.0
        %2912 = vmatprep.subr.mxu0 0.0
        %2913 = vmatpush1.msra.mxu0 0.0
        %2914 = vmatprep.subr.mxu0 0.0
        %2915 = vmatpush1.msra.mxu0 0.0
        %2916 = vmatprep.subr.mxu0 0.0
        %2917 = vmatpush1.msra.mxu0 0.0
        %2918 = vmatprep.mubr.f32.mxu0 0.0
        %2919 = vmatmul.mubr.f32.gmra.mrb[0].mxu0 %v936
        %v2920 = vpop.f32.mrb[0].mxu0
        %v2921 = vadd.f32 %v2853, %v2920
        %v2922 = vpop.f32.mrb[0].mxu0
        %2923 = vmatprep.mubr.f32.mxu0 0.0
        %2924 = vmatmul.mubr.f32.gmra.mrb[0].mxu0 %v937
        %v2925 = vpop.f32.mrb[0].mxu0
        %v2926 = vadd.f32 %v2853, %v2925
        %v2927 = vpop.f32.mrb[0].mxu0
        %2928 = vmatprep.mubr.f32.mxu0 0.0
        %2929 = vmatmul.mubr.f32.gmra.mrb[0].mxu0 %v938
        %v2930 = vpop.f32.mrb[0].mxu0
        %v2931 = vadd.f32 %v2853, %v2930
        %v2932 = vpop.f32.mrb[0].mxu0
        %2933 = vmatprep.mubr.f32.mxu0 0.0
        %2934 = vmatmul.mubr.f32.gmra.mrb[0].mxu0 %v939
        %v2935 = vpop.f32.mrb[0].mxu0
        %v2936 = vadd.f32 %v2853, %v2935
        %v2937 = vpop.f32.mrb[0].mxu0
        %2938 = vdwg.mxu0
        %v2939 = vlaneseq
        %v2940 = vshrl.u32 %v2939, 7
        %v2941 = vsub.s32 6, %v2940
        %v2942 = vrot.slane %v934, %v2941
        %2943 = vmatprep.subr.mxu0 0.0
        %2944 = vmatpush1.msra.mxu0 %v2737
        %2945 = vmatprep.subr.mxu0 0.0
        %2946 = vmatpush1.msra.mxu0 %v2738
        %2947 = vmatprep.subr.mxu0 0.0
        %2948 = vmatpush1.msra.mxu0 %v2739
        %2949 = vmatprep.subr.mxu0 0.0
        %2950 = vmatpush1.msra.mxu0 %v2740
        %2951 = vmatprep.subr.mxu0 0.0
        %2952 = vmatpush1.msra.mxu0 %v2741
        %2953 = vmatprep.subr.mxu0 0.0
        %2954 = vmatpush1.msra.mxu0 %v2742
        %2955 = vmatprep.subr.mxu0 0.0
        %2956 = vmatpush1.msra.mxu0 %v2743
        %2957 = vmatprep.subr.mxu0 0.0
        %2958 = vmatpush1.msra.mxu0 %v2744
        %2959 = vmatprep.subr.mxu0 0.0
        %2960 = vmatpush1.msra.mxu0 %v2745
        %2961 = vmatprep.subr.mxu0 0.0
        %2962 = vmatpush1.msra.mxu0 %v2746
        %2963 = vmatprep.subr.mxu0 0.0
        %2964 = vmatpush1.msra.mxu0 %v2747
        %2965 = vmatprep.subr.mxu0 0.0
        %2966 = vmatpush1.msra.mxu0 %v2748
        %2967 = vmatprep.subr.mxu0 0.0
        %2968 = vmatpush1.msra.mxu0 %v2749
        %2969 = vmatprep.subr.mxu0 0.0
        %2970 = vmatpush1.msra.mxu0 %v2750
        %2971 = vmatprep.subr.mxu0 0.0
        %2972 = vmatpush1.msra.mxu0 %v2751
        %2973 = vmatprep.subr.mxu0 0.0
        %2974 = vmatpush1.msra.mxu0 %v2752
        %2975 = vmatprep.subr.mxu0 0.0
        %2976 = vmatpush1.msra.mxu0 0.0
        %2977 = vmatprep.subr.mxu0 0.0
        %2978 = vmatpush1.msra.mxu0 0.0
        %2979 = vmatprep.subr.mxu0 0.0
        %2980 = vmatpush1.msra.mxu0 0.0
        %2981 = vmatprep.subr.mxu0 0.0
        %2982 = vmatpush1.msra.mxu0 0.0
        %2983 = vmatprep.subr.mxu0 0.0
        %2984 = vmatpush1.msra.mxu0 0.0
        %2985 = vmatprep.subr.mxu0 0.0
        %2986 = vmatpush1.msra.mxu0 0.0
        %2987 = vmatprep.subr.mxu0 0.0
        %2988 = vmatpush1.msra.mxu0 0.0
        %2989 = vmatprep.subr.mxu0 0.0
        %2990 = vmatpush1.msra.mxu0 0.0
        %2991 = vmatprep.subr.mxu0 0.0
        %2992 = vmatpush1.msra.mxu0 0.0
        %2993 = vmatprep.subr.mxu0 0.0
        %2994 = vmatpush1.msra.mxu0 0.0
        %2995 = vmatprep.subr.mxu0 0.0
        %2996 = vmatpush1.msra.mxu0 0.0
        %2997 = vmatprep.subr.mxu0 0.0
        %2998 = vmatpush1.msra.mxu0 0.0
        %2999 = vmatprep.subr.mxu0 0.0
        %3000 = vmatpush1.msra.mxu0 0.0
        %3001 = vmatprep.subr.mxu0 0.0
        %3002 = vmatpush1.msra.mxu0 0.0
        %3003 = vmatprep.subr.mxu0 0.0
        %3004 = vmatpush1.msra.mxu0 0.0
        %3005 = vmatprep.subr.mxu0 0.0
        %3006 = vmatpush1.msra.mxu0 0.0
        %3007 = vmatprep.mubr.f32.mxu0 0.0
        %3008 = vmatmul.mubr.f32.gmra.mrb[0].mxu0 %v936
        %v3009 = vpop.f32.mrb[0].mxu0
        %v3010 = vadd.f32 %v2942, %v3009
        %v3011 = vpop.f32.mrb[0].mxu0
        %3012 = vmatprep.mubr.f32.mxu0 0.0
        %3013 = vmatmul.mubr.f32.gmra.mrb[0].mxu0 %v937
        %v3014 = vpop.f32.mrb[0].mxu0
        %v3015 = vadd.f32 %v2942, %v3014
        %v3016 = vpop.f32.mrb[0].mxu0
        %3017 = vmatprep.mubr.f32.mxu0 0.0
        %3018 = vmatmul.mubr.f32.gmra.mrb[0].mxu0 %v938
        %v3019 = vpop.f32.mrb[0].mxu0
        %v3020 = vadd.f32 %v2942, %v3019
        %v3021 = vpop.f32.mrb[0].mxu0
        %3022 = vmatprep.mubr.f32.mxu0 0.0
        %3023 = vmatmul.mubr.f32.gmra.mrb[0].mxu0 %v939
        %v3024 = vpop.f32.mrb[0].mxu0
        %v3025 = vadd.f32 %v2942, %v3024
        %v3026 = vpop.f32.mrb[0].mxu0
        %3027 = vdwg.mxu0
        %v3029 = vsel %vm1243, %v2848, 0
        %v3032 = vsel %vm1243, %v2921, 0
        %v3035 = vsel %vm1243, %v2926, 0
        %3037 = vmatprep.subr.mxu0 0.0
        %3038 = vmatpush1.xpose.msra.mxu0 %v3032
        %3039 = vmatprep.subr.mxu0 0.0
        %3040 = vmatpush1.xpose.msra.mxu0 %v3035
        %3041 = vmatprep.subr.mxu0 0.0
        %3042 = vmatpush1.xpose.msra.mxu0 0.0
        %3043 = vmatprep.subr.mxu0 0.0
        %3044 = vmatpush1.xpose.msra.mxu0 0.0
        %3045 = vmatprep.subr.mxu0 0.0
        %3046 = vmatpush1.xpose.msra.mxu0 0.0
        %3047 = vmatprep.subr.mxu0 0.0
        %3048 = vmatpush1.xpose.msra.mxu0 0.0
        %3049 = vmatprep.subr.mxu0 0.0
        %3050 = vmatpush1.xpose.msra.mxu0 0.0
        %3051 = vmatprep.subr.mxu0 0.0
        %3052 = vmatpush1.xpose.msra.mxu0 0.0
        %3053 = vmatprep.subr.mxu0 0.0
        %3054 = vmatpush1.xpose.msra.mxu0 0.0
        %3055 = vmatprep.subr.mxu0 0.0
        %3056 = vmatpush1.xpose.msra.mxu0 0.0
        %3057 = vmatprep.subr.mxu0 0.0
        %3058 = vmatpush1.xpose.msra.mxu0 0.0
        %3059 = vmatprep.subr.mxu0 0.0
        %3060 = vmatpush1.xpose.msra.mxu0 0.0
        %3061 = vmatprep.subr.mxu0 0.0
        %3062 = vmatpush1.xpose.msra.mxu0 0.0
        %3063 = vmatprep.subr.mxu0 0.0
        %3064 = vmatpush1.xpose.msra.mxu0 0.0
        %3065 = vmatprep.subr.mxu0 0.0
        %3066 = vmatpush1.xpose.msra.mxu0 0.0
        %3067 = vmatprep.subr.mxu0 0.0
        %3068 = vmatpush1.xpose.msra.mxu0 0.0
        %3069 = vmatprep.subr.mxu0 0.0
        %3070 = vmatpush1.xpose.msra.mxu0 0.0
        %3071 = vmatprep.subr.mxu0 0.0
        %3072 = vmatpush1.xpose.msra.mxu0 0.0
        %3073 = vmatprep.subr.mxu0 0.0
        %3074 = vmatpush1.xpose.msra.mxu0 0.0
        %3075 = vmatprep.subr.mxu0 0.0
        %3076 = vmatpush1.xpose.msra.mxu0 0.0
        %3077 = vmatprep.subr.mxu0 0.0
        %3078 = vmatpush1.xpose.msra.mxu0 0.0
        %3079 = vmatprep.subr.mxu0 0.0
        %3080 = vmatpush1.xpose.msra.mxu0 0.0
        %3081 = vmatprep.subr.mxu0 0.0
        %3082 = vmatpush1.xpose.msra.mxu0 0.0
        %3083 = vmatprep.subr.mxu0 0.0
        %3084 = vmatpush1.xpose.msra.mxu0 0.0
        %3085 = vmatprep.subr.mxu0 0.0
        %3086 = vmatpush1.xpose.msra.mxu0 0.0
        %3087 = vmatprep.subr.mxu0 0.0
        %3088 = vmatpush1.xpose.msra.mxu0 0.0
        %3089 = vmatprep.subr.mxu0 0.0
        %3090 = vmatpush1.xpose.msra.mxu0 0.0
        %3091 = vmatprep.subr.mxu0 0.0
        %3092 = vmatpush1.xpose.msra.mxu0 0.0
        %3093 = vmatprep.subr.mxu0 0.0
        %3094 = vmatpush1.xpose.msra.mxu0 0.0
        %3095 = vmatprep.subr.mxu0 0.0
        %3096 = vmatpush1.xpose.msra.mxu0 0.0
        %3097 = vmatprep.subr.mxu0 0.0
        %3098 = vmatpush1.xpose.msra.mxu0 0.0
        %3099 = vmatprep.subr.mxu0 0.0
        %3100 = vmatpush1.xpose.msra.mxu0 0.0
        %3101 = vmatprep.mubr.f32.mxu0 0.0
        %3102 = vmatmul.mubr.f32.gmra.mrb[0].mxu0 %v3029
        %v3103 = vpop.f32.mrb[0].mxu0
        %v3104 = vadd.f32 0.0, %v3103
        %v3105 = vpop.f32.mrb[0].mxu0
        %3106 = vdwg.mxu0
        %v3108 = vsel %vm1243, %v2849, 0
        %v3111 = vsel %vm1243, %v2931, 0
        %v3114 = vsel %vm1243, %v2936, 0
        %3116 = vmatprep.subr.mxu0 0.0
        %3117 = vmatpush1.xpose.msra.mxu0 %v3111
        %3118 = vmatprep.subr.mxu0 0.0
        %3119 = vmatpush1.xpose.msra.mxu0 %v3114
        %3120 = vmatprep.subr.mxu0 0.0
        %3121 = vmatpush1.xpose.msra.mxu0 0.0
        %3122 = vmatprep.subr.mxu0 0.0
        %3123 = vmatpush1.xpose.msra.mxu0 0.0
        %3124 = vmatprep.subr.mxu0 0.0
        %3125 = vmatpush1.xpose.msra.mxu0 0.0
        %3126 = vmatprep.subr.mxu0 0.0
        %3127 = vmatpush1.xpose.msra.mxu0 0.0
        %3128 = vmatprep.subr.mxu0 0.0
        %3129 = vmatpush1.xpose.msra.mxu0 0.0
        %3130 = vmatprep.subr.mxu0 0.0
        %3131 = vmatpush1.xpose.msra.mxu0 0.0
        %3132 = vmatprep.subr.mxu0 0.0
        %3133 = vmatpush1.xpose.msra.mxu0 0.0
        %3134 = vmatprep.subr.mxu0 0.0
        %3135 = vmatpush1.xpose.msra.mxu0 0.0
        %3136 = vmatprep.subr.mxu0 0.0
        %3137 = vmatpush1.xpose.msra.mxu0 0.0
        %3138 = vmatprep.subr.mxu0 0.0
        %3139 = vmatpush1.xpose.msra.mxu0 0.0
        %3140 = vmatprep.subr.mxu0 0.0
        %3141 = vmatpush1.xpose.msra.mxu0 0.0
        %3142 = vmatprep.subr.mxu0 0.0
        %3143 = vmatpush1.xpose.msra.mxu0 0.0
        %3144 = vmatprep.subr.mxu0 0.0
        %3145 = vmatpush1.xpose.msra.mxu0 0.0
        %3146 = vmatprep.subr.mxu0 0.0
        %3147 = vmatpush1.xpose.msra.mxu0 0.0
        %3148 = vmatprep.subr.mxu0 0.0
        %3149 = vmatpush1.xpose.msra.mxu0 0.0
        %3150 = vmatprep.subr.mxu0 0.0
        %3151 = vmatpush1.xpose.msra.mxu0 0.0
        %3152 = vmatprep.subr.mxu0 0.0
        %3153 = vmatpush1.xpose.msra.mxu0 0.0
        %3154 = vmatprep.subr.mxu0 0.0
        %3155 = vmatpush1.xpose.msra.mxu0 0.0
        %3156 = vmatprep.subr.mxu0 0.0
        %3157 = vmatpush1.xpose.msra.mxu0 0.0
        %3158 = vmatprep.subr.mxu0 0.0
        %3159 = vmatpush1.xpose.msra.mxu0 0.0
        %3160 = vmatprep.subr.mxu0 0.0
        %3161 = vmatpush1.xpose.msra.mxu0 0.0
        %3162 = vmatprep.subr.mxu0 0.0
        %3163 = vmatpush1.xpose.msra.mxu0 0.0
        %3164 = vmatprep.subr.mxu0 0.0
        %3165 = vmatpush1.xpose.msra.mxu0 0.0
        %3166 = vmatprep.subr.mxu0 0.0
        %3167 = vmatpush1.xpose.msra.mxu0 0.0
        %3168 = vmatprep.subr.mxu0 0.0
        %3169 = vmatpush1.xpose.msra.mxu0 0.0
        %3170 = vmatprep.subr.mxu0 0.0
        %3171 = vmatpush1.xpose.msra.mxu0 0.0
        %3172 = vmatprep.subr.mxu0 0.0
        %3173 = vmatpush1.xpose.msra.mxu0 0.0
        %3174 = vmatprep.subr.mxu0 0.0
        %3175 = vmatpush1.xpose.msra.mxu0 0.0
        %3176 = vmatprep.subr.mxu0 0.0
        %3177 = vmatpush1.xpose.msra.mxu0 0.0
        %3178 = vmatprep.subr.mxu0 0.0
        %3179 = vmatpush1.xpose.msra.mxu0 0.0
        %3180 = vmatprep.mubr.f32.mxu0 0.0
        %3181 = vmatmul.mubr.f32.gmra.mrb[0].mxu0 %v3108
        %v3182 = vpop.f32.mrb[0].mxu0
        %v3183 = vadd.f32 0.0, %v3182
        %v3184 = vpop.f32.mrb[0].mxu0
        %3185 = vdwg.mxu0
        %vm3186 = vcmask 130048
        %v3187 = vsel %vm3186, %v3104, -inf
        %3188 = vmax.xlane.f32.xlu0 %v3187
        %v3189 = vpop.xlane.xlu0 %3188
        %v3190 = vsel %vm3186, %v3183, -inf
        %3191 = vmax.xlane.f32.xlu0 %v3190
        %v3192 = vpop.xlane.xlu0 %3191
        %v3193 = vsub.f32 %v3104, %v3189
        %v3194 = vsub.f32 %v3183, %v3192
        %v3195 = vmul.f32 %v3193, 1.442695
        %v3196 = vpow.pop %v3195
        %v3197 = vmul.f32 %v3194, 1.442695
        %v3198 = vpow.pop %v3197
        %v3199 = vsel %vm3186, %v3196, 0.0
        %3200 = vadd.xlane.f32.xlu0 %v3199
        %v3201 = vpop.xlane.xlu0 %3200
        %v3202 = vsel %vm3186, %v3198, 0.0
        %3203 = vadd.xlane.f32.xlu0 %v3202
        %v3204 = vpop.xlane.xlu0 %3203
        %v3205 = vrcp.pop %v3201
        %v3206 = vmul.f32 %v3196, %v3205
        %v3207 = vrcp.pop %v3204
        %v3208 = vmul.f32 %v3198, %v3207
        %v3210 = vsel %vm3186, %v3206, 0
        %3212 = vmatprep.subr.mxu0 0.0
        %3213 = vmatpush1.msra.mxu0 %v3010
        %3214 = vmatprep.subr.mxu0 0.0
        %3215 = vmatpush1.msra.mxu0 %v3015
        %3216 = vmatprep.subr.mxu0 0.0
        %3217 = vmatpush1.msra.mxu0 0.0
        %3218 = vmatprep.subr.mxu0 0.0
        %3219 = vmatpush1.msra.mxu0 0.0
        %3220 = vmatprep.subr.mxu0 0.0
        %3221 = vmatpush1.msra.mxu0 0.0
        %3222 = vmatprep.subr.mxu0 0.0
        %3223 = vmatpush1.msra.mxu0 0.0
        %3224 = vmatprep.subr.mxu0 0.0
        %3225 = vmatpush1.msra.mxu0 0.0
        %3226 = vmatprep.subr.mxu0 0.0
        %3227 = vmatpush1.msra.mxu0 0.0
        %3228 = vmatprep.subr.mxu0 0.0
        %3229 = vmatpush1.msra.mxu0 0.0
        %3230 = vmatprep.subr.mxu0 0.0
        %3231 = vmatpush1.msra.mxu0 0.0
        %3232 = vmatprep.subr.mxu0 0.0
        %3233 = vmatpush1.msra.mxu0 0.0
        %3234 = vmatprep.subr.mxu0 0.0
        %3235 = vmatpush1.msra.mxu0 0.0
        %3236 = vmatprep.subr.mxu0 0.0
        %3237 = vmatpush1.msra.mxu0 0.0
        %3238 = vmatprep.subr.mxu0 0.0
        %3239 = vmatpush1.msra.mxu0 0.0
        %3240 = vmatprep.subr.mxu0 0.0
        %3241 = vmatpush1.msra.mxu0 0.0
        %3242 = vmatprep.subr.mxu0 0.0
        %3243 = vmatpush1.msra.mxu0 0.0
        %3244 = vmatprep.subr.mxu0 0.0
        %3245 = vmatpush1.msra.mxu0 0.0
        %3246 = vmatprep.subr.mxu0 0.0
        %3247 = vmatpush1.msra.mxu0 0.0
        %3248 = vmatprep.subr.mxu0 0.0
        %3249 = vmatpush1.msra.mxu0 0.0
        %3250 = vmatprep.subr.mxu0 0.0
        %3251 = vmatpush1.msra.mxu0 0.0
        %3252 = vmatprep.subr.mxu0 0.0
        %3253 = vmatpush1.msra.mxu0 0.0
        %3254 = vmatprep.subr.mxu0 0.0
        %3255 = vmatpush1.msra.mxu0 0.0
        %3256 = vmatprep.subr.mxu0 0.0
        %3257 = vmatpush1.msra.mxu0 0.0
        %3258 = vmatprep.subr.mxu0 0.0
        %3259 = vmatpush1.msra.mxu0 0.0
        %3260 = vmatprep.subr.mxu0 0.0
        %3261 = vmatpush1.msra.mxu0 0.0
        %3262 = vmatprep.subr.mxu0 0.0
        %3263 = vmatpush1.msra.mxu0 0.0
        %3264 = vmatprep.subr.mxu0 0.0
        %3265 = vmatpush1.msra.mxu0 0.0
        %3266 = vmatprep.subr.mxu0 0.0
        %3267 = vmatpush1.msra.mxu0 0.0
        %3268 = vmatprep.subr.mxu0 0.0
        %3269 = vmatpush1.msra.mxu0 0.0
        %3270 = vmatprep.subr.mxu0 0.0
        %3271 = vmatpush1.msra.mxu0 0.0
        %3272 = vmatprep.subr.mxu0 0.0
        %3273 = vmatpush1.msra.mxu0 0.0
        %3274 = vmatprep.subr.mxu0 0.0
        %3275 = vmatpush1.msra.mxu0 0.0
        %3276 = vmatprep.mubr.f32.mxu0 0.0
        %3277 = vmatmul.mubr.f32.gmra.mrb[0].mxu0 %v3210
        %v3278 = vpop.f32.mrb[0].mxu0
        %v3279 = vadd.f32 0.0, %v3278
        %v3280 = vpop.f32.mrb[0].mxu0
        %3281 = vdwg.mxu0
        %v3283 = vsel %vm3186, %v3208, 0
        %3285 = vmatprep.subr.mxu0 0.0
        %3286 = vmatpush1.msra.mxu0 %v3020
        %3287 = vmatprep.subr.mxu0 0.0
        %3288 = vmatpush1.msra.mxu0 %v3025
        %3289 = vmatprep.subr.mxu0 0.0
        %3290 = vmatpush1.msra.mxu0 0.0
        %3291 = vmatprep.subr.mxu0 0.0
        %3292 = vmatpush1.msra.mxu0 0.0
        %3293 = vmatprep.subr.mxu0 0.0
        %3294 = vmatpush1.msra.mxu0 0.0
        %3295 = vmatprep.subr.mxu0 0.0
        %3296 = vmatpush1.msra.mxu0 0.0
        %3297 = vmatprep.subr.mxu0 0.0
        %3298 = vmatpush1.msra.mxu0 0.0
        %3299 = vmatprep.subr.mxu0 0.0
        %3300 = vmatpush1.msra.mxu0 0.0
        %3301 = vmatprep.subr.mxu0 0.0
        %3302 = vmatpush1.msra.mxu0 0.0
        %3303 = vmatprep.subr.mxu0 0.0
        %3304 = vmatpush1.msra.mxu0 0.0
        %3305 = vmatprep.subr.mxu0 0.0
        %3306 = vmatpush1.msra.mxu0 0.0
        %3307 = vmatprep.subr.mxu0 0.0
        %3308 = vmatpush1.msra.mxu0 0.0
        %3309 = vmatprep.subr.mxu0 0.0
        %3310 = vmatpush1.msra.mxu0 0.0
        %3311 = vmatprep.subr.mxu0 0.0
        %3312 = vmatpush1.msra.mxu0 0.0
        %3313 = vmatprep.subr.mxu0 0.0
        %3314 = vmatpush1.msra.mxu0 0.0
        %3315 = vmatprep.subr.mxu0 0.0
        %3316 = vmatpush1.msra.mxu0 0.0
        %3317 = vmatprep.subr.mxu0 0.0
        %3318 = vmatpush1.msra.mxu0 0.0
        %3319 = vmatprep.subr.mxu0 0.0
        %3320 = vmatpush1.msra.mxu0 0.0
        %3321 = vmatprep.subr.mxu0 0.0
        %3322 = vmatpush1.msra.mxu0 0.0
        %3323 = vmatprep.subr.mxu0 0.0
        %3324 = vmatpush1.msra.mxu0 0.0
        %3325 = vmatprep.subr.mxu0 0.0
        %3326 = vmatpush1.msra.mxu0 0.0
        %3327 = vmatprep.subr.mxu0 0.0
        %3328 = vmatpush1.msra.mxu0 0.0
        %3329 = vmatprep.subr.mxu0 0.0
        %3330 = vmatpush1.msra.mxu0 0.0
        %3331 = vmatprep.subr.mxu0 0.0
        %3332 = vmatpush1.msra.mxu0 0.0
        %3333 = vmatprep.subr.mxu0 0.0
        %3334 = vmatpush1.msra.mxu0 0.0
        %3335 = vmatprep.subr.mxu0 0.0
        %3336 = vmatpush1.msra.mxu0 0.0
        %3337 = vmatprep.subr.mxu0 0.0
        %3338 = vmatpush1.msra.mxu0 0.0
        %3339 = vmatprep.subr.mxu0 0.0
        %3340 = vmatpush1.msra.mxu0 0.0
        %3341 = vmatprep.subr.mxu0 0.0
        %3342 = vmatpush1.msra.mxu0 0.0
        %3343 = vmatprep.subr.mxu0 0.0
        %3344 = vmatpush1.msra.mxu0 0.0
        %3345 = vmatprep.subr.mxu0 0.0
        %3346 = vmatpush1.msra.mxu0 0.0
        %3347 = vmatprep.subr.mxu0 0.0
        %3348 = vmatpush1.msra.mxu0 0.0
        %3349 = vmatprep.mubr.f32.mxu0 0.0
        %3350 = vmatmul.mubr.f32.gmra.mrb[0].mxu0 %v3283
        %v3351 = vpop.f32.mrb[0].mxu0
        %v3352 = vadd.f32 0.0, %v3351
        %v3353 = vpop.f32.mrb[0].mxu0
        %3354 = vdwg.mxu0
        %3355 = vrot.lane.b32.xlu0 %v2848, 96
        %v3356 = vpop.permute.xlu0 %3355
        %3357 = vrot.lane.b32.xlu0 %v2921, 96
        %v3358 = vpop.permute.xlu0 %3357
        %3359 = vrot.lane.b32.xlu0 %v2926, 96
        %v3360 = vpop.permute.xlu0 %3359
        %v3361 = vsel %vm1243, %v3356, 0
        %v3363 = vsel %vm1243, %v3358, 0
        %v3365 = vsel %vm1243, %v3360, 0
        %3367 = vmatprep.subr.mxu0 0.0
        %3368 = vmatpush1.xpose.msra.mxu0 %v3363
        %3369 = vmatprep.subr.mxu0 0.0
        %3370 = vmatpush1.xpose.msra.mxu0 %v3365
        %3371 = vmatprep.subr.mxu0 0.0
        %3372 = vmatpush1.xpose.msra.mxu0 0.0
        %3373 = vmatprep.subr.mxu0 0.0
        %3374 = vmatpush1.xpose.msra.mxu0 0.0
        %3375 = vmatprep.subr.mxu0 0.0
        %3376 = vmatpush1.xpose.msra.mxu0 0.0
        %3377 = vmatprep.subr.mxu0 0.0
        %3378 = vmatpush1.xpose.msra.mxu0 0.0
        %3379 = vmatprep.subr.mxu0 0.0
        %3380 = vmatpush1.xpose.msra.mxu0 0.0
        %3381 = vmatprep.subr.mxu0 0.0
        %3382 = vmatpush1.xpose.msra.mxu0 0.0
        %3383 = vmatprep.subr.mxu0 0.0
        %3384 = vmatpush1.xpose.msra.mxu0 0.0
        %3385 = vmatprep.subr.mxu0 0.0
        %3386 = vmatpush1.xpose.msra.mxu0 0.0
        %3387 = vmatprep.subr.mxu0 0.0
        %3388 = vmatpush1.xpose.msra.mxu0 0.0
        %3389 = vmatprep.subr.mxu0 0.0
        %3390 = vmatpush1.xpose.msra.mxu0 0.0
        %3391 = vmatprep.subr.mxu0 0.0
        %3392 = vmatpush1.xpose.msra.mxu0 0.0
        %3393 = vmatprep.subr.mxu0 0.0
        %3394 = vmatpush1.xpose.msra.mxu0 0.0
        %3395 = vmatprep.subr.mxu0 0.0
        %3396 = vmatpush1.xpose.msra.mxu0 0.0
        %3397 = vmatprep.subr.mxu0 0.0
        %3398 = vmatpush1.xpose.msra.mxu0 0.0
        %3399 = vmatprep.subr.mxu0 0.0
        %3400 = vmatpush1.xpose.msra.mxu0 0.0
        %3401 = vmatprep.subr.mxu0 0.0
        %3402 = vmatpush1.xpose.msra.mxu0 0.0
        %3403 = vmatprep.subr.mxu0 0.0
        %3404 = vmatpush1.xpose.msra.mxu0 0.0
        %3405 = vmatprep.subr.mxu0 0.0
        %3406 = vmatpush1.xpose.msra.mxu0 0.0
        %3407 = vmatprep.subr.mxu0 0.0
        %3408 = vmatpush1.xpose.msra.mxu0 0.0
        %3409 = vmatprep.subr.mxu0 0.0
        %3410 = vmatpush1.xpose.msra.mxu0 0.0
        %3411 = vmatprep.subr.mxu0 0.0
        %3412 = vmatpush1.xpose.msra.mxu0 0.0
        %3413 = vmatprep.subr.mxu0 0.0
        %3414 = vmatpush1.xpose.msra.mxu0 0.0
        %3415 = vmatprep.subr.mxu0 0.0
        %3416 = vmatpush1.xpose.msra.mxu0 0.0
        %3417 = vmatprep.subr.mxu0 0.0
        %3418 = vmatpush1.xpose.msra.mxu0 0.0
        %3419 = vmatprep.subr.mxu0 0.0
        %3420 = vmatpush1.xpose.msra.mxu0 0.0
        %3421 = vmatprep.subr.mxu0 0.0
        %3422 = vmatpush1.xpose.msra.mxu0 0.0
        %3423 = vmatprep.subr.mxu0 0.0
        %3424 = vmatpush1.xpose.msra.mxu0 0.0
        %3425 = vmatprep.subr.mxu0 0.0
        %3426 = vmatpush1.xpose.msra.mxu0 0.0
        %3427 = vmatprep.subr.mxu0 0.0
        %3428 = vmatpush1.xpose.msra.mxu0 0.0
        %3429 = vmatprep.subr.mxu0 0.0
        %3430 = vmatpush1.xpose.msra.mxu0 0.0
        %3431 = vmatprep.mubr.f32.mxu0 0.0
        %3432 = vmatmul.mubr.f32.gmra.mrb[0].mxu0 %v3361
        %v3433 = vpop.f32.mrb[0].mxu0
        %v3434 = vadd.f32 0.0, %v3433
        %v3435 = vpop.f32.mrb[0].mxu0
        %3436 = vdwg.mxu0
        %3437 = vrot.lane.b32.xlu0 %v2849, 96
        %v3438 = vpop.permute.xlu0 %3437
        %3439 = vrot.lane.b32.xlu0 %v2931, 96
        %v3440 = vpop.permute.xlu0 %3439
        %3441 = vrot.lane.b32.xlu0 %v2936, 96
        %v3442 = vpop.permute.xlu0 %3441
        %v3443 = vsel %vm1243, %v3438, 0
        %v3445 = vsel %vm1243, %v3440, 0
        %v3447 = vsel %vm1243, %v3442, 0
        %3449 = vmatprep.subr.mxu0 0.0
        %3450 = vmatpush1.xpose.msra.mxu0 %v3445
        %3451 = vmatprep.subr.mxu0 0.0
        %3452 = vmatpush1.xpose.msra.mxu0 %v3447
        %3453 = vmatprep.subr.mxu0 0.0
        %3454 = vmatpush1.xpose.msra.mxu0 0.0
        %3455 = vmatprep.subr.mxu0 0.0
        %3456 = vmatpush1.xpose.msra.mxu0 0.0
        %3457 = vmatprep.subr.mxu0 0.0
        %3458 = vmatpush1.xpose.msra.mxu0 0.0
        %3459 = vmatprep.subr.mxu0 0.0
        %3460 = vmatpush1.xpose.msra.mxu0 0.0
        %3461 = vmatprep.subr.mxu0 0.0
        %3462 = vmatpush1.xpose.msra.mxu0 0.0
        %3463 = vmatprep.subr.mxu0 0.0
        %3464 = vmatpush1.xpose.msra.mxu0 0.0
        %3465 = vmatprep.subr.mxu0 0.0
        %3466 = vmatpush1.xpose.msra.mxu0 0.0
        %3467 = vmatprep.subr.mxu0 0.0
        %3468 = vmatpush1.xpose.msra.mxu0 0.0
        %3469 = vmatprep.subr.mxu0 0.0
        %3470 = vmatpush1.xpose.msra.mxu0 0.0
        %3471 = vmatprep.subr.mxu0 0.0
        %3472 = vmatpush1.xpose.msra.mxu0 0.0
        %3473 = vmatprep.subr.mxu0 0.0
        %3474 = vmatpush1.xpose.msra.mxu0 0.0
        %3475 = vmatprep.subr.mxu0 0.0
        %3476 = vmatpush1.xpose.msra.mxu0 0.0
        %3477 = vmatprep.subr.mxu0 0.0
        %3478 = vmatpush1.xpose.msra.mxu0 0.0
        %3479 = vmatprep.subr.mxu0 0.0
        %3480 = vmatpush1.xpose.msra.mxu0 0.0
        %3481 = vmatprep.subr.mxu0 0.0
        %3482 = vmatpush1.xpose.msra.mxu0 0.0
        %3483 = vmatprep.subr.mxu0 0.0
        %3484 = vmatpush1.xpose.msra.mxu0 0.0
        %3485 = vmatprep.subr.mxu0 0.0
        %3486 = vmatpush1.xpose.msra.mxu0 0.0
        %3487 = vmatprep.subr.mxu0 0.0
        %3488 = vmatpush1.xpose.msra.mxu0 0.0
        %3489 = vmatprep.subr.mxu0 0.0
        %3490 = vmatpush1.xpose.msra.mxu0 0.0
        %3491 = vmatprep.subr.mxu0 0.0
        %3492 = vmatpush1.xpose.msra.mxu0 0.0
        %3493 = vmatprep.subr.mxu0 0.0
        %3494 = vmatpush1.xpose.msra.mxu0 0.0
        %3495 = vmatprep.subr.mxu0 0.0
        %3496 = vmatpush1.xpose.msra.mxu0 0.0
        %3497 = vmatprep.subr.mxu0 0.0
        %3498 = vmatpush1.xpose.msra.mxu0 0.0
        %3499 = vmatprep.subr.mxu0 0.0
        %3500 = vmatpush1.xpose.msra.mxu0 0.0
        %3501 = vmatprep.subr.mxu0 0.0
        %3502 = vmatpush1.xpose.msra.mxu0 0.0
        %3503 = vmatprep.subr.mxu0 0.0
        %3504 = vmatpush1.xpose.msra.mxu0 0.0
        %3505 = vmatprep.subr.mxu0 0.0
        %3506 = vmatpush1.xpose.msra.mxu0 0.0
        %3507 = vmatprep.subr.mxu0 0.0
        %3508 = vmatpush1.xpose.msra.mxu0 0.0
        %3509 = vmatprep.subr.mxu0 0.0
        %3510 = vmatpush1.xpose.msra.mxu0 0.0
        %3511 = vmatprep.subr.mxu0 0.0
        %3512 = vmatpush1.xpose.msra.mxu0 0.0
        %3513 = vmatprep.mubr.f32.mxu0 0.0
        %3514 = vmatmul.mubr.f32.gmra.mrb[0].mxu0 %v3443
        %v3515 = vpop.f32.mrb[0].mxu0
        %v3516 = vadd.f32 0.0, %v3515
        %v3517 = vpop.f32.mrb[0].mxu0
        %3518 = vdwg.mxu0
        %v3519 = vsel %vm3186, %v3434, -inf
        %3520 = vmax.xlane.f32.xlu0 %v3519
        %v3521 = vpop.xlane.xlu0 %3520
        %v3522 = vsel %vm3186, %v3516, -inf
        %3523 = vmax.xlane.f32.xlu0 %v3522
        %v3524 = vpop.xlane.xlu0 %3523
        %v3525 = vsub.f32 %v3434, %v3521
        %v3526 = vsub.f32 %v3516, %v3524
        %v3527 = vmul.f32 %v3525, 1.442695
        %v3528 = vpow.pop %v3527
        %v3529 = vmul.f32 %v3526, 1.442695
        %v3530 = vpow.pop %v3529
        %v3531 = vsel %vm3186, %v3528, 0.0
        %3532 = vadd.xlane.f32.xlu0 %v3531
        %v3533 = vpop.xlane.xlu0 %3532
        %v3534 = vsel %vm3186, %v3530, 0.0
        %3535 = vadd.xlane.f32.xlu0 %v3534
        %v3536 = vpop.xlane.xlu0 %3535
        %v3537 = vrcp.pop %v3533
        %v3538 = vmul.f32 %v3528, %v3537
        %v3539 = vrcp.pop %v3536
        %v3540 = vmul.f32 %v3530, %v3539
        %3543 = vrot.lane.b32.xlu0 %v3010, 96
        %v3544 = vpop.permute.xlu0 %3543
        %3545 = vrot.lane.b32.xlu0 %v3015, 96
        %v3546 = vpop.permute.xlu0 %3545
        %v3550 = vsel %vm3186, %v3538, 0
        %3552 = vmatprep.subr.mxu0 0.0
        %3553 = vmatpush1.msra.mxu0 %v3544
        %3554 = vmatprep.subr.mxu0 0.0
        %3555 = vmatpush1.msra.mxu0 %v3546
        %3556 = vmatprep.subr.mxu0 0.0
        %3557 = vmatpush1.msra.mxu0 0.0
        %3558 = vmatprep.subr.mxu0 0.0
        %3559 = vmatpush1.msra.mxu0 0.0
        %3560 = vmatprep.subr.mxu0 0.0
        %3561 = vmatpush1.msra.mxu0 0.0
        %3562 = vmatprep.subr.mxu0 0.0
        %3563 = vmatpush1.msra.mxu0 0.0
        %3564 = vmatprep.subr.mxu0 0.0
        %3565 = vmatpush1.msra.mxu0 0.0
        %3566 = vmatprep.subr.mxu0 0.0
        %3567 = vmatpush1.msra.mxu0 0.0
        %3568 = vmatprep.subr.mxu0 0.0
        %3569 = vmatpush1.msra.mxu0 0.0
        %3570 = vmatprep.subr.mxu0 0.0
        %3571 = vmatpush1.msra.mxu0 0.0
        %3572 = vmatprep.subr.mxu0 0.0
        %3573 = vmatpush1.msra.mxu0 0.0
        %3574 = vmatprep.subr.mxu0 0.0
        %3575 = vmatpush1.msra.mxu0 0.0
        %3576 = vmatprep.subr.mxu0 0.0
        %3577 = vmatpush1.msra.mxu0 0.0
        %3578 = vmatprep.subr.mxu0 0.0
        %3579 = vmatpush1.msra.mxu0 0.0
        %3580 = vmatprep.subr.mxu0 0.0
        %3581 = vmatpush1.msra.mxu0 0.0
        %3582 = vmatprep.subr.mxu0 0.0
        %3583 = vmatpush1.msra.mxu0 0.0
        %3584 = vmatprep.subr.mxu0 0.0
        %3585 = vmatpush1.msra.mxu0 0.0
        %3586 = vmatprep.subr.mxu0 0.0
        %3587 = vmatpush1.msra.mxu0 0.0
        %3588 = vmatprep.subr.mxu0 0.0
        %3589 = vmatpush1.msra.mxu0 0.0
        %3590 = vmatprep.subr.mxu0 0.0
        %3591 = vmatpush1.msra.mxu0 0.0
        %3592 = vmatprep.subr.mxu0 0.0
        %3593 = vmatpush1.msra.mxu0 0.0
        %3594 = vmatprep.subr.mxu0 0.0
        %3595 = vmatpush1.msra.mxu0 0.0
        %3596 = vmatprep.subr.mxu0 0.0
        %3597 = vmatpush1.msra.mxu0 0.0
        %3598 = vmatprep.subr.mxu0 0.0
        %3599 = vmatpush1.msra.mxu0 0.0
        %3600 = vmatprep.subr.mxu0 0.0
        %3601 = vmatpush1.msra.mxu0 0.0
        %3602 = vmatprep.subr.mxu0 0.0
        %3603 = vmatpush1.msra.mxu0 0.0
        %3604 = vmatprep.subr.mxu0 0.0
        %3605 = vmatpush1.msra.mxu0 0.0
        %3606 = vmatprep.subr.mxu0 0.0
        %3607 = vmatpush1.msra.mxu0 0.0
        %3608 = vmatprep.subr.mxu0 0.0
        %3609 = vmatpush1.msra.mxu0 0.0
        %3610 = vmatprep.subr.mxu0 0.0
        %3611 = vmatpush1.msra.mxu0 0.0
        %3612 = vmatprep.subr.mxu0 0.0
        %3613 = vmatpush1.msra.mxu0 0.0
        %3614 = vmatprep.subr.mxu0 0.0
        %3615 = vmatpush1.msra.mxu0 0.0
        %3616 = vmatprep.mubr.f32.mxu0 0.0
        %3617 = vmatmul.mubr.f32.gmra.mrb[0].mxu0 %v3550
        %v3618 = vpop.f32.mrb[0].mxu0
        %v3619 = vadd.f32 0.0, %v3618
        %v3620 = vpop.f32.mrb[0].mxu0
        %3621 = vdwg.mxu0
        %3624 = vrot.lane.b32.xlu0 %v3020, 96
        %v3625 = vpop.permute.xlu0 %3624
        %3626 = vrot.lane.b32.xlu0 %v3025, 96
        %v3627 = vpop.permute.xlu0 %3626
        %v3631 = vsel %vm3186, %v3540, 0
        %3633 = vmatprep.subr.mxu0 0.0
        %3634 = vmatpush1.msra.mxu0 %v3625
        %3635 = vmatprep.subr.mxu0 0.0
        %3636 = vmatpush1.msra.mxu0 %v3627
        %3637 = vmatprep.subr.mxu0 0.0
        %3638 = vmatpush1.msra.mxu0 0.0
        %3639 = vmatprep.subr.mxu0 0.0
        %3640 = vmatpush1.msra.mxu0 0.0
        %3641 = vmatprep.subr.mxu0 0.0
        %3642 = vmatpush1.msra.mxu0 0.0
        %3643 = vmatprep.subr.mxu0 0.0
        %3644 = vmatpush1.msra.mxu0 0.0
        %3645 = vmatprep.subr.mxu0 0.0
        %3646 = vmatpush1.msra.mxu0 0.0
        %3647 = vmatprep.subr.mxu0 0.0
        %3648 = vmatpush1.msra.mxu0 0.0
        %3649 = vmatprep.subr.mxu0 0.0
        %3650 = vmatpush1.msra.mxu0 0.0
        %3651 = vmatprep.subr.mxu0 0.0
        %3652 = vmatpush1.msra.mxu0 0.0
        %3653 = vmatprep.subr.mxu0 0.0
        %3654 = vmatpush1.msra.mxu0 0.0
        %3655 = vmatprep.subr.mxu0 0.0
        %3656 = vmatpush1.msra.mxu0 0.0
        %3657 = vmatprep.subr.mxu0 0.0
        %3658 = vmatpush1.msra.mxu0 0.0
        %3659 = vmatprep.subr.mxu0 0.0
        %3660 = vmatpush1.msra.mxu0 0.0
        %3661 = vmatprep.subr.mxu0 0.0
        %3662 = vmatpush1.msra.mxu0 0.0
        %3663 = vmatprep.subr.mxu0 0.0
        %3664 = vmatpush1.msra.mxu0 0.0
        %3665 = vmatprep.subr.mxu0 0.0
        %3666 = vmatpush1.msra.mxu0 0.0
        %3667 = vmatprep.subr.mxu0 0.0
        %3668 = vmatpush1.msra.mxu0 0.0
        %3669 = vmatprep.subr.mxu0 0.0
        %3670 = vmatpush1.msra.mxu0 0.0
        %3671 = vmatprep.subr.mxu0 0.0
        %3672 = vmatpush1.msra.mxu0 0.0
        %3673 = vmatprep.subr.mxu0 0.0
        %3674 = vmatpush1.msra.mxu0 0.0
        %3675 = vmatprep.subr.mxu0 0.0
        %3676 = vmatpush1.msra.mxu0 0.0
        %3677 = vmatprep.subr.mxu0 0.0
        %3678 = vmatpush1.msra.mxu0 0.0
        %3679 = vmatprep.subr.mxu0 0.0
        %3680 = vmatpush1.msra.mxu0 0.0
        %3681 = vmatprep.subr.mxu0 0.0
        %3682 = vmatpush1.msra.mxu0 0.0
        %3683 = vmatprep.subr.mxu0 0.0
        %3684 = vmatpush1.msra.mxu0 0.0
        %3685 = vmatprep.subr.mxu0 0.0
        %3686 = vmatpush1.msra.mxu0 0.0
        %3687 = vmatprep.subr.mxu0 0.0
        %3688 = vmatpush1.msra.mxu0 0.0
        %3689 = vmatprep.subr.mxu0 0.0
        %3690 = vmatpush1.msra.mxu0 0.0
        %3691 = vmatprep.subr.mxu0 0.0
        %3692 = vmatpush1.msra.mxu0 0.0
        %3693 = vmatprep.subr.mxu0 0.0
        %3694 = vmatpush1.msra.mxu0 0.0
        %3695 = vmatprep.subr.mxu0 0.0
        %3696 = vmatpush1.msra.mxu0 0.0
        %3697 = vmatprep.mubr.f32.mxu0 0.0
        %3698 = vmatmul.mubr.f32.gmra.mrb[0].mxu0 %v3631
        %v3699 = vpop.f32.mrb[0].mxu0
        %v3700 = vadd.f32 0.0, %v3699
        %v3701 = vpop.f32.mrb[0].mxu0
        %3702 = vdwg.mxu0
        %3703 = vrot.lane.b32.xlu0 %v2848, 64
        %v3704 = vpop.permute.xlu0 %3703
        %3705 = vrot.lane.b32.xlu0 %v2921, 64
        %v3706 = vpop.permute.xlu0 %3705
        %3707 = vrot.lane.b32.xlu0 %v2926, 64
        %v3708 = vpop.permute.xlu0 %3707
        %v3709 = vsel %vm1243, %v3704, 0
        %v3711 = vsel %vm1243, %v3706, 0
        %v3713 = vsel %vm1243, %v3708, 0
        %3715 = vmatprep.subr.mxu0 0.0
        %3716 = vmatpush1.xpose.msra.mxu0 %v3711
        %3717 = vmatprep.subr.mxu0 0.0
        %3718 = vmatpush1.xpose.msra.mxu0 %v3713
        %3719 = vmatprep.subr.mxu0 0.0
        %3720 = vmatpush1.xpose.msra.mxu0 0.0
        %3721 = vmatprep.subr.mxu0 0.0
        %3722 = vmatpush1.xpose.msra.mxu0 0.0
        %3723 = vmatprep.subr.mxu0 0.0
        %3724 = vmatpush1.xpose.msra.mxu0 0.0
        %3725 = vmatprep.subr.mxu0 0.0
        %3726 = vmatpush1.xpose.msra.mxu0 0.0
        %3727 = vmatprep.subr.mxu0 0.0
        %3728 = vmatpush1.xpose.msra.mxu0 0.0
        %3729 = vmatprep.subr.mxu0 0.0
        %3730 = vmatpush1.xpose.msra.mxu0 0.0
        %3731 = vmatprep.subr.mxu0 0.0
        %3732 = vmatpush1.xpose.msra.mxu0 0.0
        %3733 = vmatprep.subr.mxu0 0.0
        %3734 = vmatpush1.xpose.msra.mxu0 0.0
        %3735 = vmatprep.subr.mxu0 0.0
        %3736 = vmatpush1.xpose.msra.mxu0 0.0
        %3737 = vmatprep.subr.mxu0 0.0
        %3738 = vmatpush1.xpose.msra.mxu0 0.0
        %3739 = vmatprep.subr.mxu0 0.0
        %3740 = vmatpush1.xpose.msra.mxu0 0.0
        %3741 = vmatprep.subr.mxu0 0.0
        %3742 = vmatpush1.xpose.msra.mxu0 0.0
        %3743 = vmatprep.subr.mxu0 0.0
        %3744 = vmatpush1.xpose.msra.mxu0 0.0
        %3745 = vmatprep.subr.mxu0 0.0
        %3746 = vmatpush1.xpose.msra.mxu0 0.0
        %3747 = vmatprep.subr.mxu0 0.0
        %3748 = vmatpush1.xpose.msra.mxu0 0.0
        %3749 = vmatprep.subr.mxu0 0.0
        %3750 = vmatpush1.xpose.msra.mxu0 0.0
        %3751 = vmatprep.subr.mxu0 0.0
        %3752 = vmatpush1.xpose.msra.mxu0 0.0
        %3753 = vmatprep.subr.mxu0 0.0
        %3754 = vmatpush1.xpose.msra.mxu0 0.0
        %3755 = vmatprep.subr.mxu0 0.0
        %3756 = vmatpush1.xpose.msra.mxu0 0.0
        %3757 = vmatprep.subr.mxu0 0.0
        %3758 = vmatpush1.xpose.msra.mxu0 0.0
        %3759 = vmatprep.subr.mxu0 0.0
        %3760 = vmatpush1.xpose.msra.mxu0 0.0
        %3761 = vmatprep.subr.mxu0 0.0
        %3762 = vmatpush1.xpose.msra.mxu0 0.0
        %3763 = vmatprep.subr.mxu0 0.0
        %3764 = vmatpush1.xpose.msra.mxu0 0.0
        %3765 = vmatprep.subr.mxu0 0.0
        %3766 = vmatpush1.xpose.msra.mxu0 0.0
        %3767 = vmatprep.subr.mxu0 0.0
        %3768 = vmatpush1.xpose.msra.mxu0 0.0
        %3769 = vmatprep.subr.mxu0 0.0
        %3770 = vmatpush1.xpose.msra.mxu0 0.0
        %3771 = vmatprep.subr.mxu0 0.0
        %3772 = vmatpush1.xpose.msra.mxu0 0.0
        %3773 = vmatprep.subr.mxu0 0.0
        %3774 = vmatpush1.xpose.msra.mxu0 0.0
        %3775 = vmatprep.subr.mxu0 0.0
        %3776 = vmatpush1.xpose.msra.mxu0 0.0
        %3777 = vmatprep.subr.mxu0 0.0
        %3778 = vmatpush1.xpose.msra.mxu0 0.0
        %3779 = vmatprep.mubr.f32.mxu0 0.0
        %3780 = vmatmul.mubr.f32.gmra.mrb[0].mxu0 %v3709
        %v3781 = vpop.f32.mrb[0].mxu0
        %v3782 = vadd.f32 0.0, %v3781
        %v3783 = vpop.f32.mrb[0].mxu0
        %3784 = vdwg.mxu0
        %3785 = vrot.lane.b32.xlu0 %v2849, 64
        %v3786 = vpop.permute.xlu0 %3785
        %3787 = vrot.lane.b32.xlu0 %v2931, 64
        %v3788 = vpop.permute.xlu0 %3787
        %3789 = vrot.lane.b32.xlu0 %v2936, 64
        %v3790 = vpop.permute.xlu0 %3789
        %v3791 = vsel %vm1243, %v3786, 0
        %v3793 = vsel %vm1243, %v3788, 0
        %v3795 = vsel %vm1243, %v3790, 0
        %3797 = vmatprep.subr.mxu0 0.0
        %3798 = vmatpush1.xpose.msra.mxu0 %v3793
        %3799 = vmatprep.subr.mxu0 0.0
        %3800 = vmatpush1.xpose.msra.mxu0 %v3795
        %3801 = vmatprep.subr.mxu0 0.0
        %3802 = vmatpush1.xpose.msra.mxu0 0.0
        %3803 = vmatprep.subr.mxu0 0.0
        %3804 = vmatpush1.xpose.msra.mxu0 0.0
        %3805 = vmatprep.subr.mxu0 0.0
        %3806 = vmatpush1.xpose.msra.mxu0 0.0
        %3807 = vmatprep.subr.mxu0 0.0
        %3808 = vmatpush1.xpose.msra.mxu0 0.0
        %3809 = vmatprep.subr.mxu0 0.0
        %3810 = vmatpush1.xpose.msra.mxu0 0.0
        %3811 = vmatprep.subr.mxu0 0.0
        %3812 = vmatpush1.xpose.msra.mxu0 0.0
        %3813 = vmatprep.subr.mxu0 0.0
        %3814 = vmatpush1.xpose.msra.mxu0 0.0
        %3815 = vmatprep.subr.mxu0 0.0
        %3816 = vmatpush1.xpose.msra.mxu0 0.0
        %3817 = vmatprep.subr.mxu0 0.0
        %3818 = vmatpush1.xpose.msra.mxu0 0.0
        %3819 = vmatprep.subr.mxu0 0.0
        %3820 = vmatpush1.xpose.msra.mxu0 0.0
        %3821 = vmatprep.subr.mxu0 0.0
        %3822 = vmatpush1.xpose.msra.mxu0 0.0
        %3823 = vmatprep.subr.mxu0 0.0
        %3824 = vmatpush1.xpose.msra.mxu0 0.0
        %3825 = vmatprep.subr.mxu0 0.0
        %3826 = vmatpush1.xpose.msra.mxu0 0.0
        %3827 = vmatprep.subr.mxu0 0.0
        %3828 = vmatpush1.xpose.msra.mxu0 0.0
        %3829 = vmatprep.subr.mxu0 0.0
        %3830 = vmatpush1.xpose.msra.mxu0 0.0
        %3831 = vmatprep.subr.mxu0 0.0
        %3832 = vmatpush1.xpose.msra.mxu0 0.0
        %3833 = vmatprep.subr.mxu0 0.0
        %3834 = vmatpush1.xpose.msra.mxu0 0.0
        %3835 = vmatprep.subr.mxu0 0.0
        %3836 = vmatpush1.xpose.msra.mxu0 0.0
        %3837 = vmatprep.subr.mxu0 0.0
        %3838 = vmatpush1.xpose.msra.mxu0 0.0
        %3839 = vmatprep.subr.mxu0 0.0
        %3840 = vmatpush1.xpose.msra.mxu0 0.0
        %3841 = vmatprep.subr.mxu0 0.0
        %3842 = vmatpush1.xpose.msra.mxu0 0.0
        %3843 = vmatprep.subr.mxu0 0.0
        %3844 = vmatpush1.xpose.msra.mxu0 0.0
        %3845 = vmatprep.subr.mxu0 0.0
        %3846 = vmatpush1.xpose.msra.mxu0 0.0
        %3847 = vmatprep.subr.mxu0 0.0
        %3848 = vmatpush1.xpose.msra.mxu0 0.0
        %3849 = vmatprep.subr.mxu0 0.0
        %3850 = vmatpush1.xpose.msra.mxu0 0.0
        %3851 = vmatprep.subr.mxu0 0.0
        %3852 = vmatpush1.xpose.msra.mxu0 0.0
        %3853 = vmatprep.subr.mxu0 0.0
        %3854 = vmatpush1.xpose.msra.mxu0 0.0
        %3855 = vmatprep.subr.mxu0 0.0
        %3856 = vmatpush1.xpose.msra.mxu0 0.0
        %3857 = vmatprep.subr.mxu0 0.0
        %3858 = vmatpush1.xpose.msra.mxu0 0.0
        %3859 = vmatprep.subr.mxu0 0.0
        %3860 = vmatpush1.xpose.msra.mxu0 0.0
        %3861 = vmatprep.mubr.f32.mxu0 0.0
        %3862 = vmatmul.mubr.f32.gmra.mrb[0].mxu0 %v3791
        %v3863 = vpop.f32.mrb[0].mxu0
        %v3864 = vadd.f32 0.0, %v3863
        %v3865 = vpop.f32.mrb[0].mxu0
        %3866 = vdwg.mxu0
        %v3867 = vsel %vm3186, %v3782, -inf
        %3868 = vmax.xlane.f32.xlu0 %v3867
        %v3869 = vpop.xlane.xlu0 %3868
        %v3870 = vsel %vm3186, %v3864, -inf
        %3871 = vmax.xlane.f32.xlu0 %v3870
        %v3872 = vpop.xlane.xlu0 %3871
        %v3873 = vsub.f32 %v3782, %v3869
        %v3874 = vsub.f32 %v3864, %v3872
        %v3875 = vmul.f32 %v3873, 1.442695
        %v3876 = vpow.pop %v3875
        %v3877 = vmul.f32 %v3874, 1.442695
        %v3878 = vpow.pop %v3877
        %v3879 = vsel %vm3186, %v3876, 0.0
        %3880 = vadd.xlane.f32.xlu0 %v3879
        %v3881 = vpop.xlane.xlu0 %3880
        %v3882 = vsel %vm3186, %v3878, 0.0
        %3883 = vadd.xlane.f32.xlu0 %v3882
        %v3884 = vpop.xlane.xlu0 %3883
        %v3885 = vrcp.pop %v3881
        %v3886 = vmul.f32 %v3876, %v3885
        %v3887 = vrcp.pop %v3884
        %v3888 = vmul.f32 %v3878, %v3887
        %3889 = vrot.lane.b32.xlu0 %v3010, 64
        %v3890 = vpop.permute.xlu0 %3889
        %3891 = vrot.lane.b32.xlu0 %v3015, 64
        %v3892 = vpop.permute.xlu0 %3891
        %v3896 = vsel %vm3186, %v3886, 0
        %3898 = vmatprep.subr.mxu0 0.0
        %3899 = vmatpush1.msra.mxu0 %v3890
        %3900 = vmatprep.subr.mxu0 0.0
        %3901 = vmatpush1.msra.mxu0 %v3892
        %3902 = vmatprep.subr.mxu0 0.0
        %3903 = vmatpush1.msra.mxu0 0.0
        %3904 = vmatprep.subr.mxu0 0.0
        %3905 = vmatpush1.msra.mxu0 0.0
        %3906 = vmatprep.subr.mxu0 0.0
        %3907 = vmatpush1.msra.mxu0 0.0
        %3908 = vmatprep.subr.mxu0 0.0
        %3909 = vmatpush1.msra.mxu0 0.0
        %3910 = vmatprep.subr.mxu0 0.0
        %3911 = vmatpush1.msra.mxu0 0.0
        %3912 = vmatprep.subr.mxu0 0.0
        %3913 = vmatpush1.msra.mxu0 0.0
        %3914 = vmatprep.subr.mxu0 0.0
        %3915 = vmatpush1.msra.mxu0 0.0
        %3916 = vmatprep.subr.mxu0 0.0
        %3917 = vmatpush1.msra.mxu0 0.0
        %3918 = vmatprep.subr.mxu0 0.0
        %3919 = vmatpush1.msra.mxu0 0.0
        %3920 = vmatprep.subr.mxu0 0.0
        %3921 = vmatpush1.msra.mxu0 0.0
        %3922 = vmatprep.subr.mxu0 0.0
        %3923 = vmatpush1.msra.mxu0 0.0
        %3924 = vmatprep.subr.mxu0 0.0
        %3925 = vmatpush1.msra.mxu0 0.0
        %3926 = vmatprep.subr.mxu0 0.0
        %3927 = vmatpush1.msra.mxu0 0.0
        %3928 = vmatprep.subr.mxu0 0.0
        %3929 = vmatpush1.msra.mxu0 0.0
        %3930 = vmatprep.subr.mxu0 0.0
        %3931 = vmatpush1.msra.mxu0 0.0
        %3932 = vmatprep.subr.mxu0 0.0
        %3933 = vmatpush1.msra.mxu0 0.0
        %3934 = vmatprep.subr.mxu0 0.0
        %3935 = vmatpush1.msra.mxu0 0.0
        %3936 = vmatprep.subr.mxu0 0.0
        %3937 = vmatpush1.msra.mxu0 0.0
        %3938 = vmatprep.subr.mxu0 0.0
        %3939 = vmatpush1.msra.mxu0 0.0
        %3940 = vmatprep.subr.mxu0 0.0
        %3941 = vmatpush1.msra.mxu0 0.0
        %3942 = vmatprep.subr.mxu0 0.0
        %3943 = vmatpush1.msra.mxu0 0.0
        %3944 = vmatprep.subr.mxu0 0.0
        %3945 = vmatpush1.msra.mxu0 0.0
        %3946 = vmatprep.subr.mxu0 0.0
        %3947 = vmatpush1.msra.mxu0 0.0
        %3948 = vmatprep.subr.mxu0 0.0
        %3949 = vmatpush1.msra.mxu0 0.0
        %3950 = vmatprep.subr.mxu0 0.0
        %3951 = vmatpush1.msra.mxu0 0.0
        %3952 = vmatprep.subr.mxu0 0.0
        %3953 = vmatpush1.msra.mxu0 0.0
        %3954 = vmatprep.subr.mxu0 0.0
        %3955 = vmatpush1.msra.mxu0 0.0
        %3956 = vmatprep.subr.mxu0 0.0
        %3957 = vmatpush1.msra.mxu0 0.0
        %3958 = vmatprep.subr.mxu0 0.0
        %3959 = vmatpush1.msra.mxu0 0.0
        %3960 = vmatprep.subr.mxu0 0.0
        %3961 = vmatpush1.msra.mxu0 0.0
        %3962 = vmatprep.mubr.f32.mxu0 0.0
        %3963 = vmatmul.mubr.f32.gmra.mrb[0].mxu0 %v3896
        %v3964 = vpop.f32.mrb[0].mxu0
        %v3965 = vadd.f32 0.0, %v3964
        %v3966 = vpop.f32.mrb[0].mxu0
        %3967 = vdwg.mxu0
        %3968 = vrot.lane.b32.xlu0 %v3020, 64
        %v3969 = vpop.permute.xlu0 %3968
        %3970 = vrot.lane.b32.xlu0 %v3025, 64
        %v3971 = vpop.permute.xlu0 %3970
        %v3975 = vsel %vm3186, %v3888, 0
        %3977 = vmatprep.subr.mxu0 0.0
        %3978 = vmatpush1.msra.mxu0 %v3969
        %3979 = vmatprep.subr.mxu0 0.0
        %3980 = vmatpush1.msra.mxu0 %v3971
        %3981 = vmatprep.subr.mxu0 0.0
        %3982 = vmatpush1.msra.mxu0 0.0
        %3983 = vmatprep.subr.mxu0 0.0
        %3984 = vmatpush1.msra.mxu0 0.0
        %3985 = vmatprep.subr.mxu0 0.0
        %3986 = vmatpush1.msra.mxu0 0.0
        %3987 = vmatprep.subr.mxu0 0.0
        %3988 = vmatpush1.msra.mxu0 0.0
        %3989 = vmatprep.subr.mxu0 0.0
        %3990 = vmatpush1.msra.mxu0 0.0
        %3991 = vmatprep.subr.mxu0 0.0
        %3992 = vmatpush1.msra.mxu0 0.0
        %3993 = vmatprep.subr.mxu0 0.0
        %3994 = vmatpush1.msra.mxu0 0.0
        %3995 = vmatprep.subr.mxu0 0.0
        %3996 = vmatpush1.msra.mxu0 0.0
        %3997 = vmatprep.subr.mxu0 0.0
        %3998 = vmatpush1.msra.mxu0 0.0
        %3999 = vmatprep.subr.mxu0 0.0
        %4000 = vmatpush1.msra.mxu0 0.0
        %4001 = vmatprep.subr.mxu0 0.0
        %4002 = vmatpush1.msra.mxu0 0.0
        %4003 = vmatprep.subr.mxu0 0.0
        %4004 = vmatpush1.msra.mxu0 0.0
        %4005 = vmatprep.subr.mxu0 0.0
        %4006 = vmatpush1.msra.mxu0 0.0
        %4007 = vmatprep.subr.mxu0 0.0
        %4008 = vmatpush1.msra.mxu0 0.0
        %4009 = vmatprep.subr.mxu0 0.0
        %4010 = vmatpush1.msra.mxu0 0.0
        %4011 = vmatprep.subr.mxu0 0.0
        %4012 = vmatpush1.msra.mxu0 0.0
        %4013 = vmatprep.subr.mxu0 0.0
        %4014 = vmatpush1.msra.mxu0 0.0
        %4015 = vmatprep.subr.mxu0 0.0
        %4016 = vmatpush1.msra.mxu0 0.0
        %4017 = vmatprep.subr.mxu0 0.0
        %4018 = vmatpush1.msra.mxu0 0.0
        %4019 = vmatprep.subr.mxu0 0.0
        %4020 = vmatpush1.msra.mxu0 0.0
        %4021 = vmatprep.subr.mxu0 0.0
        %4022 = vmatpush1.msra.mxu0 0.0
        %4023 = vmatprep.subr.mxu0 0.0
        %4024 = vmatpush1.msra.mxu0 0.0
        %4025 = vmatprep.subr.mxu0 0.0
        %4026 = vmatpush1.msra.mxu0 0.0
        %4027 = vmatprep.subr.mxu0 0.0
        %4028 = vmatpush1.msra.mxu0 0.0
        %4029 = vmatprep.subr.mxu0 0.0
        %4030 = vmatpush1.msra.mxu0 0.0
        %4031 = vmatprep.subr.mxu0 0.0
        %4032 = vmatpush1.msra.mxu0 0.0
        %4033 = vmatprep.subr.mxu0 0.0
        %4034 = vmatpush1.msra.mxu0 0.0
        %4035 = vmatprep.subr.mxu0 0.0
        %4036 = vmatpush1.msra.mxu0 0.0
        %4037 = vmatprep.subr.mxu0 0.0
        %4038 = vmatpush1.msra.mxu0 0.0
        %4039 = vmatprep.subr.mxu0 0.0
        %4040 = vmatpush1.msra.mxu0 0.0
        %4041 = vmatprep.mubr.f32.mxu0 0.0
        %4042 = vmatmul.mubr.f32.gmra.mrb[0].mxu0 %v3975
        %v4043 = vpop.f32.mrb[0].mxu0
        %v4044 = vadd.f32 0.0, %v4043
        %v4045 = vpop.f32.mrb[0].mxu0
        %4046 = vdwg.mxu0
        %4047 = vrot.lane.b32.xlu0 %v2848, 32
        %v4048 = vpop.permute.xlu0 %4047
        %4049 = vrot.lane.b32.xlu0 %v2921, 32
        %v4050 = vpop.permute.xlu0 %4049
        %4051 = vrot.lane.b32.xlu0 %v2926, 32
        %v4052 = vpop.permute.xlu0 %4051
        %v4053 = vsel %vm1243, %v4048, 0
        %v4055 = vsel %vm1243, %v4050, 0
        %v4057 = vsel %vm1243, %v4052, 0
        %4059 = vmatprep.subr.mxu0 0.0
        %4060 = vmatpush1.xpose.msra.mxu0 %v4055
        %4061 = vmatprep.subr.mxu0 0.0
        %4062 = vmatpush1.xpose.msra.mxu0 %v4057
        %4063 = vmatprep.subr.mxu0 0.0
        %4064 = vmatpush1.xpose.msra.mxu0 0.0
        %4065 = vmatprep.subr.mxu0 0.0
        %4066 = vmatpush1.xpose.msra.mxu0 0.0
        %4067 = vmatprep.subr.mxu0 0.0
        %4068 = vmatpush1.xpose.msra.mxu0 0.0
        %4069 = vmatprep.subr.mxu0 0.0
        %4070 = vmatpush1.xpose.msra.mxu0 0.0
        %4071 = vmatprep.subr.mxu0 0.0
        %4072 = vmatpush1.xpose.msra.mxu0 0.0
        %4073 = vmatprep.subr.mxu0 0.0
        %4074 = vmatpush1.xpose.msra.mxu0 0.0
        %4075 = vmatprep.subr.mxu0 0.0
        %4076 = vmatpush1.xpose.msra.mxu0 0.0
        %4077 = vmatprep.subr.mxu0 0.0
        %4078 = vmatpush1.xpose.msra.mxu0 0.0
        %4079 = vmatprep.subr.mxu0 0.0
        %4080 = vmatpush1.xpose.msra.mxu0 0.0
        %4081 = vmatprep.subr.mxu0 0.0
        %4082 = vmatpush1.xpose.msra.mxu0 0.0
        %4083 = vmatprep.subr.mxu0 0.0
        %4084 = vmatpush1.xpose.msra.mxu0 0.0
        %4085 = vmatprep.subr.mxu0 0.0
        %4086 = vmatpush1.xpose.msra.mxu0 0.0
        %4087 = vmatprep.subr.mxu0 0.0
        %4088 = vmatpush1.xpose.msra.mxu0 0.0
        %4089 = vmatprep.subr.mxu0 0.0
        %4090 = vmatpush1.xpose.msra.mxu0 0.0
        %4091 = vmatprep.subr.mxu0 0.0
        %4092 = vmatpush1.xpose.msra.mxu0 0.0
        %4093 = vmatprep.subr.mxu0 0.0
        %4094 = vmatpush1.xpose.msra.mxu0 0.0
        %4095 = vmatprep.subr.mxu0 0.0
        %4096 = vmatpush1.xpose.msra.mxu0 0.0
        %4097 = vmatprep.subr.mxu0 0.0
        %4098 = vmatpush1.xpose.msra.mxu0 0.0
        %4099 = vmatprep.subr.mxu0 0.0
        %4100 = vmatpush1.xpose.msra.mxu0 0.0
        %4101 = vmatprep.subr.mxu0 0.0
        %4102 = vmatpush1.xpose.msra.mxu0 0.0
        %4103 = vmatprep.subr.mxu0 0.0
        %4104 = vmatpush1.xpose.msra.mxu0 0.0
        %4105 = vmatprep.subr.mxu0 0.0
        %4106 = vmatpush1.xpose.msra.mxu0 0.0
        %4107 = vmatprep.subr.mxu0 0.0
        %4108 = vmatpush1.xpose.msra.mxu0 0.0
        %4109 = vmatprep.subr.mxu0 0.0
        %4110 = vmatpush1.xpose.msra.mxu0 0.0
        %4111 = vmatprep.subr.mxu0 0.0
        %4112 = vmatpush1.xpose.msra.mxu0 0.0
        %4113 = vmatprep.subr.mxu0 0.0
        %4114 = vmatpush1.xpose.msra.mxu0 0.0
        %4115 = vmatprep.subr.mxu0 0.0
        %4116 = vmatpush1.xpose.msra.mxu0 0.0
        %4117 = vmatprep.subr.mxu0 0.0
        %4118 = vmatpush1.xpose.msra.mxu0 0.0
        %4119 = vmatprep.subr.mxu0 0.0
        %4120 = vmatpush1.xpose.msra.mxu0 0.0
        %4121 = vmatprep.subr.mxu0 0.0
        %4122 = vmatpush1.xpose.msra.mxu0 0.0
        %4123 = vmatprep.mubr.f32.mxu0 0.0
        %4124 = vmatmul.mubr.f32.gmra.mrb[0].mxu0 %v4053
        %v4125 = vpop.f32.mrb[0].mxu0
        %v4126 = vadd.f32 0.0, %v4125
        %v4127 = vpop.f32.mrb[0].mxu0
        %4128 = vdwg.mxu0
        %4129 = vrot.lane.b32.xlu0 %v2849, 32
        %v4130 = vpop.permute.xlu0 %4129
        %4131 = vrot.lane.b32.xlu0 %v2931, 32
        %v4132 = vpop.permute.xlu0 %4131
        %4133 = vrot.lane.b32.xlu0 %v2936, 32
        %v4134 = vpop.permute.xlu0 %4133
        %v4135 = vsel %vm1243, %v4130, 0
        %v4137 = vsel %vm1243, %v4132, 0
        %v4139 = vsel %vm1243, %v4134, 0
        %4141 = vmatprep.subr.mxu0 0.0
        %4142 = vmatpush1.xpose.msra.mxu0 %v4137
        %4143 = vmatprep.subr.mxu0 0.0
        %4144 = vmatpush1.xpose.msra.mxu0 %v4139
        %4145 = vmatprep.subr.mxu0 0.0
        %4146 = vmatpush1.xpose.msra.mxu0 0.0
        %4147 = vmatprep.subr.mxu0 0.0
        %4148 = vmatpush1.xpose.msra.mxu0 0.0
        %4149 = vmatprep.subr.mxu0 0.0
        %4150 = vmatpush1.xpose.msra.mxu0 0.0
        %4151 = vmatprep.subr.mxu0 0.0
        %4152 = vmatpush1.xpose.msra.mxu0 0.0
        %4153 = vmatprep.subr.mxu0 0.0
        %4154 = vmatpush1.xpose.msra.mxu0 0.0
        %4155 = vmatprep.subr.mxu0 0.0
        %4156 = vmatpush1.xpose.msra.mxu0 0.0
        %4157 = vmatprep.subr.mxu0 0.0
        %4158 = vmatpush1.xpose.msra.mxu0 0.0
        %4159 = vmatprep.subr.mxu0 0.0
        %4160 = vmatpush1.xpose.msra.mxu0 0.0
        %4161 = vmatprep.subr.mxu0 0.0
        %4162 = vmatpush1.xpose.msra.mxu0 0.0
        %4163 = vmatprep.subr.mxu0 0.0
        %4164 = vmatpush1.xpose.msra.mxu0 0.0
        %4165 = vmatprep.subr.mxu0 0.0
        %4166 = vmatpush1.xpose.msra.mxu0 0.0
        %4167 = vmatprep.subr.mxu0 0.0
        %4168 = vmatpush1.xpose.msra.mxu0 0.0
        %4169 = vmatprep.subr.mxu0 0.0
        %4170 = vmatpush1.xpose.msra.mxu0 0.0
        %4171 = vmatprep.subr.mxu0 0.0
        %4172 = vmatpush1.xpose.msra.mxu0 0.0
        %4173 = vmatprep.subr.mxu0 0.0
        %4174 = vmatpush1.xpose.msra.mxu0 0.0
        %4175 = vmatprep.subr.mxu0 0.0
        %4176 = vmatpush1.xpose.msra.mxu0 0.0
        %4177 = vmatprep.subr.mxu0 0.0
        %4178 = vmatpush1.xpose.msra.mxu0 0.0
        %4179 = vmatprep.subr.mxu0 0.0
        %4180 = vmatpush1.xpose.msra.mxu0 0.0
        %4181 = vmatprep.subr.mxu0 0.0
        %4182 = vmatpush1.xpose.msra.mxu0 0.0
        %4183 = vmatprep.subr.mxu0 0.0
        %4184 = vmatpush1.xpose.msra.mxu0 0.0
        %4185 = vmatprep.subr.mxu0 0.0
        %4186 = vmatpush1.xpose.msra.mxu0 0.0
        %4187 = vmatprep.subr.mxu0 0.0
        %4188 = vmatpush1.xpose.msra.mxu0 0.0
        %4189 = vmatprep.subr.mxu0 0.0
        %4190 = vmatpush1.xpose.msra.mxu0 0.0
        %4191 = vmatprep.subr.mxu0 0.0
        %4192 = vmatpush1.xpose.msra.mxu0 0.0
        %4193 = vmatprep.subr.mxu0 0.0
        %4194 = vmatpush1.xpose.msra.mxu0 0.0
        %4195 = vmatprep.subr.mxu0 0.0
        %4196 = vmatpush1.xpose.msra.mxu0 0.0
        %4197 = vmatprep.subr.mxu0 0.0
        %4198 = vmatpush1.xpose.msra.mxu0 0.0
        %4199 = vmatprep.subr.mxu0 0.0
        %4200 = vmatpush1.xpose.msra.mxu0 0.0
        %4201 = vmatprep.subr.mxu0 0.0
        %4202 = vmatpush1.xpose.msra.mxu0 0.0
        %4203 = vmatprep.subr.mxu0 0.0
        %4204 = vmatpush1.xpose.msra.mxu0 0.0
        %4205 = vmatprep.mubr.f32.mxu0 0.0
        %4206 = vmatmul.mubr.f32.gmra.mrb[0].mxu0 %v4135
        %v4207 = vpop.f32.mrb[0].mxu0
        %v4208 = vadd.f32 0.0, %v4207
        %v4209 = vpop.f32.mrb[0].mxu0
        %4210 = vdwg.mxu0
        %v4211 = vsel %vm3186, %v4126, -inf
        %4212 = vmax.xlane.f32.xlu0 %v4211
        %v4213 = vpop.xlane.xlu0 %4212
        %v4214 = vsel %vm3186, %v4208, -inf
        %4215 = vmax.xlane.f32.xlu0 %v4214
        %v4216 = vpop.xlane.xlu0 %4215
        %v4217 = vsub.f32 %v4126, %v4213
        %v4218 = vsub.f32 %v4208, %v4216
        %v4219 = vmul.f32 %v4217, 1.442695
        %v4220 = vpow.pop %v4219
        %v4221 = vmul.f32 %v4218, 1.442695
        %v4222 = vpow.pop %v4221
        %v4223 = vsel %vm3186, %v4220, 0.0
        %4224 = vadd.xlane.f32.xlu0 %v4223
        %v4225 = vpop.xlane.xlu0 %4224
        %v4226 = vsel %vm3186, %v4222, 0.0
        %4227 = vadd.xlane.f32.xlu0 %v4226
        %v4228 = vpop.xlane.xlu0 %4227
        %v4229 = vrcp.pop %v4225
        %v4230 = vmul.f32 %v4220, %v4229
        %v4231 = vrcp.pop %v4228
        %v4232 = vmul.f32 %v4222, %v4231
        %4233 = vrot.lane.b32.xlu0 %v3010, 32
        %v4234 = vpop.permute.xlu0 %4233
        %4235 = vrot.lane.b32.xlu0 %v3015, 32
        %v4236 = vpop.permute.xlu0 %4235
        %v4240 = vsel %vm3186, %v4230, 0
        %4242 = vmatprep.subr.mxu0 0.0
        %4243 = vmatpush1.msra.mxu0 %v4234
        %4244 = vmatprep.subr.mxu0 0.0
        %4245 = vmatpush1.msra.mxu0 %v4236
        %4246 = vmatprep.subr.mxu0 0.0
        %4247 = vmatpush1.msra.mxu0 0.0
        %4248 = vmatprep.subr.mxu0 0.0
        %4249 = vmatpush1.msra.mxu0 0.0
        %4250 = vmatprep.subr.mxu0 0.0
        %4251 = vmatpush1.msra.mxu0 0.0
        %4252 = vmatprep.subr.mxu0 0.0
        %4253 = vmatpush1.msra.mxu0 0.0
        %4254 = vmatprep.subr.mxu0 0.0
        %4255 = vmatpush1.msra.mxu0 0.0
        %4256 = vmatprep.subr.mxu0 0.0
        %4257 = vmatpush1.msra.mxu0 0.0
        %4258 = vmatprep.subr.mxu0 0.0
        %4259 = vmatpush1.msra.mxu0 0.0
        %4260 = vmatprep.subr.mxu0 0.0
        %4261 = vmatpush1.msra.mxu0 0.0
        %4262 = vmatprep.subr.mxu0 0.0
        %4263 = vmatpush1.msra.mxu0 0.0
        %4264 = vmatprep.subr.mxu0 0.0
        %4265 = vmatpush1.msra.mxu0 0.0
        %4266 = vmatprep.subr.mxu0 0.0
        %4267 = vmatpush1.msra.mxu0 0.0
        %4268 = vmatprep.subr.mxu0 0.0
        %4269 = vmatpush1.msra.mxu0 0.0
        %4270 = vmatprep.subr.mxu0 0.0
        %4271 = vmatpush1.msra.mxu0 0.0
        %4272 = vmatprep.subr.mxu0 0.0
        %4273 = vmatpush1.msra.mxu0 0.0
        %4274 = vmatprep.subr.mxu0 0.0
        %4275 = vmatpush1.msra.mxu0 0.0
        %4276 = vmatprep.subr.mxu0 0.0
        %4277 = vmatpush1.msra.mxu0 0.0
        %4278 = vmatprep.subr.mxu0 0.0
        %4279 = vmatpush1.msra.mxu0 0.0
        %4280 = vmatprep.subr.mxu0 0.0
        %4281 = vmatpush1.msra.mxu0 0.0
        %4282 = vmatprep.subr.mxu0 0.0
        %4283 = vmatpush1.msra.mxu0 0.0
        %4284 = vmatprep.subr.mxu0 0.0
        %4285 = vmatpush1.msra.mxu0 0.0
        %4286 = vmatprep.subr.mxu0 0.0
        %4287 = vmatpush1.msra.mxu0 0.0
        %4288 = vmatprep.subr.mxu0 0.0
        %4289 = vmatpush1.msra.mxu0 0.0
        %4290 = vmatprep.subr.mxu0 0.0
        %4291 = vmatpush1.msra.mxu0 0.0
        %4292 = vmatprep.subr.mxu0 0.0
        %4293 = vmatpush1.msra.mxu0 0.0
        %4294 = vmatprep.subr.mxu0 0.0
        %4295 = vmatpush1.msra.mxu0 0.0
        %4296 = vmatprep.subr.mxu0 0.0
        %4297 = vmatpush1.msra.mxu0 0.0
        %4298 = vmatprep.subr.mxu0 0.0
        %4299 = vmatpush1.msra.mxu0 0.0
        %4300 = vmatprep.subr.mxu0 0.0
        %4301 = vmatpush1.msra.mxu0 0.0
        %4302 = vmatprep.subr.mxu0 0.0
        %4303 = vmatpush1.msra.mxu0 0.0
        %4304 = vmatprep.subr.mxu0 0.0
        %4305 = vmatpush1.msra.mxu0 0.0
        %4306 = vmatprep.mubr.f32.mxu0 0.0
        %4307 = vmatmul.mubr.f32.gmra.mrb[0].mxu0 %v4240
        %v4308 = vpop.f32.mrb[0].mxu0
        %v4309 = vadd.f32 0.0, %v4308
        %v4310 = vpop.f32.mrb[0].mxu0
        %4311 = vdwg.mxu0
        %4312 = vrot.lane.b32.xlu0 %v3020, 32
        %v4313 = vpop.permute.xlu0 %4312
        %4314 = vrot.lane.b32.xlu0 %v3025, 32
        %v4315 = vpop.permute.xlu0 %4314
        %v4319 = vsel %vm3186, %v4232, 0
        %4321 = vmatprep.subr.mxu0 0.0
        %4322 = vmatpush1.msra.mxu0 %v4313
        %4323 = vmatprep.subr.mxu0 0.0
        %4324 = vmatpush1.msra.mxu0 %v4315
        %4325 = vmatprep.subr.mxu0 0.0
        %4326 = vmatpush1.msra.mxu0 0.0
        %4327 = vmatprep.subr.mxu0 0.0
        %4328 = vmatpush1.msra.mxu0 0.0
        %4329 = vmatprep.subr.mxu0 0.0
        %4330 = vmatpush1.msra.mxu0 0.0
        %4331 = vmatprep.subr.mxu0 0.0
        %4332 = vmatpush1.msra.mxu0 0.0
        %4333 = vmatprep.subr.mxu0 0.0
        %4334 = vmatpush1.msra.mxu0 0.0
        %4335 = vmatprep.subr.mxu0 0.0
        %4336 = vmatpush1.msra.mxu0 0.0
        %4337 = vmatprep.subr.mxu0 0.0
        %4338 = vmatpush1.msra.mxu0 0.0
        %4339 = vmatprep.subr.mxu0 0.0
        %4340 = vmatpush1.msra.mxu0 0.0
        %4341 = vmatprep.subr.mxu0 0.0
        %4342 = vmatpush1.msra.mxu0 0.0
        %4343 = vmatprep.subr.mxu0 0.0
        %4344 = vmatpush1.msra.mxu0 0.0
        %4345 = vmatprep.subr.mxu0 0.0
        %4346 = vmatpush1.msra.mxu0 0.0
        %4347 = vmatprep.subr.mxu0 0.0
        %4348 = vmatpush1.msra.mxu0 0.0
        %4349 = vmatprep.subr.mxu0 0.0
        %4350 = vmatpush1.msra.mxu0 0.0
        %4351 = vmatprep.subr.mxu0 0.0
        %4352 = vmatpush1.msra.mxu0 0.0
        %4353 = vmatprep.subr.mxu0 0.0
        %4354 = vmatpush1.msra.mxu0 0.0
        %4355 = vmatprep.subr.mxu0 0.0
        %4356 = vmatpush1.msra.mxu0 0.0
        %4357 = vmatprep.subr.mxu0 0.0
        %4358 = vmatpush1.msra.mxu0 0.0
        %4359 = vmatprep.subr.mxu0 0.0
        %4360 = vmatpush1.msra.mxu0 0.0
        %4361 = vmatprep.subr.mxu0 0.0
        %4362 = vmatpush1.msra.mxu0 0.0
        %4363 = vmatprep.subr.mxu0 0.0
        %4364 = vmatpush1.msra.mxu0 0.0
        %4365 = vmatprep.subr.mxu0 0.0
        %4366 = vmatpush1.msra.mxu0 0.0
        %4367 = vmatprep.subr.mxu0 0.0
        %4368 = vmatpush1.msra.mxu0 0.0
        %4369 = vmatprep.subr.mxu0 0.0
        %4370 = vmatpush1.msra.mxu0 0.0
        %4371 = vmatprep.subr.mxu0 0.0
        %4372 = vmatpush1.msra.mxu0 0.0
        %4373 = vmatprep.subr.mxu0 0.0
        %4374 = vmatpush1.msra.mxu0 0.0
        %4375 = vmatprep.subr.mxu0 0.0
        %4376 = vmatpush1.msra.mxu0 0.0
        %4377 = vmatprep.subr.mxu0 0.0
        %4378 = vmatpush1.msra.mxu0 0.0
        %4379 = vmatprep.subr.mxu0 0.0
        %4380 = vmatpush1.msra.mxu0 0.0
        %4381 = vmatprep.subr.mxu0 0.0
        %4382 = vmatpush1.msra.mxu0 0.0
        %4383 = vmatprep.subr.mxu0 0.0
        %4384 = vmatpush1.msra.mxu0 0.0
        %4385 = vmatprep.mubr.f32.mxu0 0.0
        %4386 = vmatmul.mubr.f32.gmra.mrb[0].mxu0 %v4319
        %v4387 = vpop.f32.mrb[0].mxu0
        %v4388 = vadd.f32 0.0, %v4387
        %v4389 = vpop.f32.mrb[0].mxu0
        %4390 = vdwg.mxu0
        %4393 = vrot.lane.b32.xlu0 %v3619, 32
        %v4394 = vpop.permute.xlu0 %4393
        %4395 = vrot.lane.b32.xlu0 %v3700, 32
        %v4396 = vpop.permute.xlu0 %4395
        %4401 = vrot.lane.b32.xlu0 %v3965, 64
        %v4402 = vpop.permute.xlu0 %4401
        %4403 = vrot.lane.b32.xlu0 %v4044, 64
        %v4404 = vpop.permute.xlu0 %4403
        %4409 = vrot.lane.b32.xlu0 %v4309, 96
        %v4410 = vpop.permute.xlu0 %4409
        %4411 = vrot.lane.b32.xlu0 %v4388, 96
        %v4412 = vpop.permute.xlu0 %4411
        %v4415 = vsel %vm1243, %v3279, %v4394
        %v4416 = vsel %vm1243, %v3352, %v4396
        %v4417 = vsel %vm2583, %v4415, %v4402
        %v4418 = vsel %vm2583, %v4416, %v4404
        %v4419 = vsel %vm2586, %v4417, %v4410
        %v4420 = vsel %vm2586, %v4418, %v4412
        %v4421 = vlaneseq
        %v4422 = vshrl.u32 %v4421, 7
        %v4423 = vsub.s32 7, %v4422
        %v4424 = vrot.slane %v934, %v4423
        %4425 = vmatprep.subr.mxu0 0.0
        %4426 = vmatpush1.msra.mxu0 %v2753
        %4427 = vmatprep.subr.mxu0 0.0
        %4428 = vmatpush1.msra.mxu0 %v2754
        %4429 = vmatprep.subr.mxu0 0.0
        %4430 = vmatpush1.msra.mxu0 %v2755
        %4431 = vmatprep.subr.mxu0 0.0
        %4432 = vmatpush1.msra.mxu0 %v2756
        %4433 = vmatprep.subr.mxu0 0.0
        %4434 = vmatpush1.msra.mxu0 %v2757
        %4435 = vmatprep.subr.mxu0 0.0
        %4436 = vmatpush1.msra.mxu0 %v2758
        %4437 = vmatprep.subr.mxu0 0.0
        %4438 = vmatpush1.msra.mxu0 %v2759
        %4439 = vmatprep.subr.mxu0 0.0
        %4440 = vmatpush1.msra.mxu0 %v2760
        %4441 = vmatprep.subr.mxu0 0.0
        %4442 = vmatpush1.msra.mxu0 %v2761
        %4443 = vmatprep.subr.mxu0 0.0
        %4444 = vmatpush1.msra.mxu0 %v2762
        %4445 = vmatprep.subr.mxu0 0.0
        %4446 = vmatpush1.msra.mxu0 %v2763
        %4447 = vmatprep.subr.mxu0 0.0
        %4448 = vmatpush1.msra.mxu0 %v2764
        %4449 = vmatprep.subr.mxu0 0.0
        %4450 = vmatpush1.msra.mxu0 %v2765
        %4451 = vmatprep.subr.mxu0 0.0
        %4452 = vmatpush1.msra.mxu0 %v2766
        %4453 = vmatprep.subr.mxu0 0.0
        %4454 = vmatpush1.msra.mxu0 %v2767
        %4455 = vmatprep.subr.mxu0 0.0
        %4456 = vmatpush1.msra.mxu0 %v2768
        %4457 = vmatprep.subr.mxu0 0.0
        %4458 = vmatpush1.msra.mxu0 0.0
        %4459 = vmatprep.subr.mxu0 0.0
        %4460 = vmatpush1.msra.mxu0 0.0
        %4461 = vmatprep.subr.mxu0 0.0
        %4462 = vmatpush1.msra.mxu0 0.0
        %4463 = vmatprep.subr.mxu0 0.0
        %4464 = vmatpush1.msra.mxu0 0.0
        %4465 = vmatprep.subr.mxu0 0.0
        %4466 = vmatpush1.msra.mxu0 0.0
        %4467 = vmatprep.subr.mxu0 0.0
        %4468 = vmatpush1.msra.mxu0 0.0
        %4469 = vmatprep.subr.mxu0 0.0
        %4470 = vmatpush1.msra.mxu0 0.0
        %4471 = vmatprep.subr.mxu0 0.0
        %4472 = vmatpush1.msra.mxu0 0.0
        %4473 = vmatprep.subr.mxu0 0.0
        %4474 = vmatpush1.msra.mxu0 0.0
        %4475 = vmatprep.subr.mxu0 0.0
        %4476 = vmatpush1.msra.mxu0 0.0
        %4477 = vmatprep.subr.mxu0 0.0
        %4478 = vmatpush1.msra.mxu0 0.0
        %4479 = vmatprep.subr.mxu0 0.0
        %4480 = vmatpush1.msra.mxu0 0.0
        %4481 = vmatprep.subr.mxu0 0.0
        %4482 = vmatpush1.msra.mxu0 0.0
        %4483 = vmatprep.subr.mxu0 0.0
        %4484 = vmatpush1.msra.mxu0 0.0
        %4485 = vmatprep.subr.mxu0 0.0
        %4486 = vmatpush1.msra.mxu0 0.0
        %4487 = vmatprep.subr.mxu0 0.0
        %4488 = vmatpush1.msra.mxu0 0.0
        %4489 = vmatprep.mubr.f32.mxu0 0.0
        %4490 = vmatmul.mubr.f32.gmra.mrb[0].mxu0 %v4419
        %v4491 = vpop.f32.mrb[0].mxu0
        %v4492 = vadd.f32 %v4424, %v4491
        %v4493 = vpop.f32.mrb[0].mxu0
        %4494 = vmatprep.mubr.f32.mxu0 0.0
        %4495 = vmatmul.mubr.f32.gmra.mrb[0].mxu0 %v4420
        %v4496 = vpop.f32.mrb[0].mxu0
        %v4497 = vadd.f32 %v4424, %v4496
        %v4498 = vpop.f32.mrb[0].mxu0
        %4499 = vdwg.mxu0
        %v4500 = vadd.f32 %v2703, %v4492
        %v4501 = vadd.f32 %v2704, %v4497
        %4502 = vadd.xlane.f32.xlu0 %v4500
        %v4503 = vpop.xlane.xlu0 %4502
        %4504 = vadd.xlane.f32.xlu0 %v4501
        %v4505 = vpop.xlane.xlu0 %4504
        %v4506 = vmul.f32 %v4503, %v2674
        %v4507 = vmul.f32 %v4505, %v2674
        %v4508 = vsub.f32 %v4500, %v4506
        %v4509 = vsub.f32 %v4501, %v4507
        %v4510 = vmul.f32 %v4508, %v4508
        %v4511 = vmul.f32 %v4509, %v4509
        %4512 = vadd.xlane.f32.xlu0 %v4510
        %v4513 = vpop.xlane.xlu0 %4512
        %4514 = vadd.xlane.f32.xlu0 %v4511
        %v4515 = vpop.xlane.xlu0 %4514
        %v4516 = vmul.f32 %v4513, %v2674
        %v4517 = vmul.f32 %v4515, %v2674
        %v4518 = vadd.f32 %v4516, 1e-05
        %v4519 = vadd.f32 %v4517, 1e-05
        %v4520 = vrsqrt.pop %v4518
        %v4521 = vrsqrt.pop %v4519
        %v4522 = vmul.f32 %v4508, %v4520
        %v4523 = vmul.f32 %v4509, %v4521
        %v4524 = vlaneseq
        %v4525 = vshrl.u32 %v4524, 7
        %v4526 = vsub.s32 3, %v4525
        %v4527 = vrot.slane %v935, %v4526
        %v4528 = vmul.f32 %v4522, %v4527
        %v4529 = vmul.f32 %v4523, %v4527
        %v4530 = vlaneseq
        %v4531 = vshrl.u32 %v4530, 7
        %v4532 = vsub.s32 4, %v4531
        %v4533 = vrot.slane %v935, %v4532
        %v4534 = vadd.f32 %v4528, %v4533
        %v4535 = vadd.f32 %v4529, %v4533
        %v4536 = vld [vmem:[%s787] sm:$0xff]
        %v4537 = vld [vmem:[%s787 + $0x8] sm:$0xff]
        %v4538 = vld [vmem:[%s787 + $0x10] sm:$0xff]
        %v4539 = vld [vmem:[%s787 + $0x18] sm:$0xff]
        %v4540 = vld [vmem:[%s787 + $0x20] sm:$0xff]
        %v4541 = vld [vmem:[%s787 + $0x28] sm:$0xff]
        %v4542 = vld [vmem:[%s787 + $0x30] sm:$0xff]
        %v4543 = vld [vmem:[%s787 + $0x38] sm:$0xff]
        %v4544 = vld [vmem:[%s787 + $0x40] sm:$0xff]
        %v4545 = vld [vmem:[%s787 + $0x48] sm:$0xff]
        %v4546 = vld [vmem:[%s787 + $0x50] sm:$0xff]
        %v4547 = vld [vmem:[%s787 + $0x58] sm:$0xff]
        %v4548 = vld [vmem:[%s787 + $0x60] sm:$0xff]
        %v4549 = vld [vmem:[%s787 + $0x68] sm:$0xff]
        %v4550 = vld [vmem:[%s787 + $0x70] sm:$0xff]
        %v4551 = vld [vmem:[%s787 + $0x78] sm:$0xff]
        %v4552 = vld [vmem:[%s787 + $0x80] sm:$0xff]
        %v4553 = vld [vmem:[%s787 + $0x88] sm:$0xff]
        %v4554 = vld [vmem:[%s787 + $0x90] sm:$0xff]
        %v4555 = vld [vmem:[%s787 + $0x98] sm:$0xff]
        %v4556 = vld [vmem:[%s787 + $0xa0] sm:$0xff]
        %v4557 = vld [vmem:[%s787 + $0xa8] sm:$0xff]
        %v4558 = vld [vmem:[%s787 + $0xb0] sm:$0xff]
        %v4559 = vld [vmem:[%s787 + $0xb8] sm:$0xff]
        %v4560 = vld [vmem:[%s787 + $0xc0] sm:$0xff]
        %v4561 = vld [vmem:[%s787 + $0xc8] sm:$0xff]
        %v4562 = vld [vmem:[%s787 + $0xd0] sm:$0xff]
        %v4563 = vld [vmem:[%s787 + $0xd8] sm:$0xff]
        %v4564 = vld [vmem:[%s787 + $0xe0] sm:$0xff]
        %v4565 = vld [vmem:[%s787 + $0xe8] sm:$0xff]
        %v4566 = vld [vmem:[%s787 + $0xf0] sm:$0xff]
        %v4567 = vld [vmem:[%s787 + $0xf8] sm:$0xff]
        %v4568 = vld [vmem:[%s922] sm:$0x3]
        %v4570 = vlaneseq
        %v4571 = vshrl.u32 %v4570, 7
        %v4572 = vsub.s32 0, %v4571
        %v4573 = vrot.slane %v4568, %v4572
        %v4574 = vlaneseq
        %v4575 = vshrl.u32 %v4574, 7
        %v4576 = vsub.s32 1, %v4575
        %v4577 = vrot.slane %v4568, %v4576
        %4580 = vmatprep.subr.mxu0 %v4537
        %4581 = vmatpush1.msra.mxu0 %v4536
        %4582 = vmatprep.subr.mxu0 %v4539
        %4583 = vmatpush1.msra.mxu0 %v4538
        %4584 = vmatprep.subr.mxu0 %v4541
        %4585 = vmatpush1.msra.mxu0 %v4540
        %4586 = vmatprep.subr.mxu0 %v4543
        %4587 = vmatpush1.msra.mxu0 %v4542
        %4588 = vmatprep.subr.mxu0 %v4545
        %4589 = vmatpush1.msra.mxu0 %v4544
        %4590 = vmatprep.subr.mxu0 %v4547
        %4591 = vmatpush1.msra.mxu0 %v4546
        %4592 = vmatprep.subr.mxu0 %v4549
        %4593 = vmatpush1.msra.mxu0 %v4548
        %4594 = vmatprep.subr.mxu0 %v4551
        %4595 = vmatpush1.msra.mxu0 %v4550
        %4596 = vmatprep.subr.mxu0 %v4553
        %4597 = vmatpush1.msra.mxu0 %v4552
        %4598 = vmatprep.subr.mxu0 %v4555
        %4599 = vmatpush1.msra.mxu0 %v4554
        %4600 = vmatprep.subr.mxu0 %v4557
        %4601 = vmatpush1.msra.mxu0 %v4556
        %4602 = vmatprep.subr.mxu0 %v4559
        %4603 = vmatpush1.msra.mxu0 %v4558
        %4604 = vmatprep.subr.mxu0 %v4561
        %4605 = vmatpush1.msra.mxu0 %v4560
        %4606 = vmatprep.subr.mxu0 %v4563
        %4607 = vmatpush1.msra.mxu0 %v4562
        %4608 = vmatprep.subr.mxu0 %v4565
        %4609 = vmatpush1.msra.mxu0 %v4564
        %4610 = vmatprep.subr.mxu0 %v4567
        %4611 = vmatpush1.msra.mxu0 %v4566
        %4612 = vmatprep.subr.mxu0 0.0
        %4613 = vmatpush1.msra.mxu0 0.0
        %4614 = vmatprep.subr.mxu0 0.0
        %4615 = vmatpush1.msra.mxu0 0.0
        %4616 = vmatprep.subr.mxu0 0.0
        %4617 = vmatpush1.msra.mxu0 0.0
        %4618 = vmatprep.subr.mxu0 0.0
        %4619 = vmatpush1.msra.mxu0 0.0
        %4620 = vmatprep.subr.mxu0 0.0
        %4621 = vmatpush1.msra.mxu0 0.0
        %4622 = vmatprep.subr.mxu0 0.0
        %4623 = vmatpush1.msra.mxu0 0.0
        %4624 = vmatprep.subr.mxu0 0.0
        %4625 = vmatpush1.msra.mxu0 0.0
        %4626 = vmatprep.subr.mxu0 0.0
        %4627 = vmatpush1.msra.mxu0 0.0
        %4628 = vmatprep.subr.mxu0 0.0
        %4629 = vmatpush1.msra.mxu0 0.0
        %4630 = vmatprep.subr.mxu0 0.0
        %4631 = vmatpush1.msra.mxu0 0.0
        %4632 = vmatprep.subr.mxu0 0.0
        %4633 = vmatpush1.msra.mxu0 0.0
        %4634 = vmatprep.subr.mxu0 0.0
        %4635 = vmatpush1.msra.mxu0 0.0
        %4636 = vmatprep.subr.mxu0 0.0
        %4637 = vmatpush1.msra.mxu0 0.0
        %4638 = vmatprep.subr.mxu0 0.0
        %4639 = vmatpush1.msra.mxu0 0.0
        %4640 = vmatprep.subr.mxu0 0.0
        %4641 = vmatpush1.msra.mxu0 0.0
        %4642 = vmatprep.subr.mxu0 0.0
        %4643 = vmatpush1.msra.mxu0 0.0
        %4644 = vmatprep.mubr.f32.mxu0 0.0
        %4645 = vmatmul.mubr.f32.gmra.mrb[0].mxu0 %v4534
        %v4646 = vpop.f32.mrb[0].mxu0
        %v4647 = vadd.f32 %v4573, %v4646
        %v4648 = vpop.f32.mrb[0].mxu0
        %v4649 = vadd.f32 %v4577, %v4648
        %4650 = vmatprep.mubr.f32.mxu0 0.0
        %4651 = vmatmul.mubr.f32.gmra.mrb[0].mxu0 %v4535
        %v4652 = vpop.f32.mrb[0].mxu0
        %v4653 = vadd.f32 %v4573, %v4652
        %v4654 = vpop.f32.mrb[0].mxu0
        %v4655 = vadd.f32 %v4577, %v4654
        %4656 = vdwg.mxu0
        %v4657 = vmax.f32 %v4647, 0.0
        %v4658 = vmax.f32 %v4649, 0.0
        %v4659 = vmax.f32 %v4653, 0.0
        %v4660 = vmax.f32 %v4655, 0.0
        %v4661 = vld [vmem:[%s796] sm:$0xff]
        %v4662 = vld [vmem:[%s796 + $0x8] sm:$0xff]
        %v4663 = vld [vmem:[%s796 + $0x10] sm:$0xff]
        %v4664 = vld [vmem:[%s796 + $0x18] sm:$0xff]
        %v4665 = vld [vmem:[%s796 + $0x20] sm:$0xff]
        %v4666 = vld [vmem:[%s796 + $0x28] sm:$0xff]
        %v4667 = vld [vmem:[%s796 + $0x30] sm:$0xff]
        %v4668 = vld [vmem:[%s796 + $0x38] sm:$0xff]
        %v4669 = vld [vmem:[%s796 + $0x40] sm:$0xff]
        %v4670 = vld [vmem:[%s796 + $0x48] sm:$0xff]
        %v4671 = vld [vmem:[%s796 + $0x50] sm:$0xff]
        %v4672 = vld [vmem:[%s796 + $0x58] sm:$0xff]
        %v4673 = vld [vmem:[%s796 + $0x60] sm:$0xff]
        %v4674 = vld [vmem:[%s796 + $0x68] sm:$0xff]
        %v4675 = vld [vmem:[%s796 + $0x70] sm:$0xff]
        %v4676 = vld [vmem:[%s796 + $0x78] sm:$0xff]
        %v4677 = vld [vmem:[%s796 + $0x80] sm:$0xff]
        %v4678 = vld [vmem:[%s796 + $0x88] sm:$0xff]
        %v4679 = vld [vmem:[%s796 + $0x90] sm:$0xff]
        %v4680 = vld [vmem:[%s796 + $0x98] sm:$0xff]
        %v4681 = vld [vmem:[%s796 + $0xa0] sm:$0xff]
        %v4682 = vld [vmem:[%s796 + $0xa8] sm:$0xff]
        %v4683 = vld [vmem:[%s796 + $0xb0] sm:$0xff]
        %v4684 = vld [vmem:[%s796 + $0xb8] sm:$0xff]
        %v4685 = vld [vmem:[%s796 + $0xc0] sm:$0xff]
        %v4686 = vld [vmem:[%s796 + $0xc8] sm:$0xff]
        %v4687 = vld [vmem:[%s796 + $0xd0] sm:$0xff]
        %v4688 = vld [vmem:[%s796 + $0xd8] sm:$0xff]
        %v4689 = vld [vmem:[%s796 + $0xe0] sm:$0xff]
        %v4690 = vld [vmem:[%s796 + $0xe8] sm:$0xff]
        %v4691 = vld [vmem:[%s796 + $0xf0] sm:$0xff]
        %v4692 = vld [vmem:[%s796 + $0xf8] sm:$0xff]
        %v4693 = vlaneseq
        %v4694 = vshrl.u32 %v4693, 7
        %v4695 = vsub.s32 0, %v4694
        %v4696 = vrot.slane %v935, %v4695
        %4697 = vmatprep.subr.mxu0 0.0
        %4698 = vmatpush1.msra.mxu0 %v4661
        %4699 = vmatprep.subr.mxu0 0.0
        %4700 = vmatpush1.msra.mxu0 %v4662
        %4701 = vmatprep.subr.mxu0 0.0
        %4702 = vmatpush1.msra.mxu0 %v4663
        %4703 = vmatprep.subr.mxu0 0.0
        %4704 = vmatpush1.msra.mxu0 %v4664
        %4705 = vmatprep.subr.mxu0 0.0
        %4706 = vmatpush1.msra.mxu0 %v4665
        %4707 = vmatprep.subr.mxu0 0.0
        %4708 = vmatpush1.msra.mxu0 %v4666
        %4709 = vmatprep.subr.mxu0 0.0
        %4710 = vmatpush1.msra.mxu0 %v4667
        %4711 = vmatprep.subr.mxu0 0.0
        %4712 = vmatpush1.msra.mxu0 %v4668
        %4713 = vmatprep.subr.mxu0 0.0
        %4714 = vmatpush1.msra.mxu0 %v4669
        %4715 = vmatprep.subr.mxu0 0.0
        %4716 = vmatpush1.msra.mxu0 %v4670
        %4717 = vmatprep.subr.mxu0 0.0
        %4718 = vmatpush1.msra.mxu0 %v4671
        %4719 = vmatprep.subr.mxu0 0.0
        %4720 = vmatpush1.msra.mxu0 %v4672
        %4721 = vmatprep.subr.mxu0 0.0
        %4722 = vmatpush1.msra.mxu0 %v4673
        %4723 = vmatprep.subr.mxu0 0.0
        %4724 = vmatpush1.msra.mxu0 %v4674
        %4725 = vmatprep.subr.mxu0 0.0
        %4726 = vmatpush1.msra.mxu0 %v4675
        %4727 = vmatprep.subr.mxu0 0.0
        %4728 = vmatpush1.msra.mxu0 %v4676
        %4729 = vmatprep.subr.mxu0 0.0
        %4730 = vmatpush1.msra.mxu0 %v4677
        %4731 = vmatprep.subr.mxu0 0.0
        %4732 = vmatpush1.msra.mxu0 %v4678
        %4733 = vmatprep.subr.mxu0 0.0
        %4734 = vmatpush1.msra.mxu0 %v4679
        %4735 = vmatprep.subr.mxu0 0.0
        %4736 = vmatpush1.msra.mxu0 %v4680
        %4737 = vmatprep.subr.mxu0 0.0
        %4738 = vmatpush1.msra.mxu0 %v4681
        %4739 = vmatprep.subr.mxu0 0.0
        %4740 = vmatpush1.msra.mxu0 %v4682
        %4741 = vmatprep.subr.mxu0 0.0
        %4742 = vmatpush1.msra.mxu0 %v4683
        %4743 = vmatprep.subr.mxu0 0.0
        %4744 = vmatpush1.msra.mxu0 %v4684
        %4745 = vmatprep.subr.mxu0 0.0
        %4746 = vmatpush1.msra.mxu0 %v4685
        %4747 = vmatprep.subr.mxu0 0.0
        %4748 = vmatpush1.msra.mxu0 %v4686
        %4749 = vmatprep.subr.mxu0 0.0
        %4750 = vmatpush1.msra.mxu0 %v4687
        %4751 = vmatprep.subr.mxu0 0.0
        %4752 = vmatpush1.msra.mxu0 %v4688
        %4753 = vmatprep.subr.mxu0 0.0
        %4754 = vmatpush1.msra.mxu0 %v4689
        %4755 = vmatprep.subr.mxu0 0.0
        %4756 = vmatpush1.msra.mxu0 %v4690
        %4757 = vmatprep.subr.mxu0 0.0
        %4758 = vmatpush1.msra.mxu0 %v4691
        %4759 = vmatprep.subr.mxu0 0.0
        %4760 = vmatpush1.msra.mxu0 %v4692
        %4761 = vmatprep.mubr.f32.mxu0 %v4658
        %4762 = vmatmul.mubr.f32.gmra.mrb[0].mxu0 %v4657
        %v4763 = vpop.f32.mrb[0].mxu0
        %v4764 = vadd.f32 %v4696, %v4763
        %v4765 = vpop.f32.mrb[0].mxu0
        %4766 = vmatprep.mubr.f32.mxu0 %v4660
        %4767 = vmatmul.mubr.f32.gmra.mrb[0].mxu0 %v4659
        %v4768 = vpop.f32.mrb[0].mxu0
        %v4769 = vadd.f32 %v4696, %v4768
        %v4770 = vpop.f32.mrb[0].mxu0
        %4771 = vdwg.mxu0
        %v4772 = vadd.f32 %v4534, %v4764
        %v4773 = vadd.f32 %v4535, %v4769
        %4774 = vadd.xlane.f32.xlu0 %v4772
        %v4775 = vpop.xlane.xlu0 %4774
        %4776 = vadd.xlane.f32.xlu0 %v4773
        %v4777 = vpop.xlane.xlu0 %4776
        %v4778 = vmul.f32 %v4775, %v2674
        %v4779 = vmul.f32 %v4777, %v2674
        %v4780 = vsub.f32 %v4772, %v4778
        %v4781 = vsub.f32 %v4773, %v4779
        %v4782 = vmul.f32 %v4780, %v4780
        %v4783 = vmul.f32 %v4781, %v4781
        %4784 = vadd.xlane.f32.xlu0 %v4782
        %v4785 = vpop.xlane.xlu0 %4784
        %4786 = vadd.xlane.f32.xlu0 %v4783
        %v4787 = vpop.xlane.xlu0 %4786
        %v4788 = vmul.f32 %v4785, %v2674
        %v4789 = vmul.f32 %v4787, %v2674
        %v4790 = vadd.f32 %v4788, 1e-05
        %v4791 = vadd.f32 %v4789, 1e-05
        %v4792 = vrsqrt.pop %v4790
        %v4793 = vrsqrt.pop %v4791
        %v4794 = vmul.f32 %v4780, %v4792
        %v4795 = vmul.f32 %v4781, %v4793
        %v4796 = vlaneseq
        %v4797 = vshrl.u32 %v4796, 7
        %v4798 = vsub.s32 5, %v4797
        %v4799 = vrot.slane %v935, %v4798
        %v4800 = vmul.f32 %v4794, %v4799
        %v4801 = vmul.f32 %v4795, %v4799
        %v4802 = vlaneseq
        %v4803 = vshrl.u32 %v4802, 7
        %v4804 = vsub.s32 6, %v4803
        %v4805 = vrot.slane %v935, %v4804
        %v4806 = vadd.f32 %v4800, %v4805
        %v4807 = vadd.f32 %v4801, %v4805
        %4808 = vst [vmem:[#allocation19] sm:$0xff] %v4806
        %4809 = vst [vmem:[#allocation19 + $0x8] sm:$0xff] %v4807
        // Predicated region
        $region121: #{tpu_custom_call.1} parent=75 // pred_check
          %p4810 = pneg %p438
        $region122: #{tpu_custom_call.1} parent=75 // pred_check_branch
          %4812 = sbr.rel (%p4810) target = $region124
        $region123: #{tpu_custom_call.1} parent=75 // pred_region
          %s4813 = smul.u32 2, %s48
          %s4815 = ssub.s32 256, 256
          %4816 = vsyncadd [#allocation4], %s4815
          %s4817 = smul.addr %s4813, 128
          %s4818 = scalar_lea.hbm %s14, %s4817
          %s4819 = sshll.u32 [#allocation19], 4
          %s4820 = int_to_ptr.vmem [resolvable:$true] %s4819
          %4825 = dma.vmem_to_hbm [thread:$0]  %s4820, 256, %s4818, [#allocation4], 128, 128, 8
        $region124: #{tpu_custom_call.1} parent=75 // pred_fallthru
          _
        // Predicated region
        $region125: #{tpu_custom_call.1} parent=75 // pred_check
          %p4826 = pneg %p438
        $region126: #{tpu_custom_call.1} parent=75 // pred_check_branch
          %4828 = sbr.rel (%p4826) target = $region128
        $region127: #{tpu_custom_call.1} parent=75 // pred_region
          %4829 = dma.done [#allocation4], 256
        $region128: #{tpu_custom_call.1} parent=75 // pred_fallthru
          _
      $region76: #{tpu_custom_call.1} parent=5 // pred_fallthru
        _
      %p4830 = scmp.le.s32.totalorder 2, %s39
      // Predicated region
      $region129: #{tpu_custom_call.1} parent=5 // pred_check
        %p4831 = pneg %p4830
      $region130: #{tpu_custom_call.1} parent=5 // pred_check_branch
        %4833 = sbr.rel (%p4831) target = $region132
      $region131: #{tpu_custom_call.1} parent=5 // pred_region
        %s4834 = ssub.s32 %s39, 2
      $region132: #{tpu_custom_call.1} parent=5 // pred_fallthru
        _
    $region6: #{tpu_custom_call.1} parent=1 // loop_footer
      %s43 = sadd.s32 1, %s39
    $region7: #{tpu_custom_call.1} parent=1 // loop_footer_branch
      %38 = sbr.rel target = $region3
    $region8: #{tpu_custom_call.1} parent=1 // loop_exit
      _
    %4835 = vsyncpa [#allocation3], 1
    %s4836 = scalar_lea.sflag [#allocation3], 1
    %4837 = vsyncpa %s4836, 1
    %4838 = vsyncpa [#allocation6], 1
    %s4839 = scalar_lea.sflag [#allocation6], 1
    %4840 = vsyncpa %s4839, 1
    %4841 = vsyncpa [#allocation9], 1
    %s4842 = scalar_lea.sflag [#allocation9], 1
    %4843 = vsyncpa %s4842, 1
    %4844 = vsyncpa [#allocation12], 1
    %s4845 = scalar_lea.sflag [#allocation12], 1
    %4846 = vsyncpa %s4845, 1
    %4847 = vsyncpa [#allocation15], 1
    %s4848 = scalar_lea.sflag [#allocation15], 1
    %4849 = vsyncpa %s4848, 1
    %4850 = vsyncpa [#allocation18], 1
    %s4851 = scalar_lea.sflag [#allocation18], 1
    %4852 = vsyncpa %s4851, 1
    %4853 = vsyncpa [#allocation4], 1
    %s4854 = scalar_lea.sflag [#allocation4], 1
    %4855 = vsyncpa %s4854, 1

</llo_original>
